<compile_context>
chip_gen: v7x
topology: tpu7x:2x2x1
jax: 0.10.0
libtpu: 0.0.40
codegen_flags: <defaults>
</compile_context>

<pallas_src>
import functools

import jax
import jax.numpy as jnp
from jax import lax
from jax.experimental import pallas as pl
from jax.experimental.pallas import tpu as pltpu


# ----------------------------------------------------------------------------
# Pallas kernel: one bidirectional LSTM layer over the full sequence.
#   x_ref   : (S*Bp, D_in)  time-major rows (row t*Bp + b = step t, batch b)
#   wih_ref : (D_in, 8H)    [W_ih_fwd^T | W_ih_bwd^T], gate cols [i, f, o, g]
#   whh_ref : (2H, 8H)      block-diag [W_hh_fwd^T, 0 ; 0, W_hh_bwd^T]
#   b_ref   : (1, 8H)       (b_ih + b_hh) fwd | bwd, f32
#   out_ref : (S*Bp, 2H)    [h_fwd | h_bwd] per step
#   gx_scr  : (S*Bp, 8H)    precomputed input-projection gates (f32)
# ----------------------------------------------------------------------------
def bilstm_layer_kernel(x_ref, wih_ref, whh_ref, b_ref, out_ref, gx_scr,
                        *, batch_p, seq_len, hidden):
    Bp = batch_p
    S = seq_len
    H = hidden
    G = 4 * H
    cdtype = whh_ref.dtype  # matmul operand dtype (f32 or bf16)

    # ---- Phase 1: hoisted input projection (one big MXU matmul, bias fused) --
    gx_scr[...] = jnp.dot(x_ref[...], wih_ref[...],
                          preferred_element_type=jnp.float32) + b_ref[...]

    def cell(gates, c):
        # gate columns pre-permuted to [i, f, o, g]: one sigmoid over 3H lanes.
        sig = jax.nn.sigmoid(gates[:, 0:3 * H])
        i = sig[:, 0:H]
        f = sig[:, H:2 * H]
        o = sig[:, 2 * H:3 * H]
        g = jnp.tanh(gates[:, 3 * H:4 * H])
        c_new = f * c + i * g
        h_new = o * jnp.tanh(c_new)
        return h_new, c_new

    # ---- Phase 2: sequential recurrence, fwd + bwd fused, state in vregs -----
    def step(t, carry):
        h_cat, c_f, c_b = carry              # carried in registers, no VMEM trip
        rt = S - 1 - t                       # reverse-direction timestep
        rf = pl.multiple_of(t * Bp, Bp)      # Bp is a multiple of 8 -> aligned
        rb = pl.multiple_of(rt * Bp, Bp)

        # One fused recurrent matmul for both directions (block-diagonal W_hh).
        recur = jnp.dot(h_cat.astype(cdtype), whh_ref[...],
                        preferred_element_type=jnp.float32)       # (Bp, 8H)

        gx_f = gx_scr[pl.ds(rf, Bp), :]      # full-lane, tile-aligned loads
        gx_b = gx_scr[pl.ds(rb, Bp), :]
        h_f, c_f = cell(gx_f[:, 0:G] + recur[:, 0:G], c_f)
        h_b, c_b = cell(gx_b[:, G:2 * G] + recur[:, G:2 * G], c_b)

        # Direct per-step output stores (off the serial dependence chain).
        out_ref[pl.ds(rf, Bp), 0:H] = h_f
        out_ref[pl.ds(rb, Bp), H:2 * H] = h_b

        h_cat = jnp.concatenate([h_f, h_b], axis=1)               # (Bp, 2H)
        return h_cat, c_f, c_b

    h0 = jnp.zeros((Bp, 2 * H), jnp.float32)
    c0 = jnp.zeros((Bp, H), jnp.float32)
    # Bounded partial unroll: lets the scheduler interleave fwd/bwd chains
    # across step boundaries without blowing vreg pressure at large S.
    lax.fori_loop(0, S, step, (h0, c0, c0), unroll=min(8, S))


def bilstm_layer(x2d, layer_params, seq_len, batch_p, hidden_size):
    """x2d: (S*Bp, D_in) -> (S*Bp, 2H) float32, both directions fused."""
    wih_cat, whh_blk, bias_cat = layer_params
    SB = seq_len * batch_p
    H = hidden_size
    kernel = functools.partial(bilstm_layer_kernel, batch_p=batch_p,
                               seq_len=seq_len, hidden=H)
    return pl.pallas_call(
        kernel,
        out_shape=jax.ShapeDtypeStruct((SB, 2 * H), jnp.float32),
        in_specs=[pl.BlockSpec(memory_space=pltpu.MemorySpace.VMEM)] * 4,
        out_specs=pl.BlockSpec(memory_space=pltpu.MemorySpace.VMEM),
        scratch_shapes=[
            pltpu.VMEM((SB, 8 * H), jnp.float32),  # precomputed gates_x (fwd|bwd)
        ],
        compiler_params=pltpu.CompilerParams(
            vmem_limit_bytes=32 * 1024 * 1024),    # safe on v5e/v6e/v7x
    )(x2d, wih_cat, whh_blk, bias_cat)


# ----------------------------------------------------------------------------
# One-time parameter preparation (done outside the forward pass).
#   - transpose W_ih / W_hh
#   - permute PyTorch gate order [i, f, g, o] -> [i, f, o, g]
#   - fuse b_ih + b_hh
#   - concatenate forward/backward input-projection weights -> (D_in, 8H)
#   - build a block-diagonal (2H, 8H) recurrent weight so both directions'
#     recurrent dots become ONE matmul per step
#   - cast matmul operands to the compute dtype (bf16 is MXU-native on
#     v5e/v6e/v7x; elementwise math stays f32 in the kernel)
# ----------------------------------------------------------------------------
def _permute_gate_rows(w, H):
    return jnp.concatenate([w[0:H], w[H:2 * H], w[3 * H:4 * H], w[2 * H:3 * H]],
                           axis=0)


def prepare_params(raw_params, hidden_size, num_layers, compute_dtype=jnp.float32):
    H = hidden_size
    prepared = []
    for l in range(num_layers):
        w_ih_f, w_hh_f, b_ih_f, b_hh_f = raw_params[(l, 0)]
        w_ih_b, w_hh_b, b_ih_b, b_hh_b = raw_params[(l, 1)]
        wih_cat = jnp.concatenate(
            [_permute_gate_rows(w_ih_f, H).T, _permute_gate_rows(w_ih_b, H).T],
            axis=1).astype(compute_dtype)                            # (D_in, 8H)
        whh_f_t = _permute_gate_rows(w_hh_f, H).T                    # (H, 4H)
        whh_b_t = _permute_gate_rows(w_hh_b, H).T                    # (H, 4H)
        z = jnp.zeros((H, 4 * H), whh_f_t.dtype)
        whh_blk = jnp.concatenate(
            [jnp.concatenate([whh_f_t, z], axis=1),
             jnp.concatenate([z, whh_b_t], axis=1)],
            axis=0).astype(compute_dtype)                            # (2H, 8H)
        bias_cat = jnp.concatenate(
            [_permute_gate_rows(b_ih_f + b_hh_f, H),
             _permute_gate_rows(b_ih_b + b_hh_b, H)])[None, :].astype(jnp.float32)
        prepared.append((wih_cat, whh_blk, bias_cat))
    return prepared


# ----------------------------------------------------------------------------
# WordvecNet forward (glue in plain JAX; projection + recurrence in Pallas).
# ----------------------------------------------------------------------------
@functools.partial(jax.jit, static_argnums=(2, 3))
def wordvec_net_forward(x, prepared_params, hidden_size, num_layers):
    """x: (batch, seq, input_size) -> (seq, batch, 2*hidden) [batch squeezed if 1]."""
    batch, seq_len, _ = x.shape
    batch_p = ((batch + 7) // 8) * 8            # pad batch to a sublane multiple
    xt = jnp.transpose(x, (1, 0, 2))            # torch.transpose(x, 0, 1): (S,B,D)
    if batch_p != batch:
        xt = jnp.pad(xt, ((0, 0), (0, batch_p - batch), (0, 0)))
    inp2d = xt.reshape(seq_len * batch_p, -1)   # time-major rows, contiguous
    for l in range(num_layers):
        p = prepared_params[l]
        inp2d = bilstm_layer(inp2d.astype(p[0].dtype), p, seq_len, batch_p,
                             hidden_size)
    hiddens = inp2d.reshape(seq_len, batch_p, 2 * hidden_size)[:, :batch, :]
    if batch == 1:                              # hiddens.squeeze(1)
        hiddens = jnp.squeeze(hiddens, axis=1)
    return hiddens


# ----------------------------------------------------------------------------
# Pure-JAX reference (lax.scan, unpermuted raw params) for correctness check.
# ----------------------------------------------------------------------------
def lstm_ref_direction(x_seq, w_ih, w_hh, b_ih, b_hh, H):
    B = x_seq.shape[1]

    def step(carry, x_t):
        h, c = carry
        gates = x_t @ w_ih.T + h @ w_hh.T + b_ih + b_hh
        i = jax.nn.sigmoid(gates[:, 0:H])
        f = jax.nn.sigmoid(gates[:, H:2 * H])
        g = jnp.tanh(gates[:, 2 * H:3 * H])
        o = jax.nn.sigmoid(gates[:, 3 * H:4 * H])
        c = f * c + i * g
        h = o * jnp.tanh(c)
        return (h, c), h

    init = (jnp.zeros((B, H), jnp.float32), jnp.zeros((B, H), jnp.float32))
    _, hs = lax.scan(step, init, x_seq)
    return hs


def wordvec_net_ref(x, params, hidden_size, num_layers):
    x = jnp.transpose(x, (1, 0, 2))
    inp = x
    for l in range(num_layers):
        h_f = lstm_ref_direction(inp, *params[(l, 0)], hidden_size)
        h_b = jnp.flip(
            lstm_ref_direction(jnp.flip(inp, 0), *params[(l, 1)], hidden_size), 0)
        inp = jnp.concatenate([h_f, h_b], axis=-1)
    if inp.shape[1] == 1:
        inp = jnp.squeeze(inp, axis=1)
    return inp


# ----------------------------------------------------------------------------
# Deterministic parameter init (PyTorch-style uniform(-1/sqrt(H), 1/sqrt(H))).
# ----------------------------------------------------------------------------
def init_params(key, input_size, hidden_size, num_layers):
    params = {}
    stdv = 1.0 / jnp.sqrt(jnp.float32(hidden_size))
    for l in range(num_layers):
        d_in = input_size if l == 0 else 2 * hidden_size
        for d in range(2):  # 0 = forward, 1 = reverse
            key, k1, k2, k3, k4 = jax.random.split(key, 5)
            w_ih = jax.random.uniform(k1, (4 * hidden_size, d_in), jnp.float32, -stdv, stdv)
            w_hh = jax.random.uniform(k2, (4 * hidden_size, hidden_size), jnp.float32, -stdv, stdv)
            b_ih = jax.random.uniform(k3, (4 * hidden_size,), jnp.float32, -stdv, stdv)
            b_hh = jax.random.uniform(k4, (4 * hidden_size,), jnp.float32, -stdv, stdv)
            params[(l, d)] = (w_ih, w_hh, b_ih, b_hh)
    return params


if __name__ == "__main__":
    batch, seq_len, input_size = 2, 8, 8
    hidden_size, num_layers = 32, 2

    key = jax.random.PRNGKey(0)
    kx, kp = jax.random.split(key)
    x = jax.random.normal(kx, (batch, seq_len, input_size), jnp.float32)
    raw_params = init_params(kp, input_size, hidden_size, num_layers)

    ref = wordvec_net_ref(x, raw_params, hidden_size, num_layers)

    # f32 matmul operands: tight check against the f32 reference.
    p_f32 = prepare_params(raw_params, hidden_size, num_layers, jnp.float32)
    out = jax.block_until_ready(wordvec_net_forward(x, p_f32, hidden_size, num_layers))
    assert out.shape == (seq_len, batch, 2 * hidden_size), out.shape
    assert jnp.allclose(out, ref, atol=1e-4, rtol=1e-4), "f32 kernel mismatch vs reference"

    # bf16 matmul operands (MXU fast path on all generations), f32 accumulate +
    # elementwise: loose tolerance against the f32 reference.
    p_bf16 = prepare_params(raw_params, hidden_size, num_layers, jnp.bfloat16)
    out_bf16 = jax.block_until_ready(wordvec_net_forward(x, p_bf16, hidden_size, num_layers))
    assert out_bf16.shape == (seq_len, batch, 2 * hidden_size), out_bf16.shape
    assert jnp.allclose(out_bf16, ref, atol=1e-1, rtol=1e-1), "bf16 kernel drifted too far"

    print("KERNEL_OK")
</pallas_src>

<mosaic_0001>
module attributes {stable_mosaic.version = 11 : i64} {
  func.func @bilstm_layer_kernel(%arg0: memref<64x8xf32, #tpu.memory_space<vmem>>, %arg1: memref<8x256xf32, #tpu.memory_space<vmem>>, %arg2: memref<64x256xf32, #tpu.memory_space<vmem>>, %arg3: memref<1x256xf32, #tpu.memory_space<vmem>>, %arg4: memref<64x64xf32, #tpu.memory_space<vmem>>, %arg5: memref<64x256xf32, #tpu.memory_space<vmem>>) attributes {dimension_semantics = [], scalar_prefetch = 0 : i64, scratch_operands = 1 : i64, tpu.core_type = #tpu.core_type<tc>} {
    %c0 = arith.constant 0 : index
    %c0_0 = arith.constant 0 : index
    %0 = vector.load %arg0[%c0, %c0_0] : memref<64x8xf32, #tpu.memory_space<vmem>>, vector<64x8xf32>
    %c0_1 = arith.constant 0 : index
    %c0_2 = arith.constant 0 : index
    %1 = vector.load %arg1[%c0_1, %c0_2] : memref<8x256xf32, #tpu.memory_space<vmem>>, vector<8x256xf32>
    %cst = arith.constant dense<0.000000e+00> : vector<64x256xf32>
    %2 = tpu.matmul %0, %1, %cst {dimension_numbers = #tpu.dot_dimension_numbers<[1], [0], [0], [1], [0, 0, 1, 1], [], []>} : vector<64x8xf32>, vector<8x256xf32>, vector<64x256xf32> -> vector<64x256xf32>
    %c0_3 = arith.constant 0 : index
    %c0_4 = arith.constant 0 : index
    %3 = vector.load %arg3[%c0_3, %c0_4] : memref<1x256xf32, #tpu.memory_space<vmem>>, vector<1x256xf32>
    %4 = vector.broadcast %3 : vector<1x256xf32> to vector<64x256xf32>
    %5 = arith.addf %2, %4 : vector<64x256xf32>
    %c0_5 = arith.constant 0 : index
    %c0_6 = arith.constant 0 : index
    %6 = vector.load %arg5[%c0_5, %c0_6] : memref<64x256xf32, #tpu.memory_space<vmem>>, vector<64x256xf32>
    tpu.vector_store %arg5[%c0_5, %c0_6], %5 {strides = array<i32>} : memref<64x256xf32, #tpu.memory_space<vmem>>, vector<64x256xf32>,
    %cst_7 = arith.constant 0.000000e+00 : f32
    %7 = vector.broadcast %cst_7 : f32 to vector<8x64xf32>
    %cst_8 = arith.constant 0.000000e+00 : f32
    %8 = vector.broadcast %cst_8 : f32 to vector<8x32xf32>
    %c0_i32 = arith.constant 0 : i32
    %c7_i32 = arith.constant 7 : i32
    %9 = arith.subi %c7_i32, %c0_i32 : i32
    %c8_i32 = arith.constant 8 : i32
    %10 = arith.muli %c0_i32, %c8_i32 : i32
    %11 = tpu.assume_multiple %10, 8 : i32
    %c8_i32_9 = arith.constant 8 : i32
    %12 = arith.muli %9, %c8_i32_9 : i32
    %13 = tpu.assume_multiple %12, 8 : i32
    %c0_10 = arith.constant 0 : index
    %c0_11 = arith.constant 0 : index
    %14 = vector.load %arg2[%c0_10, %c0_11] : memref<64x256xf32, #tpu.memory_space<vmem>>, vector<64x256xf32>
    %cst_12 = arith.constant dense<0.000000e+00> : vector<8x256xf32>
    %15 = tpu.matmul %7, %14, %cst_12 {dimension_numbers = #tpu.dot_dimension_numbers<[1], [0], [0], [1], [0, 0, 1, 1], [], []>} : vector<8x64xf32>, vector<64x256xf32>, vector<8x256xf32> -> vector<8x256xf32>
    %16 = arith.index_cast %11 : i32 to index
    %c0_13 = arith.constant 0 : index
    %17 = vector.load %arg5[%16, %c0_13] : memref<64x256xf32, #tpu.memory_space<vmem>>, vector<8x256xf32>
    %18 = arith.index_cast %13 : i32 to index
    %c0_14 = arith.constant 0 : index
    %19 = vector.load %arg5[%18, %c0_14] : memref<64x256xf32, #tpu.memory_space<vmem>>, vector<8x256xf32>
    %20 = vector.extract_strided_slice %17 {offsets = [0, 0], sizes = [8, 128], strides = [1, 1]} : vector<8x256xf32> to vector<8x128xf32>
    %21 = vector.extract_strided_slice %15 {offsets = [0, 0], sizes = [8, 128], strides = [1, 1]} : vector<8x256xf32> to vector<8x128xf32>
    %22 = arith.addf %20, %21 : vector<8x128xf32>
    %23 = vector.extract_strided_slice %22 {offsets = [0, 0], sizes = [8, 96], strides = [1, 1]} : vector<8x128xf32> to vector<8x96xf32>
    %24 = arith.negf %23 : vector<8x96xf32>
    %25 = math.exp %24 : vector<8x96xf32>
    %cst_15 = arith.constant 1.000000e+00 : f32
    %26 = vector.broadcast %cst_15 : f32 to vector<8x96xf32>
    %27 = arith.addf %26, %25 : vector<8x96xf32>
    %28 = arith.divf %26, %27 : vector<8x96xf32>
    %29 = vector.extract_strided_slice %28 {offsets = [0, 0], sizes = [8, 32], strides = [1, 1]} : vector<8x96xf32> to vector<8x32xf32>
    %30 = vector.extract_strided_slice %28 {offsets = [0, 32], sizes = [8, 32], strides = [1, 1]} : vector<8x96xf32> to vector<8x32xf32>
    %31 = vector.extract_strided_slice %28 {offsets = [0, 64], sizes = [8, 32], strides = [1, 1]} : vector<8x96xf32> to vector<8x32xf32>
    %32 = vector.extract_strided_slice %22 {offsets = [0, 96], sizes = [8, 32], strides = [1, 1]} : vector<8x128xf32> to vector<8x32xf32>
    %33 = math.tanh %32 : vector<8x32xf32>
    %34 = arith.mulf %30, %8 : vector<8x32xf32>
    %35 = arith.mulf %29, %33 : vector<8x32xf32>
    %36 = arith.addf %34, %35 : vector<8x32xf32>
    %37 = math.tanh %36 : vector<8x32xf32>
    %38 = arith.mulf %31, %37 : vector<8x32xf32>
    %39 = vector.extract_strided_slice %19 {offsets = [0, 128], sizes = [8, 128], strides = [1, 1]} : vector<8x256xf32> to vector<8x128xf32>
    %40 = vector.extract_strided_slice %15 {offsets = [0, 128], sizes = [8, 128], strides = [1, 1]} : vector<8x256xf32> to vector<8x128xf32>
    %41 = arith.addf %39, %40 : vector<8x128xf32>
    %42 = vector.extract_strided_slice %41 {offsets = [0, 0], sizes = [8, 96], strides = [1, 1]} : vector<8x128xf32> to vector<8x96xf32>
    %43 = arith.negf %42 : vector<8x96xf32>
    %44 = math.exp %43 : vector<8x96xf32>
    %cst_16 = arith.constant 1.000000e+00 : f32
    %45 = vector.broadcast %cst_16 : f32 to vector<8x96xf32>
    %46 = arith.addf %45, %44 : vector<8x96xf32>
    %47 = arith.divf %45, %46 : vector<8x96xf32>
    %48 = vector.extract_strided_slice %47 {offsets = [0, 0], sizes = [8, 32], strides = [1, 1]} : vector<8x96xf32> to vector<8x32xf32>
    %49 = vector.extract_strided_slice %47 {offsets = [0, 32], sizes = [8, 32], strides = [1, 1]} : vector<8x96xf32> to vector<8x32xf32>
    %50 = vector.extract_strided_slice %47 {offsets = [0, 64], sizes = [8, 32], strides = [1, 1]} : vector<8x96xf32> to vector<8x32xf32>
    %51 = vector.extract_strided_slice %41 {offsets = [0, 96], sizes = [8, 32], strides = [1, 1]} : vector<8x128xf32> to vector<8x32xf32>
    %52 = math.tanh %51 : vector<8x32xf32>
    %53 = arith.mulf %49, %8 : vector<8x32xf32>
    %54 = arith.mulf %48, %52 : vector<8x32xf32>
    %55 = arith.addf %53, %54 : vector<8x32xf32>
    %56 = math.tanh %55 : vector<8x32xf32>
    %57 = arith.mulf %50, %56 : vector<8x32xf32>
    %58 = arith.index_cast %11 : i32 to index
    %c0_17 = arith.constant 0 : index
    %59 = vector.load %arg4[%58, %c0_17] : memref<64x64xf32, #tpu.memory_space<vmem>>, vector<8x32xf32>
    tpu.vector_store %arg4[%58, %c0_17], %38 {strides = array<i32>} : memref<64x64xf32, #tpu.memory_space<vmem>>, vector<8x32xf32>,
    %60 = arith.index_cast %13 : i32 to index
    %c32 = arith.constant 32 : index
    %61 = vector.load %arg4[%60, %c32] : memref<64x64xf32, #tpu.memory_space<vmem>>, vector<8x32xf32>
    tpu.vector_store %arg4[%60, %c32], %57 {strides = array<i32>} : memref<64x64xf32, #tpu.memory_space<vmem>>, vector<8x32xf32>,
    %62 = tpu.concatenate %38, %57 in 1 : vector<8x32xf32>, vector<8x32xf32> -> vector<8x64xf32>
    %c1_i32 = arith.constant 1 : i32
    %c7_i32_18 = arith.constant 7 : i32
    %63 = arith.subi %c7_i32_18, %c1_i32 : i32
    %c8_i32_19 = arith.constant 8 : i32
    %64 = arith.muli %c1_i32, %c8_i32_19 : i32
    %65 = tpu.assume_multiple %64, 8 : i32
    %c8_i32_20 = arith.constant 8 : i32
    %66 = arith.muli %63, %c8_i32_20 : i32
    %67 = tpu.assume_multiple %66, 8 : i32
    %c0_21 = arith.constant 0 : index
    %c0_22 = arith.constant 0 : index
    %68 = vector.load %arg2[%c0_21, %c0_22] : memref<64x256xf32, #tpu.memory_space<vmem>>, vector<64x256xf32>
    %cst_23 = arith.constant dense<0.000000e+00> : vector<8x256xf32>
    %69 = tpu.matmul %62, %68, %cst_23 {dimension_numbers = #tpu.dot_dimension_numbers<[1], [0], [0], [1], [0, 0, 1, 1], [], []>} : vector<8x64xf32>, vector<64x256xf32>, vector<8x256xf32> -> vector<8x256xf32>
    %70 = arith.index_cast %65 : i32 to index
    %c0_24 = arith.constant 0 : index
    %71 = vector.load %arg5[%70, %c0_24] : memref<64x256xf32, #tpu.memory_space<vmem>>, vector<8x256xf32>
    %72 = arith.index_cast %67 : i32 to index
    %c0_25 = arith.constant 0 : index
    %73 = vector.load %arg5[%72, %c0_25] : memref<64x256xf32, #tpu.memory_space<vmem>>, vector<8x256xf32>
    %74 = vector.extract_strided_slice %71 {offsets = [0, 0], sizes = [8, 128], strides = [1, 1]} : vector<8x256xf32> to vector<8x128xf32>
    %75 = vector.extract_strided_slice %69 {offsets = [0, 0], sizes = [8, 128], strides = [1, 1]} : vector<8x256xf32> to vector<8x128xf32>
    %76 = arith.addf %74, %75 : vector<8x128xf32>
    %77 = vector.extract_strided_slice %76 {offsets = [0, 0], sizes = [8, 96], strides = [1, 1]} : vector<8x128xf32> to vector<8x96xf32>
    %78 = arith.negf %77 : vector<8x96xf32>
    %79 = math.exp %78 : vector<8x96xf32>
    %cst_26 = arith.constant 1.000000e+00 : f32
    %80 = vector.broadcast %cst_26 : f32 to vector<8x96xf32>
    %81 = arith.addf %80, %79 : vector<8x96xf32>
    %82 = arith.divf %80, %81 : vector<8x96xf32>
    %83 = vector.extract_strided_slice %82 {offsets = [0, 0], sizes = [8, 32], strides = [1, 1]} : vector<8x96xf32> to vector<8x32xf32>
    %84 = vector.extract_strided_slice %82 {offsets = [0, 32], sizes = [8, 32], strides = [1, 1]} : vector<8x96xf32> to vector<8x32xf32>
    %85 = vector.extract_strided_slice %82 {offsets = [0, 64], sizes = [8, 32], strides = [1, 1]} : vector<8x96xf32> to vector<8x32xf32>
    %86 = vector.extract_strided_slice %76 {offsets = [0, 96], sizes = [8, 32], strides = [1, 1]} : vector<8x128xf32> to vector<8x32xf32>
    %87 = math.tanh %86 : vector<8x32xf32>
    %88 = arith.mulf %84, %36 : vector<8x32xf32>
    %89 = arith.mulf %83, %87 : vector<8x32xf32>
    %90 = arith.addf %88, %89 : vector<8x32xf32>
    %91 = math.tanh %90 : vector<8x32xf32>
    %92 = arith.mulf %85, %91 : vector<8x32xf32>
    %93 = vector.extract_strided_slice %73 {offsets = [0, 128], sizes = [8, 128], strides = [1, 1]} : vector<8x256xf32> to vector<8x128xf32>
    %94 = vector.extract_strided_slice %69 {offsets = [0, 128], sizes = [8, 128], strides = [1, 1]} : vector<8x256xf32> to vector<8x128xf32>
    %95 = arith.addf %93, %94 : vector<8x128xf32>
    %96 = vector.extract_strided_slice %95 {offsets = [0, 0], sizes = [8, 96], strides = [1, 1]} : vector<8x128xf32> to vector<8x96xf32>
    %97 = arith.negf %96 : vector<8x96xf32>
    %98 = math.exp %97 : vector<8x96xf32>
    %cst_27 = arith.constant 1.000000e+00 : f32
    %99 = vector.broadcast %cst_27 : f32 to vector<8x96xf32>
    %100 = arith.addf %99, %98 : vector<8x96xf32>
    %101 = arith.divf %99, %100 : vector<8x96xf32>
    %102 = vector.extract_strided_slice %101 {offsets = [0, 0], sizes = [8, 32], strides = [1, 1]} : vector<8x96xf32> to vector<8x32xf32>
    %103 = vector.extract_strided_slice %101 {offsets = [0, 32], sizes = [8, 32], strides = [1, 1]} : vector<8x96xf32> to vector<8x32xf32>
    %104 = vector.extract_strided_slice %101 {offsets = [0, 64], sizes = [8, 32], strides = [1, 1]} : vector<8x96xf32> to vector<8x32xf32>
    %105 = vector.extract_strided_slice %95 {offsets = [0, 96], sizes = [8, 32], strides = [1, 1]} : vector<8x128xf32> to vector<8x32xf32>
    %106 = math.tanh %105 : vector<8x32xf32>
    %107 = arith.mulf %103, %55 : vector<8x32xf32>
    %108 = arith.mulf %102, %106 : vector<8x32xf32>
    %109 = arith.addf %107, %108 : vector<8x32xf32>
    %110 = math.tanh %109 : vector<8x32xf32>
    %111 = arith.mulf %104, %110 : vector<8x32xf32>
    %112 = arith.index_cast %65 : i32 to index
    %c0_28 = arith.constant 0 : index
    %113 = vector.load %arg4[%112, %c0_28] : memref<64x64xf32, #tpu.memory_space<vmem>>, vector<8x32xf32>
    tpu.vector_store %arg4[%112, %c0_28], %92 {strides = array<i32>} : memref<64x64xf32, #tpu.memory_space<vmem>>, vector<8x32xf32>,
    %114 = arith.index_cast %67 : i32 to index
    %c32_29 = arith.constant 32 : index
    %115 = vector.load %arg4[%114, %c32_29] : memref<64x64xf32, #tpu.memory_space<vmem>>, vector<8x32xf32>
    tpu.vector_store %arg4[%114, %c32_29], %111 {strides = array<i32>} : memref<64x64xf32, #tpu.memory_space<vmem>>, vector<8x32xf32>,
    %116 = tpu.concatenate %92, %111 in 1 : vector<8x32xf32>, vector<8x32xf32> -> vector<8x64xf32>
    %c2_i32 = arith.constant 2 : i32
    %c7_i32_30 = arith.constant 7 : i32
    %117 = arith.subi %c7_i32_30, %c2_i32 : i32
    %c8_i32_31 = arith.constant 8 : i32
    %118 = arith.muli %c2_i32, %c8_i32_31 : i32
    %119 = tpu.assume_multiple %118, 8 : i32
    %c8_i32_32 = arith.constant 8 : i32
    %120 = arith.muli %117, %c8_i32_32 : i32
    %121 = tpu.assume_multiple %120, 8 : i32
    %c0_33 = arith.constant 0 : index
    %c0_34 = arith.constant 0 : index
    %122 = vector.load %arg2[%c0_33, %c0_34] : memref<64x256xf32, #tpu.memory_space<vmem>>, vector<64x256xf32>
    %cst_35 = arith.constant dense<0.000000e+00> : vector<8x256xf32>
    %123 = tpu.matmul %116, %122, %cst_35 {dimension_numbers = #tpu.dot_dimension_numbers<[1], [0], [0], [1], [0, 0, 1, 1], [], []>} : vector<8x64xf32>, vector<64x256xf32>, vector<8x256xf32> -> vector<8x256xf32>
    %124 = arith.index_cast %119 : i32 to index
    %c0_36 = arith.constant 0 : index
    %125 = vector.load %arg5[%124, %c0_36] : memref<64x256xf32, #tpu.memory_space<vmem>>, vector<8x256xf32>
    %126 = arith.index_cast %121 : i32 to index
    %c0_37 = arith.constant 0 : index
    %127 = vector.load %arg5[%126, %c0_37] : memref<64x256xf32, #tpu.memory_space<vmem>>, vector<8x256xf32>
    %128 = vector.extract_strided_slice %125 {offsets = [0, 0], sizes = [8, 128], strides = [1, 1]} : vector<8x256xf32> to vector<8x128xf32>
    %129 = vector.extract_strided_slice %123 {offsets = [0, 0], sizes = [8, 128], strides = [1, 1]} : vector<8x256xf32> to vector<8x128xf32>
    %130 = arith.addf %128, %129 : vector<8x128xf32>
    %131 = vector.extract_strided_slice %130 {offsets = [0, 0], sizes = [8, 96], strides = [1, 1]} : vector<8x128xf32> to vector<8x96xf32>
    %132 = arith.negf %131 : vector<8x96xf32>
    %133 = math.exp %132 : vector<8x96xf32>
    %cst_38 = arith.constant 1.000000e+00 : f32
    %134 = vector.broadcast %cst_38 : f32 to vector<8x96xf32>
    %135 = arith.addf %134, %133 : vector<8x96xf32>
    %136 = arith.divf %134, %135 : vector<8x96xf32>
    %137 = vector.extract_strided_slice %136 {offsets = [0, 0], sizes = [8, 32], strides = [1, 1]} : vector<8x96xf32> to vector<8x32xf32>
    %138 = vector.extract_strided_slice %136 {offsets = [0, 32], sizes = [8, 32], strides = [1, 1]} : vector<8x96xf32> to vector<8x32xf32>
    %139 = vector.extract_strided_slice %136 {offsets = [0, 64], sizes = [8, 32], strides = [1, 1]} : vector<8x96xf32> to vector<8x32xf32>
    %140 = vector.extract_strided_slice %130 {offsets = [0, 96], sizes = [8, 32], strides = [1, 1]} : vector<8x128xf32> to vector<8x32xf32>
    %141 = math.tanh %140 : vector<8x32xf32>
    %142 = arith.mulf %138, %90 : vector<8x32xf32>
    %143 = arith.mulf %137, %141 : vector<8x32xf32>
    %144 = arith.addf %142, %143 : vector<8x32xf32>
    %145 = math.tanh %144 : vector<8x32xf32>
    %146 = arith.mulf %139, %145 : vector<8x32xf32>
    %147 = vector.extract_strided_slice %127 {offsets = [0, 128], sizes = [8, 128], strides = [1, 1]} : vector<8x256xf32> to vector<8x128xf32>
    %148 = vector.extract_strided_slice %123 {offsets = [0, 128], sizes = [8, 128], strides = [1, 1]} : vector<8x256xf32> to vector<8x128xf32>
    %149 = arith.addf %147, %148 : vector<8x128xf32>
    %150 = vector.extract_strided_slice %149 {offsets = [0, 0], sizes = [8, 96], strides = [1, 1]} : vector<8x128xf32> to vector<8x96xf32>
    %151 = arith.negf %150 : vector<8x96xf32>
    %152 = math.exp %151 : vector<8x96xf32>
    %cst_39 = arith.constant 1.000000e+00 : f32
    %153 = vector.broadcast %cst_39 : f32 to vector<8x96xf32>
    %154 = arith.addf %153, %152 : vector<8x96xf32>
    %155 = arith.divf %153, %154 : vector<8x96xf32>
    %156 = vector.extract_strided_slice %155 {offsets = [0, 0], sizes = [8, 32], strides = [1, 1]} : vector<8x96xf32> to vector<8x32xf32>
    %157 = vector.extract_strided_slice %155 {offsets = [0, 32], sizes = [8, 32], strides = [1, 1]} : vector<8x96xf32> to vector<8x32xf32>
    %158 = vector.extract_strided_slice %155 {offsets = [0, 64], sizes = [8, 32], strides = [1, 1]} : vector<8x96xf32> to vector<8x32xf32>
    %159 = vector.extract_strided_slice %149 {offsets = [0, 96], sizes = [8, 32], strides = [1, 1]} : vector<8x128xf32> to vector<8x32xf32>
    %160 = math.tanh %159 : vector<8x32xf32>
    %161 = arith.mulf %157, %109 : vector<8x32xf32>
    %162 = arith.mulf %156, %160 : vector<8x32xf32>
    %163 = arith.addf %161, %162 : vector<8x32xf32>
    %164 = math.tanh %163 : vector<8x32xf32>
    %165 = arith.mulf %158, %164 : vector<8x32xf32>
    %166 = arith.index_cast %119 : i32 to index
    %c0_40 = arith.constant 0 : index
    %167 = vector.load %arg4[%166, %c0_40] : memref<64x64xf32, #tpu.memory_space<vmem>>, vector<8x32xf32>
    tpu.vector_store %arg4[%166, %c0_40], %146 {strides = array<i32>} : memref<64x64xf32, #tpu.memory_space<vmem>>, vector<8x32xf32>,
    %168 = arith.index_cast %121 : i32 to index
    %c32_41 = arith.constant 32 : index
    %169 = vector.load %arg4[%168, %c32_41] : memref<64x64xf32, #tpu.memory_space<vmem>>, vector<8x32xf32>
    tpu.vector_store %arg4[%168, %c32_41], %165 {strides = array<i32>} : memref<64x64xf32, #tpu.memory_space<vmem>>, vector<8x32xf32>,
    %170 = tpu.concatenate %146, %165 in 1 : vector<8x32xf32>, vector<8x32xf32> -> vector<8x64xf32>
    %c3_i32 = arith.constant 3 : i32
    %c7_i32_42 = arith.constant 7 : i32
    %171 = arith.subi %c7_i32_42, %c3_i32 : i32
    %c8_i32_43 = arith.constant 8 : i32
    %172 = arith.muli %c3_i32, %c8_i32_43 : i32
    %173 = tpu.assume_multiple %172, 8 : i32
    %c8_i32_44 = arith.constant 8 : i32
    %174 = arith.muli %171, %c8_i32_44 : i32
    %175 = tpu.assume_multiple %174, 8 : i32
    %c0_45 = arith.constant 0 : index
    %c0_46 = arith.constant 0 : index
    %176 = vector.load %arg2[%c0_45, %c0_46] : memref<64x256xf32, #tpu.memory_space<vmem>>, vector<64x256xf32>
    %cst_47 = arith.constant dense<0.000000e+00> : vector<8x256xf32>
    %177 = tpu.matmul %170, %176, %cst_47 {dimension_numbers = #tpu.dot_dimension_numbers<[1], [0], [0], [1], [0, 0, 1, 1], [], []>} : vector<8x64xf32>, vector<64x256xf32>, vector<8x256xf32> -> vector<8x256xf32>
    %178 = arith.index_cast %173 : i32 to index
    %c0_48 = arith.constant 0 : index
    %179 = vector.load %arg5[%178, %c0_48] : memref<64x256xf32, #tpu.memory_space<vmem>>, vector<8x256xf32>
    %180 = arith.index_cast %175 : i32 to index
    %c0_49 = arith.constant 0 : index
    %181 = vector.load %arg5[%180, %c0_49] : memref<64x256xf32, #tpu.memory_space<vmem>>, vector<8x256xf32>
    %182 = vector.extract_strided_slice %179 {offsets = [0, 0], sizes = [8, 128], strides = [1, 1]} : vector<8x256xf32> to vector<8x128xf32>
    %183 = vector.extract_strided_slice %177 {offsets = [0, 0], sizes = [8, 128], strides = [1, 1]} : vector<8x256xf32> to vector<8x128xf32>
    %184 = arith.addf %182, %183 : vector<8x128xf32>
    %185 = vector.extract_strided_slice %184 {offsets = [0, 0], sizes = [8, 96], strides = [1, 1]} : vector<8x128xf32> to vector<8x96xf32>
    %186 = arith.negf %185 : vector<8x96xf32>
    %187 = math.exp %186 : vector<8x96xf32>
    %cst_50 = arith.constant 1.000000e+00 : f32
    %188 = vector.broadcast %cst_50 : f32 to vector<8x96xf32>
    %189 = arith.addf %188, %187 : vector<8x96xf32>
    %190 = arith.divf %188, %189 : vector<8x96xf32>
    %191 = vector.extract_strided_slice %190 {offsets = [0, 0], sizes = [8, 32], strides = [1, 1]} : vector<8x96xf32> to vector<8x32xf32>
    %192 = vector.extract_strided_slice %190 {offsets = [0, 32], sizes = [8, 32], strides = [1, 1]} : vector<8x96xf32> to vector<8x32xf32>
    %193 = vector.extract_strided_slice %190 {offsets = [0, 64], sizes = [8, 32], strides = [1, 1]} : vector<8x96xf32> to vector<8x32xf32>
    %194 = vector.extract_strided_slice %184 {offsets = [0, 96], sizes = [8, 32], strides = [1, 1]} : vector<8x128xf32> to vector<8x32xf32>
    %195 = math.tanh %194 : vector<8x32xf32>
    %196 = arith.mulf %192, %144 : vector<8x32xf32>
    %197 = arith.mulf %191, %195 : vector<8x32xf32>
    %198 = arith.addf %196, %197 : vector<8x32xf32>
    %199 = math.tanh %198 : vector<8x32xf32>
    %200 = arith.mulf %193, %199 : vector<8x32xf32>
    %201 = vector.extract_strided_slice %181 {offsets = [0, 128], sizes = [8, 128], strides = [1, 1]} : vector<8x256xf32> to vector<8x128xf32>
    %202 = vector.extract_strided_slice %177 {offsets = [0, 128], sizes = [8, 128], strides = [1, 1]} : vector<8x256xf32> to vector<8x128xf32>
    %203 = arith.addf %201, %202 : vector<8x128xf32>
    %204 = vector.extract_strided_slice %203 {offsets = [0, 0], sizes = [8, 96], strides = [1, 1]} : vector<8x128xf32> to vector<8x96xf32>
    %205 = arith.negf %204 : vector<8x96xf32>
    %206 = math.exp %205 : vector<8x96xf32>
    %cst_51 = arith.constant 1.000000e+00 : f32
    %207 = vector.broadcast %cst_51 : f32 to vector<8x96xf32>
    %208 = arith.addf %207, %206 : vector<8x96xf32>
    %209 = arith.divf %207, %208 : vector<8x96xf32>
    %210 = vector.extract_strided_slice %209 {offsets = [0, 0], sizes = [8, 32], strides = [1, 1]} : vector<8x96xf32> to vector<8x32xf32>
    %211 = vector.extract_strided_slice %209 {offsets = [0, 32], sizes = [8, 32], strides = [1, 1]} : vector<8x96xf32> to vector<8x32xf32>
    %212 = vector.extract_strided_slice %209 {offsets = [0, 64], sizes = [8, 32], strides = [1, 1]} : vector<8x96xf32> to vector<8x32xf32>
    %213 = vector.extract_strided_slice %203 {offsets = [0, 96], sizes = [8, 32], strides = [1, 1]} : vector<8x128xf32> to vector<8x32xf32>
    %214 = math.tanh %213 : vector<8x32xf32>
    %215 = arith.mulf %211, %163 : vector<8x32xf32>
    %216 = arith.mulf %210, %214 : vector<8x32xf32>
    %217 = arith.addf %215, %216 : vector<8x32xf32>
    %218 = math.tanh %217 : vector<8x32xf32>
    %219 = arith.mulf %212, %218 : vector<8x32xf32>
    %220 = arith.index_cast %173 : i32 to index
    %c0_52 = arith.constant 0 : index
    %221 = vector.load %arg4[%220, %c0_52] : memref<64x64xf32, #tpu.memory_space<vmem>>, vector<8x32xf32>
    tpu.vector_store %arg4[%220, %c0_52], %200 {strides = array<i32>} : memref<64x64xf32, #tpu.memory_space<vmem>>, vector<8x32xf32>,
    %222 = arith.index_cast %175 : i32 to index
    %c32_53 = arith.constant 32 : index
    %223 = vector.load %arg4[%222, %c32_53] : memref<64x64xf32, #tpu.memory_space<vmem>>, vector<8x32xf32>
    tpu.vector_store %arg4[%222, %c32_53], %219 {strides = array<i32>} : memref<64x64xf32, #tpu.memory_space<vmem>>, vector<8x32xf32>,
    %224 = tpu.concatenate %200, %219 in 1 : vector<8x32xf32>, vector<8x32xf32> -> vector<8x64xf32>
    %c4_i32 = arith.constant 4 : i32
    %c7_i32_54 = arith.constant 7 : i32
    %225 = arith.subi %c7_i32_54, %c4_i32 : i32
    %c8_i32_55 = arith.constant 8 : i32
    %226 = arith.muli %c4_i32, %c8_i32_55 : i32
    %227 = tpu.assume_multiple %226, 8 : i32
    %c8_i32_56 = arith.constant 8 : i32
    %228 = arith.muli %225, %c8_i32_56 : i32
    %229 = tpu.assume_multiple %228, 8 : i32
    %c0_57 = arith.constant 0 : index
    %c0_58 = arith.constant 0 : index
    %230 = vector.load %arg2[%c0_57, %c0_58] : memref<64x256xf32, #tpu.memory_space<vmem>>, vector<64x256xf32>
    %cst_59 = arith.constant dense<0.000000e+00> : vector<8x256xf32>
    %231 = tpu.matmul %224, %230, %cst_59 {dimension_numbers = #tpu.dot_dimension_numbers<[1], [0], [0], [1], [0, 0, 1, 1], [], []>} : vector<8x64xf32>, vector<64x256xf32>, vector<8x256xf32> -> vector<8x256xf32>
    %232 = arith.index_cast %227 : i32 to index
    %c0_60 = arith.constant 0 : index
    %233 = vector.load %arg5[%232, %c0_60] : memref<64x256xf32, #tpu.memory_space<vmem>>, vector<8x256xf32>
    %234 = arith.index_cast %229 : i32 to index
    %c0_61 = arith.constant 0 : index
    %235 = vector.load %arg5[%234, %c0_61] : memref<64x256xf32, #tpu.memory_space<vmem>>, vector<8x256xf32>
    %236 = vector.extract_strided_slice %233 {offsets = [0, 0], sizes = [8, 128], strides = [1, 1]} : vector<8x256xf32> to vector<8x128xf32>
    %237 = vector.extract_strided_slice %231 {offsets = [0, 0], sizes = [8, 128], strides = [1, 1]} : vector<8x256xf32> to vector<8x128xf32>
    %238 = arith.addf %236, %237 : vector<8x128xf32>
    %239 = vector.extract_strided_slice %238 {offsets = [0, 0], sizes = [8, 96], strides = [1, 1]} : vector<8x128xf32> to vector<8x96xf32>
    %240 = arith.negf %239 : vector<8x96xf32>
    %241 = math.exp %240 : vector<8x96xf32>
    %cst_62 = arith.constant 1.000000e+00 : f32
    %242 = vector.broadcast %cst_62 : f32 to vector<8x96xf32>
    %243 = arith.addf %242, %241 : vector<8x96xf32>
    %244 = arith.divf %242, %243 : vector<8x96xf32>
    %245 = vector.extract_strided_slice %244 {offsets = [0, 0], sizes = [8, 32], strides = [1, 1]} : vector<8x96xf32> to vector<8x32xf32>
    %246 = vector.extract_strided_slice %244 {offsets = [0, 32], sizes = [8, 32], strides = [1, 1]} : vector<8x96xf32> to vector<8x32xf32>
    %247 = vector.extract_strided_slice %244 {offsets = [0, 64], sizes = [8, 32], strides = [1, 1]} : vector<8x96xf32> to vector<8x32xf32>
    %248 = vector.extract_strided_slice %238 {offsets = [0, 96], sizes = [8, 32], strides = [1, 1]} : vector<8x128xf32> to vector<8x32xf32>
    %249 = math.tanh %248 : vector<8x32xf32>
    %250 = arith.mulf %246, %198 : vector<8x32xf32>
    %251 = arith.mulf %245, %249 : vector<8x32xf32>
    %252 = arith.addf %250, %251 : vector<8x32xf32>
    %253 = math.tanh %252 : vector<8x32xf32>
    %254 = arith.mulf %247, %253 : vector<8x32xf32>
    %255 = vector.extract_strided_slice %235 {offsets = [0, 128], sizes = [8, 128], strides = [1, 1]} : vector<8x256xf32> to vector<8x128xf32>
    %256 = vector.extract_strided_slice %231 {offsets = [0, 128], sizes = [8, 128], strides = [1, 1]} : vector<8x256xf32> to vector<8x128xf32>
    %257 = arith.addf %255, %256 : vector<8x128xf32>
    %258 = vector.extract_strided_slice %257 {offsets = [0, 0], sizes = [8, 96], strides = [1, 1]} : vector<8x128xf32> to vector<8x96xf32>
    %259 = arith.negf %258 : vector<8x96xf32>
    %260 = math.exp %259 : vector<8x96xf32>
    %cst_63 = arith.constant 1.000000e+00 : f32
    %261 = vector.broadcast %cst_63 : f32 to vector<8x96xf32>
    %262 = arith.addf %261, %260 : vector<8x96xf32>
    %263 = arith.divf %261, %262 : vector<8x96xf32>
    %264 = vector.extract_strided_slice %263 {offsets = [0, 0], sizes = [8, 32], strides = [1, 1]} : vector<8x96xf32> to vector<8x32xf32>
    %265 = vector.extract_strided_slice %263 {offsets = [0, 32], sizes = [8, 32], strides = [1, 1]} : vector<8x96xf32> to vector<8x32xf32>
    %266 = vector.extract_strided_slice %263 {offsets = [0, 64], sizes = [8, 32], strides = [1, 1]} : vector<8x96xf32> to vector<8x32xf32>
    %267 = vector.extract_strided_slice %257 {offsets = [0, 96], sizes = [8, 32], strides = [1, 1]} : vector<8x128xf32> to vector<8x32xf32>
    %268 = math.tanh %267 : vector<8x32xf32>
    %269 = arith.mulf %265, %217 : vector<8x32xf32>
    %270 = arith.mulf %264, %268 : vector<8x32xf32>
    %271 = arith.addf %269, %270 : vector<8x32xf32>
    %272 = math.tanh %271 : vector<8x32xf32>
    %273 = arith.mulf %266, %272 : vector<8x32xf32>
    %274 = arith.index_cast %227 : i32 to index
    %c0_64 = arith.constant 0 : index
    %275 = vector.load %arg4[%274, %c0_64] : memref<64x64xf32, #tpu.memory_space<vmem>>, vector<8x32xf32>
    tpu.vector_store %arg4[%274, %c0_64], %254 {strides = array<i32>} : memref<64x64xf32, #tpu.memory_space<vmem>>, vector<8x32xf32>,
    %276 = arith.index_cast %229 : i32 to index
    %c32_65 = arith.constant 32 : index
    %277 = vector.load %arg4[%276, %c32_65] : memref<64x64xf32, #tpu.memory_space<vmem>>, vector<8x32xf32>
    tpu.vector_store %arg4[%276, %c32_65], %273 {strides = array<i32>} : memref<64x64xf32, #tpu.memory_space<vmem>>, vector<8x32xf32>,
    %278 = tpu.concatenate %254, %273 in 1 : vector<8x32xf32>, vector<8x32xf32> -> vector<8x64xf32>
    %c5_i32 = arith.constant 5 : i32
    %c7_i32_66 = arith.constant 7 : i32
    %279 = arith.subi %c7_i32_66, %c5_i32 : i32
    %c8_i32_67 = arith.constant 8 : i32
    %280 = arith.muli %c5_i32, %c8_i32_67 : i32
    %281 = tpu.assume_multiple %280, 8 : i32
    %c8_i32_68 = arith.constant 8 : i32
    %282 = arith.muli %279, %c8_i32_68 : i32
    %283 = tpu.assume_multiple %282, 8 : i32
    %c0_69 = arith.constant 0 : index
    %c0_70 = arith.constant 0 : index
    %284 = vector.load %arg2[%c0_69, %c0_70] : memref<64x256xf32, #tpu.memory_space<vmem>>, vector<64x256xf32>
    %cst_71 = arith.constant dense<0.000000e+00> : vector<8x256xf32>
    %285 = tpu.matmul %278, %284, %cst_71 {dimension_numbers = #tpu.dot_dimension_numbers<[1], [0], [0], [1], [0, 0, 1, 1], [], []>} : vector<8x64xf32>, vector<64x256xf32>, vector<8x256xf32> -> vector<8x256xf32>
    %286 = arith.index_cast %281 : i32 to index
    %c0_72 = arith.constant 0 : index
    %287 = vector.load %arg5[%286, %c0_72] : memref<64x256xf32, #tpu.memory_space<vmem>>, vector<8x256xf32>
    %288 = arith.index_cast %283 : i32 to index
    %c0_73 = arith.constant 0 : index
    %289 = vector.load %arg5[%288, %c0_73] : memref<64x256xf32, #tpu.memory_space<vmem>>, vector<8x256xf32>
    %290 = vector.extract_strided_slice %287 {offsets = [0, 0], sizes = [8, 128], strides = [1, 1]} : vector<8x256xf32> to vector<8x128xf32>
    %291 = vector.extract_strided_slice %285 {offsets = [0, 0], sizes = [8, 128], strides = [1, 1]} : vector<8x256xf32> to vector<8x128xf32>
    %292 = arith.addf %290, %291 : vector<8x128xf32>
    %293 = vector.extract_strided_slice %292 {offsets = [0, 0], sizes = [8, 96], strides = [1, 1]} : vector<8x128xf32> to vector<8x96xf32>
    %294 = arith.negf %293 : vector<8x96xf32>
    %295 = math.exp %294 : vector<8x96xf32>
    %cst_74 = arith.constant 1.000000e+00 : f32
    %296 = vector.broadcast %cst_74 : f32 to vector<8x96xf32>
    %297 = arith.addf %296, %295 : vector<8x96xf32>
    %298 = arith.divf %296, %297 : vector<8x96xf32>
    %299 = vector.extract_strided_slice %298 {offsets = [0, 0], sizes = [8, 32], strides = [1, 1]} : vector<8x96xf32> to vector<8x32xf32>
    %300 = vector.extract_strided_slice %298 {offsets = [0, 32], sizes = [8, 32], strides = [1, 1]} : vector<8x96xf32> to vector<8x32xf32>
    %301 = vector.extract_strided_slice %298 {offsets = [0, 64], sizes = [8, 32], strides = [1, 1]} : vector<8x96xf32> to vector<8x32xf32>
    %302 = vector.extract_strided_slice %292 {offsets = [0, 96], sizes = [8, 32], strides = [1, 1]} : vector<8x128xf32> to vector<8x32xf32>
    %303 = math.tanh %302 : vector<8x32xf32>
    %304 = arith.mulf %300, %252 : vector<8x32xf32>
    %305 = arith.mulf %299, %303 : vector<8x32xf32>
    %306 = arith.addf %304, %305 : vector<8x32xf32>
    %307 = math.tanh %306 : vector<8x32xf32>
    %308 = arith.mulf %301, %307 : vector<8x32xf32>
    %309 = vector.extract_strided_slice %289 {offsets = [0, 128], sizes = [8, 128], strides = [1, 1]} : vector<8x256xf32> to vector<8x128xf32>
    %310 = vector.extract_strided_slice %285 {offsets = [0, 128], sizes = [8, 128], strides = [1, 1]} : vector<8x256xf32> to vector<8x128xf32>
    %311 = arith.addf %309, %310 : vector<8x128xf32>
    %312 = vector.extract_strided_slice %311 {offsets = [0, 0], sizes = [8, 96], strides = [1, 1]} : vector<8x128xf32> to vector<8x96xf32>
    %313 = arith.negf %312 : vector<8x96xf32>
    %314 = math.exp %313 : vector<8x96xf32>
    %cst_75 = arith.constant 1.000000e+00 : f32
    %315 = vector.broadcast %cst_75 : f32 to vector<8x96xf32>
    %316 = arith.addf %315, %314 : vector<8x96xf32>
    %317 = arith.divf %315, %316 : vector<8x96xf32>
    %318 = vector.extract_strided_slice %317 {offsets = [0, 0], sizes = [8, 32], strides = [1, 1]} : vector<8x96xf32> to vector<8x32xf32>
    %319 = vector.extract_strided_slice %317 {offsets = [0, 32], sizes = [8, 32], strides = [1, 1]} : vector<8x96xf32> to vector<8x32xf32>
    %320 = vector.extract_strided_slice %317 {offsets = [0, 64], sizes = [8, 32], strides = [1, 1]} : vector<8x96xf32> to vector<8x32xf32>
    %321 = vector.extract_strided_slice %311 {offsets = [0, 96], sizes = [8, 32], strides = [1, 1]} : vector<8x128xf32> to vector<8x32xf32>
    %322 = math.tanh %321 : vector<8x32xf32>
    %323 = arith.mulf %319, %271 : vector<8x32xf32>
    %324 = arith.mulf %318, %322 : vector<8x32xf32>
    %325 = arith.addf %323, %324 : vector<8x32xf32>
    %326 = math.tanh %325 : vector<8x32xf32>
    %327 = arith.mulf %320, %326 : vector<8x32xf32>
    %328 = arith.index_cast %281 : i32 to index
    %c0_76 = arith.constant 0 : index
    %329 = vector.load %arg4[%328, %c0_76] : memref<64x64xf32, #tpu.memory_space<vmem>>, vector<8x32xf32>
    tpu.vector_store %arg4[%328, %c0_76], %308 {strides = array<i32>} : memref<64x64xf32, #tpu.memory_space<vmem>>, vector<8x32xf32>,
    %330 = arith.index_cast %283 : i32 to index
    %c32_77 = arith.constant 32 : index
    %331 = vector.load %arg4[%330, %c32_77] : memref<64x64xf32, #tpu.memory_space<vmem>>, vector<8x32xf32>
    tpu.vector_store %arg4[%330, %c32_77], %327 {strides = array<i32>} : memref<64x64xf32, #tpu.memory_space<vmem>>, vector<8x32xf32>,
    %332 = tpu.concatenate %308, %327 in 1 : vector<8x32xf32>, vector<8x32xf32> -> vector<8x64xf32>
    %c6_i32 = arith.constant 6 : i32
    %c7_i32_78 = arith.constant 7 : i32
    %333 = arith.subi %c7_i32_78, %c6_i32 : i32
    %c8_i32_79 = arith.constant 8 : i32
    %334 = arith.muli %c6_i32, %c8_i32_79 : i32
    %335 = tpu.assume_multiple %334, 8 : i32
    %c8_i32_80 = arith.constant 8 : i32
    %336 = arith.muli %333, %c8_i32_80 : i32
    %337 = tpu.assume_multiple %336, 8 : i32
    %c0_81 = arith.constant 0 : index
    %c0_82 = arith.constant 0 : index
    %338 = vector.load %arg2[%c0_81, %c0_82] : memref<64x256xf32, #tpu.memory_space<vmem>>, vector<64x256xf32>
    %cst_83 = arith.constant dense<0.000000e+00> : vector<8x256xf32>
    %339 = tpu.matmul %332, %338, %cst_83 {dimension_numbers = #tpu.dot_dimension_numbers<[1], [0], [0], [1], [0, 0, 1, 1], [], []>} : vector<8x64xf32>, vector<64x256xf32>, vector<8x256xf32> -> vector<8x256xf32>
    %340 = arith.index_cast %335 : i32 to index
    %c0_84 = arith.constant 0 : index
    %341 = vector.load %arg5[%340, %c0_84] : memref<64x256xf32, #tpu.memory_space<vmem>>, vector<8x256xf32>
    %342 = arith.index_cast %337 : i32 to index
    %c0_85 = arith.constant 0 : index
    %343 = vector.load %arg5[%342, %c0_85] : memref<64x256xf32, #tpu.memory_space<vmem>>, vector<8x256xf32>
    %344 = vector.extract_strided_slice %341 {offsets = [0, 0], sizes = [8, 128], strides = [1, 1]} : vector<8x256xf32> to vector<8x128xf32>
    %345 = vector.extract_strided_slice %339 {offsets = [0, 0], sizes = [8, 128], strides = [1, 1]} : vector<8x256xf32> to vector<8x128xf32>
    %346 = arith.addf %344, %345 : vector<8x128xf32>
    %347 = vector.extract_strided_slice %346 {offsets = [0, 0], sizes = [8, 96], strides = [1, 1]} : vector<8x128xf32> to vector<8x96xf32>
    %348 = arith.negf %347 : vector<8x96xf32>
    %349 = math.exp %348 : vector<8x96xf32>
    %cst_86 = arith.constant 1.000000e+00 : f32
    %350 = vector.broadcast %cst_86 : f32 to vector<8x96xf32>
    %351 = arith.addf %350, %349 : vector<8x96xf32>
    %352 = arith.divf %350, %351 : vector<8x96xf32>
    %353 = vector.extract_strided_slice %352 {offsets = [0, 0], sizes = [8, 32], strides = [1, 1]} : vector<8x96xf32> to vector<8x32xf32>
    %354 = vector.extract_strided_slice %352 {offsets = [0, 32], sizes = [8, 32], strides = [1, 1]} : vector<8x96xf32> to vector<8x32xf32>
    %355 = vector.extract_strided_slice %352 {offsets = [0, 64], sizes = [8, 32], strides = [1, 1]} : vector<8x96xf32> to vector<8x32xf32>
    %356 = vector.extract_strided_slice %346 {offsets = [0, 96], sizes = [8, 32], strides = [1, 1]} : vector<8x128xf32> to vector<8x32xf32>
    %357 = math.tanh %356 : vector<8x32xf32>
    %358 = arith.mulf %354, %306 : vector<8x32xf32>
    %359 = arith.mulf %353, %357 : vector<8x32xf32>
    %360 = arith.addf %358, %359 : vector<8x32xf32>
    %361 = math.tanh %360 : vector<8x32xf32>
    %362 = arith.mulf %355, %361 : vector<8x32xf32>
    %363 = vector.extract_strided_slice %343 {offsets = [0, 128], sizes = [8, 128], strides = [1, 1]} : vector<8x256xf32> to vector<8x128xf32>
    %364 = vector.extract_strided_slice %339 {offsets = [0, 128], sizes = [8, 128], strides = [1, 1]} : vector<8x256xf32> to vector<8x128xf32>
    %365 = arith.addf %363, %364 : vector<8x128xf32>
    %366 = vector.extract_strided_slice %365 {offsets = [0, 0], sizes = [8, 96], strides = [1, 1]} : vector<8x128xf32> to vector<8x96xf32>
    %367 = arith.negf %366 : vector<8x96xf32>
    %368 = math.exp %367 : vector<8x96xf32>
    %cst_87 = arith.constant 1.000000e+00 : f32
    %369 = vector.broadcast %cst_87 : f32 to vector<8x96xf32>
    %370 = arith.addf %369, %368 : vector<8x96xf32>
    %371 = arith.divf %369, %370 : vector<8x96xf32>
    %372 = vector.extract_strided_slice %371 {offsets = [0, 0], sizes = [8, 32], strides = [1, 1]} : vector<8x96xf32> to vector<8x32xf32>
    %373 = vector.extract_strided_slice %371 {offsets = [0, 32], sizes = [8, 32], strides = [1, 1]} : vector<8x96xf32> to vector<8x32xf32>
    %374 = vector.extract_strided_slice %371 {offsets = [0, 64], sizes = [8, 32], strides = [1, 1]} : vector<8x96xf32> to vector<8x32xf32>
    %375 = vector.extract_strided_slice %365 {offsets = [0, 96], sizes = [8, 32], strides = [1, 1]} : vector<8x128xf32> to vector<8x32xf32>
    %376 = math.tanh %375 : vector<8x32xf32>
    %377 = arith.mulf %373, %325 : vector<8x32xf32>
    %378 = arith.mulf %372, %376 : vector<8x32xf32>
    %379 = arith.addf %377, %378 : vector<8x32xf32>
    %380 = math.tanh %379 : vector<8x32xf32>
    %381 = arith.mulf %374, %380 : vector<8x32xf32>
    %382 = arith.index_cast %335 : i32 to index
    %c0_88 = arith.constant 0 : index
    %383 = vector.load %arg4[%382, %c0_88] : memref<64x64xf32, #tpu.memory_space<vmem>>, vector<8x32xf32>
    tpu.vector_store %arg4[%382, %c0_88], %362 {strides = array<i32>} : memref<64x64xf32, #tpu.memory_space<vmem>>, vector<8x32xf32>,
    %384 = arith.index_cast %337 : i32 to index
    %c32_89 = arith.constant 32 : index
    %385 = vector.load %arg4[%384, %c32_89] : memref<64x64xf32, #tpu.memory_space<vmem>>, vector<8x32xf32>
    tpu.vector_store %arg4[%384, %c32_89], %381 {strides = array<i32>} : memref<64x64xf32, #tpu.memory_space<vmem>>, vector<8x32xf32>,
    %386 = tpu.concatenate %362, %381 in 1 : vector<8x32xf32>, vector<8x32xf32> -> vector<8x64xf32>
    %c7_i32_90 = arith.constant 7 : i32
    %c7_i32_91 = arith.constant 7 : i32
    %387 = arith.subi %c7_i32_91, %c7_i32_90 : i32
    %c8_i32_92 = arith.constant 8 : i32
    %388 = arith.muli %c7_i32_90, %c8_i32_92 : i32
    %389 = tpu.assume_multiple %388, 8 : i32
    %c8_i32_93 = arith.constant 8 : i32
    %390 = arith.muli %387, %c8_i32_93 : i32
    %391 = tpu.assume_multiple %390, 8 : i32
    %c0_94 = arith.constant 0 : index
    %c0_95 = arith.constant 0 : index
    %392 = vector.load %arg2[%c0_94, %c0_95] : memref<64x256xf32, #tpu.memory_space<vmem>>, vector<64x256xf32>
    %cst_96 = arith.constant dense<0.000000e+00> : vector<8x256xf32>
    %393 = tpu.matmul %386, %392, %cst_96 {dimension_numbers = #tpu.dot_dimension_numbers<[1], [0], [0], [1], [0, 0, 1, 1], [], []>} : vector<8x64xf32>, vector<64x256xf32>, vector<8x256xf32> -> vector<8x256xf32>
    %394 = arith.index_cast %389 : i32 to index
    %c0_97 = arith.constant 0 : index
    %395 = vector.load %arg5[%394, %c0_97] : memref<64x256xf32, #tpu.memory_space<vmem>>, vector<8x256xf32>
    %396 = arith.index_cast %391 : i32 to index
    %c0_98 = arith.constant 0 : index
    %397 = vector.load %arg5[%396, %c0_98] : memref<64x256xf32, #tpu.memory_space<vmem>>, vector<8x256xf32>
    %398 = vector.extract_strided_slice %395 {offsets = [0, 0], sizes = [8, 128], strides = [1, 1]} : vector<8x256xf32> to vector<8x128xf32>
    %399 = vector.extract_strided_slice %393 {offsets = [0, 0], sizes = [8, 128], strides = [1, 1]} : vector<8x256xf32> to vector<8x128xf32>
    %400 = arith.addf %398, %399 : vector<8x128xf32>
    %401 = vector.extract_strided_slice %400 {offsets = [0, 0], sizes = [8, 96], strides = [1, 1]} : vector<8x128xf32> to vector<8x96xf32>
    %402 = arith.negf %401 : vector<8x96xf32>
    %403 = math.exp %402 : vector<8x96xf32>
    %cst_99 = arith.constant 1.000000e+00 : f32
    %404 = vector.broadcast %cst_99 : f32 to vector<8x96xf32>
    %405 = arith.addf %404, %403 : vector<8x96xf32>
    %406 = arith.divf %404, %405 : vector<8x96xf32>
    %407 = vector.extract_strided_slice %406 {offsets = [0, 0], sizes = [8, 32], strides = [1, 1]} : vector<8x96xf32> to vector<8x32xf32>
    %408 = vector.extract_strided_slice %406 {offsets = [0, 32], sizes = [8, 32], strides = [1, 1]} : vector<8x96xf32> to vector<8x32xf32>
    %409 = vector.extract_strided_slice %406 {offsets = [0, 64], sizes = [8, 32], strides = [1, 1]} : vector<8x96xf32> to vector<8x32xf32>
    %410 = vector.extract_strided_slice %400 {offsets = [0, 96], sizes = [8, 32], strides = [1, 1]} : vector<8x128xf32> to vector<8x32xf32>
    %411 = math.tanh %410 : vector<8x32xf32>
    %412 = arith.mulf %408, %360 : vector<8x32xf32>
    %413 = arith.mulf %407, %411 : vector<8x32xf32>
    %414 = arith.addf %412, %413 : vector<8x32xf32>
    %415 = math.tanh %414 : vector<8x32xf32>
    %416 = arith.mulf %409, %415 : vector<8x32xf32>
    %417 = vector.extract_strided_slice %397 {offsets = [0, 128], sizes = [8, 128], strides = [1, 1]} : vector<8x256xf32> to vector<8x128xf32>
    %418 = vector.extract_strided_slice %393 {offsets = [0, 128], sizes = [8, 128], strides = [1, 1]} : vector<8x256xf32> to vector<8x128xf32>
    %419 = arith.addf %417, %418 : vector<8x128xf32>
    %420 = vector.extract_strided_slice %419 {offsets = [0, 0], sizes = [8, 96], strides = [1, 1]} : vector<8x128xf32> to vector<8x96xf32>
    %421 = arith.negf %420 : vector<8x96xf32>
    %422 = math.exp %421 : vector<8x96xf32>
    %cst_100 = arith.constant 1.000000e+00 : f32
    %423 = vector.broadcast %cst_100 : f32 to vector<8x96xf32>
    %424 = arith.addf %423, %422 : vector<8x96xf32>
    %425 = arith.divf %423, %424 : vector<8x96xf32>
    %426 = vector.extract_strided_slice %425 {offsets = [0, 0], sizes = [8, 32], strides = [1, 1]} : vector<8x96xf32> to vector<8x32xf32>
    %427 = vector.extract_strided_slice %425 {offsets = [0, 32], sizes = [8, 32], strides = [1, 1]} : vector<8x96xf32> to vector<8x32xf32>
    %428 = vector.extract_strided_slice %425 {offsets = [0, 64], sizes = [8, 32], strides = [1, 1]} : vector<8x96xf32> to vector<8x32xf32>
    %429 = vector.extract_strided_slice %419 {offsets = [0, 96], sizes = [8, 32], strides = [1, 1]} : vector<8x128xf32> to vector<8x32xf32>
    %430 = math.tanh %429 : vector<8x32xf32>
    %431 = arith.mulf %427, %379 : vector<8x32xf32>
    %432 = arith.mulf %426, %430 : vector<8x32xf32>
    %433 = arith.addf %431, %432 : vector<8x32xf32>
    %434 = math.tanh %433 : vector<8x32xf32>
    %435 = arith.mulf %428, %434 : vector<8x32xf32>
    %436 = arith.index_cast %389 : i32 to index
    %c0_101 = arith.constant 0 : index
    %437 = vector.load %arg4[%436, %c0_101] : memref<64x64xf32, #tpu.memory_space<vmem>>, vector<8x32xf32>
    tpu.vector_store %arg4[%436, %c0_101], %416 {strides = array<i32>} : memref<64x64xf32, #tpu.memory_space<vmem>>, vector<8x32xf32>,
    %438 = arith.index_cast %391 : i32 to index
    %c32_102 = arith.constant 32 : index
    %439 = vector.load %arg4[%438, %c32_102] : memref<64x64xf32, #tpu.memory_space<vmem>>, vector<8x32xf32>
    tpu.vector_store %arg4[%438, %c32_102], %435 {strides = array<i32>} : memref<64x64xf32, #tpu.memory_space<vmem>>, vector<8x32xf32>,
    %440 = tpu.concatenate %416, %435 in 1 : vector<8x32xf32>, vector<8x32xf32> -> vector<8x64xf32>
    %c8_i32_103 = arith.constant 8 : i32
    return
  }
}

module attributes {stable_mosaic.version = 11 : i64} {
  func.func @bilstm_layer_kernel(%arg0: memref<64x64xf32, #tpu.memory_space<vmem>>, %arg1: memref<64x256xf32, #tpu.memory_space<vmem>>, %arg2: memref<64x256xf32, #tpu.memory_space<vmem>>, %arg3: memref<1x256xf32, #tpu.memory_space<vmem>>, %arg4: memref<64x64xf32, #tpu.memory_space<vmem>>, %arg5: memref<64x256xf32, #tpu.memory_space<vmem>>) attributes {dimension_semantics = [], scalar_prefetch = 0 : i64, scratch_operands = 1 : i64, tpu.core_type = #tpu.core_type<tc>} {
    %c0 = arith.constant 0 : index
    %c0_0 = arith.constant 0 : index
    %0 = vector.load %arg0[%c0, %c0_0] : memref<64x64xf32, #tpu.memory_space<vmem>>, vector<64x64xf32>
    %c0_1 = arith.constant 0 : index
    %c0_2 = arith.constant 0 : index
    %1 = vector.load %arg1[%c0_1, %c0_2] : memref<64x256xf32, #tpu.memory_space<vmem>>, vector<64x256xf32>
    %cst = arith.constant dense<0.000000e+00> : vector<64x256xf32>
    %2 = tpu.matmul %0, %1, %cst {dimension_numbers = #tpu.dot_dimension_numbers<[1], [0], [0], [1], [0, 0, 1, 1], [], []>} : vector<64x64xf32>, vector<64x256xf32>, vector<64x256xf32> -> vector<64x256xf32>
    %c0_3 = arith.constant 0 : index
    %c0_4 = arith.constant 0 : index
    %3 = vector.load %arg3[%c0_3, %c0_4] : memref<1x256xf32, #tpu.memory_space<vmem>>, vector<1x256xf32>
    %4 = vector.broadcast %3 : vector<1x256xf32> to vector<64x256xf32>
    %5 = arith.addf %2, %4 : vector<64x256xf32>
    %c0_5 = arith.constant 0 : index
    %c0_6 = arith.constant 0 : index
    %6 = vector.load %arg5[%c0_5, %c0_6] : memref<64x256xf32, #tpu.memory_space<vmem>>, vector<64x256xf32>
    tpu.vector_store %arg5[%c0_5, %c0_6], %5 {strides = array<i32>} : memref<64x256xf32, #tpu.memory_space<vmem>>, vector<64x256xf32>,
    %cst_7 = arith.constant 0.000000e+00 : f32
    %7 = vector.broadcast %cst_7 : f32 to vector<8x64xf32>
    %cst_8 = arith.constant 0.000000e+00 : f32
    %8 = vector.broadcast %cst_8 : f32 to vector<8x32xf32>
    %c0_i32 = arith.constant 0 : i32
    %c7_i32 = arith.constant 7 : i32
    %9 = arith.subi %c7_i32, %c0_i32 : i32
    %c8_i32 = arith.constant 8 : i32
    %10 = arith.muli %c0_i32, %c8_i32 : i32
    %11 = tpu.assume_multiple %10, 8 : i32
    %c8_i32_9 = arith.constant 8 : i32
    %12 = arith.muli %9, %c8_i32_9 : i32
    %13 = tpu.assume_multiple %12, 8 : i32
    %c0_10 = arith.constant 0 : index
    %c0_11 = arith.constant 0 : index
    %14 = vector.load %arg2[%c0_10, %c0_11] : memref<64x256xf32, #tpu.memory_space<vmem>>, vector<64x256xf32>
    %cst_12 = arith.constant dense<0.000000e+00> : vector<8x256xf32>
    %15 = tpu.matmul %7, %14, %cst_12 {dimension_numbers = #tpu.dot_dimension_numbers<[1], [0], [0], [1], [0, 0, 1, 1], [], []>} : vector<8x64xf32>, vector<64x256xf32>, vector<8x256xf32> -> vector<8x256xf32>
    %16 = arith.index_cast %11 : i32 to index
    %c0_13 = arith.constant 0 : index
    %17 = vector.load %arg5[%16, %c0_13] : memref<64x256xf32, #tpu.memory_space<vmem>>, vector<8x256xf32>
    %18 = arith.index_cast %13 : i32 to index
    %c0_14 = arith.constant 0 : index
    %19 = vector.load %arg5[%18, %c0_14] : memref<64x256xf32, #tpu.memory_space<vmem>>, vector<8x256xf32>
    %20 = vector.extract_strided_slice %17 {offsets = [0, 0], sizes = [8, 128], strides = [1, 1]} : vector<8x256xf32> to vector<8x128xf32>
    %21 = vector.extract_strided_slice %15 {offsets = [0, 0], sizes = [8, 128], strides = [1, 1]} : vector<8x256xf32> to vector<8x128xf32>
    %22 = arith.addf %20, %21 : vector<8x128xf32>
    %23 = vector.extract_strided_slice %22 {offsets = [0, 0], sizes = [8, 96], strides = [1, 1]} : vector<8x128xf32> to vector<8x96xf32>
    %24 = arith.negf %23 : vector<8x96xf32>
    %25 = math.exp %24 : vector<8x96xf32>
    %cst_15 = arith.constant 1.000000e+00 : f32
    %26 = vector.broadcast %cst_15 : f32 to vector<8x96xf32>
    %27 = arith.addf %26, %25 : vector<8x96xf32>
    %28 = arith.divf %26, %27 : vector<8x96xf32>
    %29 = vector.extract_strided_slice %28 {offsets = [0, 0], sizes = [8, 32], strides = [1, 1]} : vector<8x96xf32> to vector<8x32xf32>
    %30 = vector.extract_strided_slice %28 {offsets = [0, 32], sizes = [8, 32], strides = [1, 1]} : vector<8x96xf32> to vector<8x32xf32>
    %31 = vector.extract_strided_slice %28 {offsets = [0, 64], sizes = [8, 32], strides = [1, 1]} : vector<8x96xf32> to vector<8x32xf32>
    %32 = vector.extract_strided_slice %22 {offsets = [0, 96], sizes = [8, 32], strides = [1, 1]} : vector<8x128xf32> to vector<8x32xf32>
    %33 = math.tanh %32 : vector<8x32xf32>
    %34 = arith.mulf %30, %8 : vector<8x32xf32>
    %35 = arith.mulf %29, %33 : vector<8x32xf32>
    %36 = arith.addf %34, %35 : vector<8x32xf32>
    %37 = math.tanh %36 : vector<8x32xf32>
    %38 = arith.mulf %31, %37 : vector<8x32xf32>
    %39 = vector.extract_strided_slice %19 {offsets = [0, 128], sizes = [8, 128], strides = [1, 1]} : vector<8x256xf32> to vector<8x128xf32>
    %40 = vector.extract_strided_slice %15 {offsets = [0, 128], sizes = [8, 128], strides = [1, 1]} : vector<8x256xf32> to vector<8x128xf32>
    %41 = arith.addf %39, %40 : vector<8x128xf32>
    %42 = vector.extract_strided_slice %41 {offsets = [0, 0], sizes = [8, 96], strides = [1, 1]} : vector<8x128xf32> to vector<8x96xf32>
    %43 = arith.negf %42 : vector<8x96xf32>
    %44 = math.exp %43 : vector<8x96xf32>
    %cst_16 = arith.constant 1.000000e+00 : f32
    %45 = vector.broadcast %cst_16 : f32 to vector<8x96xf32>
    %46 = arith.addf %45, %44 : vector<8x96xf32>
    %47 = arith.divf %45, %46 : vector<8x96xf32>
    %48 = vector.extract_strided_slice %47 {offsets = [0, 0], sizes = [8, 32], strides = [1, 1]} : vector<8x96xf32> to vector<8x32xf32>
    %49 = vector.extract_strided_slice %47 {offsets = [0, 32], sizes = [8, 32], strides = [1, 1]} : vector<8x96xf32> to vector<8x32xf32>
    %50 = vector.extract_strided_slice %47 {offsets = [0, 64], sizes = [8, 32], strides = [1, 1]} : vector<8x96xf32> to vector<8x32xf32>
    %51 = vector.extract_strided_slice %41 {offsets = [0, 96], sizes = [8, 32], strides = [1, 1]} : vector<8x128xf32> to vector<8x32xf32>
    %52 = math.tanh %51 : vector<8x32xf32>
    %53 = arith.mulf %49, %8 : vector<8x32xf32>
    %54 = arith.mulf %48, %52 : vector<8x32xf32>
    %55 = arith.addf %53, %54 : vector<8x32xf32>
    %56 = math.tanh %55 : vector<8x32xf32>
    %57 = arith.mulf %50, %56 : vector<8x32xf32>
    %58 = arith.index_cast %11 : i32 to index
    %c0_17 = arith.constant 0 : index
    %59 = vector.load %arg4[%58, %c0_17] : memref<64x64xf32, #tpu.memory_space<vmem>>, vector<8x32xf32>
    tpu.vector_store %arg4[%58, %c0_17], %38 {strides = array<i32>} : memref<64x64xf32, #tpu.memory_space<vmem>>, vector<8x32xf32>,
    %60 = arith.index_cast %13 : i32 to index
    %c32 = arith.constant 32 : index
    %61 = vector.load %arg4[%60, %c32] : memref<64x64xf32, #tpu.memory_space<vmem>>, vector<8x32xf32>
    tpu.vector_store %arg4[%60, %c32], %57 {strides = array<i32>} : memref<64x64xf32, #tpu.memory_space<vmem>>, vector<8x32xf32>,
    %62 = tpu.concatenate %38, %57 in 1 : vector<8x32xf32>, vector<8x32xf32> -> vector<8x64xf32>
    %c1_i32 = arith.constant 1 : i32
    %c7_i32_18 = arith.constant 7 : i32
    %63 = arith.subi %c7_i32_18, %c1_i32 : i32
    %c8_i32_19 = arith.constant 8 : i32
    %64 = arith.muli %c1_i32, %c8_i32_19 : i32
    %65 = tpu.assume_multiple %64, 8 : i32
    %c8_i32_20 = arith.constant 8 : i32
    %66 = arith.muli %63, %c8_i32_20 : i32
    %67 = tpu.assume_multiple %66, 8 : i32
    %c0_21 = arith.constant 0 : index
    %c0_22 = arith.constant 0 : index
    %68 = vector.load %arg2[%c0_21, %c0_22] : memref<64x256xf32, #tpu.memory_space<vmem>>, vector<64x256xf32>
    %cst_23 = arith.constant dense<0.000000e+00> : vector<8x256xf32>
    %69 = tpu.matmul %62, %68, %cst_23 {dimension_numbers = #tpu.dot_dimension_numbers<[1], [0], [0], [1], [0, 0, 1, 1], [], []>} : vector<8x64xf32>, vector<64x256xf32>, vector<8x256xf32> -> vector<8x256xf32>
    %70 = arith.index_cast %65 : i32 to index
    %c0_24 = arith.constant 0 : index
    %71 = vector.load %arg5[%70, %c0_24] : memref<64x256xf32, #tpu.memory_space<vmem>>, vector<8x256xf32>
    %72 = arith.index_cast %67 : i32 to index
    %c0_25 = arith.constant 0 : index
    %73 = vector.load %arg5[%72, %c0_25] : memref<64x256xf32, #tpu.memory_space<vmem>>, vector<8x256xf32>
    %74 = vector.extract_strided_slice %71 {offsets = [0, 0], sizes = [8, 128], strides = [1, 1]} : vector<8x256xf32> to vector<8x128xf32>
    %75 = vector.extract_strided_slice %69 {offsets = [0, 0], sizes = [8, 128], strides = [1, 1]} : vector<8x256xf32> to vector<8x128xf32>
    %76 = arith.addf %74, %75 : vector<8x128xf32>
    %77 = vector.extract_strided_slice %76 {offsets = [0, 0], sizes = [8, 96], strides = [1, 1]} : vector<8x128xf32> to vector<8x96xf32>
    %78 = arith.negf %77 : vector<8x96xf32>
    %79 = math.exp %78 : vector<8x96xf32>
    %cst_26 = arith.constant 1.000000e+00 : f32
    %80 = vector.broadcast %cst_26 : f32 to vector<8x96xf32>
    %81 = arith.addf %80, %79 : vector<8x96xf32>
    %82 = arith.divf %80, %81 : vector<8x96xf32>
    %83 = vector.extract_strided_slice %82 {offsets = [0, 0], sizes = [8, 32], strides = [1, 1]} : vector<8x96xf32> to vector<8x32xf32>
    %84 = vector.extract_strided_slice %82 {offsets = [0, 32], sizes = [8, 32], strides = [1, 1]} : vector<8x96xf32> to vector<8x32xf32>
    %85 = vector.extract_strided_slice %82 {offsets = [0, 64], sizes = [8, 32], strides = [1, 1]} : vector<8x96xf32> to vector<8x32xf32>
    %86 = vector.extract_strided_slice %76 {offsets = [0, 96], sizes = [8, 32], strides = [1, 1]} : vector<8x128xf32> to vector<8x32xf32>
    %87 = math.tanh %86 : vector<8x32xf32>
    %88 = arith.mulf %84, %36 : vector<8x32xf32>
    %89 = arith.mulf %83, %87 : vector<8x32xf32>
    %90 = arith.addf %88, %89 : vector<8x32xf32>
    %91 = math.tanh %90 : vector<8x32xf32>
    %92 = arith.mulf %85, %91 : vector<8x32xf32>
    %93 = vector.extract_strided_slice %73 {offsets = [0, 128], sizes = [8, 128], strides = [1, 1]} : vector<8x256xf32> to vector<8x128xf32>
    %94 = vector.extract_strided_slice %69 {offsets = [0, 128], sizes = [8, 128], strides = [1, 1]} : vector<8x256xf32> to vector<8x128xf32>
    %95 = arith.addf %93, %94 : vector<8x128xf32>
    %96 = vector.extract_strided_slice %95 {offsets = [0, 0], sizes = [8, 96], strides = [1, 1]} : vector<8x128xf32> to vector<8x96xf32>
    %97 = arith.negf %96 : vector<8x96xf32>
    %98 = math.exp %97 : vector<8x96xf32>
    %cst_27 = arith.constant 1.000000e+00 : f32
    %99 = vector.broadcast %cst_27 : f32 to vector<8x96xf32>
    %100 = arith.addf %99, %98 : vector<8x96xf32>
    %101 = arith.divf %99, %100 : vector<8x96xf32>
    %102 = vector.extract_strided_slice %101 {offsets = [0, 0], sizes = [8, 32], strides = [1, 1]} : vector<8x96xf32> to vector<8x32xf32>
    %103 = vector.extract_strided_slice %101 {offsets = [0, 32], sizes = [8, 32], strides = [1, 1]} : vector<8x96xf32> to vector<8x32xf32>
    %104 = vector.extract_strided_slice %101 {offsets = [0, 64], sizes = [8, 32], strides = [1, 1]} : vector<8x96xf32> to vector<8x32xf32>
    %105 = vector.extract_strided_slice %95 {offsets = [0, 96], sizes = [8, 32], strides = [1, 1]} : vector<8x128xf32> to vector<8x32xf32>
    %106 = math.tanh %105 : vector<8x32xf32>
    %107 = arith.mulf %103, %55 : vector<8x32xf32>
    %108 = arith.mulf %102, %106 : vector<8x32xf32>
    %109 = arith.addf %107, %108 : vector<8x32xf32>
    %110 = math.tanh %109 : vector<8x32xf32>
    %111 = arith.mulf %104, %110 : vector<8x32xf32>
    %112 = arith.index_cast %65 : i32 to index
    %c0_28 = arith.constant 0 : index
    %113 = vector.load %arg4[%112, %c0_28] : memref<64x64xf32, #tpu.memory_space<vmem>>, vector<8x32xf32>
    tpu.vector_store %arg4[%112, %c0_28], %92 {strides = array<i32>} : memref<64x64xf32, #tpu.memory_space<vmem>>, vector<8x32xf32>,
    %114 = arith.index_cast %67 : i32 to index
    %c32_29 = arith.constant 32 : index
    %115 = vector.load %arg4[%114, %c32_29] : memref<64x64xf32, #tpu.memory_space<vmem>>, vector<8x32xf32>
    tpu.vector_store %arg4[%114, %c32_29], %111 {strides = array<i32>} : memref<64x64xf32, #tpu.memory_space<vmem>>, vector<8x32xf32>,
    %116 = tpu.concatenate %92, %111 in 1 : vector<8x32xf32>, vector<8x32xf32> -> vector<8x64xf32>
    %c2_i32 = arith.constant 2 : i32
    %c7_i32_30 = arith.constant 7 : i32
    %117 = arith.subi %c7_i32_30, %c2_i32 : i32
    %c8_i32_31 = arith.constant 8 : i32
    %118 = arith.muli %c2_i32, %c8_i32_31 : i32
    %119 = tpu.assume_multiple %118, 8 : i32
    %c8_i32_32 = arith.constant 8 : i32
    %120 = arith.muli %117, %c8_i32_32 : i32
    %121 = tpu.assume_multiple %120, 8 : i32
    %c0_33 = arith.constant 0 : index
    %c0_34 = arith.constant 0 : index
    %122 = vector.load %arg2[%c0_33, %c0_34] : memref<64x256xf32, #tpu.memory_space<vmem>>, vector<64x256xf32>
    %cst_35 = arith.constant dense<0.000000e+00> : vector<8x256xf32>
    %123 = tpu.matmul %116, %122, %cst_35 {dimension_numbers = #tpu.dot_dimension_numbers<[1], [0], [0], [1], [0, 0, 1, 1], [], []>} : vector<8x64xf32>, vector<64x256xf32>, vector<8x256xf32> -> vector<8x256xf32>
    %124 = arith.index_cast %119 : i32 to index
    %c0_36 = arith.constant 0 : index
    %125 = vector.load %arg5[%124, %c0_36] : memref<64x256xf32, #tpu.memory_space<vmem>>, vector<8x256xf32>
    %126 = arith.index_cast %121 : i32 to index
    %c0_37 = arith.constant 0 : index
    %127 = vector.load %arg5[%126, %c0_37] : memref<64x256xf32, #tpu.memory_space<vmem>>, vector<8x256xf32>
    %128 = vector.extract_strided_slice %125 {offsets = [0, 0], sizes = [8, 128], strides = [1, 1]} : vector<8x256xf32> to vector<8x128xf32>
    %129 = vector.extract_strided_slice %123 {offsets = [0, 0], sizes = [8, 128], strides = [1, 1]} : vector<8x256xf32> to vector<8x128xf32>
    %130 = arith.addf %128, %129 : vector<8x128xf32>
    %131 = vector.extract_strided_slice %130 {offsets = [0, 0], sizes = [8, 96], strides = [1, 1]} : vector<8x128xf32> to vector<8x96xf32>
    %132 = arith.negf %131 : vector<8x96xf32>
    %133 = math.exp %132 : vector<8x96xf32>
    %cst_38 = arith.constant 1.000000e+00 : f32
    %134 = vector.broadcast %cst_38 : f32 to vector<8x96xf32>
    %135 = arith.addf %134, %133 : vector<8x96xf32>
    %136 = arith.divf %134, %135 : vector<8x96xf32>
    %137 = vector.extract_strided_slice %136 {offsets = [0, 0], sizes = [8, 32], strides = [1, 1]} : vector<8x96xf32> to vector<8x32xf32>
    %138 = vector.extract_strided_slice %136 {offsets = [0, 32], sizes = [8, 32], strides = [1, 1]} : vector<8x96xf32> to vector<8x32xf32>
    %139 = vector.extract_strided_slice %136 {offsets = [0, 64], sizes = [8, 32], strides = [1, 1]} : vector<8x96xf32> to vector<8x32xf32>
    %140 = vector.extract_strided_slice %130 {offsets = [0, 96], sizes = [8, 32], strides = [1, 1]} : vector<8x128xf32> to vector<8x32xf32>
    %141 = math.tanh %140 : vector<8x32xf32>
    %142 = arith.mulf %138, %90 : vector<8x32xf32>
    %143 = arith.mulf %137, %141 : vector<8x32xf32>
    %144 = arith.addf %142, %143 : vector<8x32xf32>
    %145 = math.tanh %144 : vector<8x32xf32>
    %146 = arith.mulf %139, %145 : vector<8x32xf32>
    %147 = vector.extract_strided_slice %127 {offsets = [0, 128], sizes = [8, 128], strides = [1, 1]} : vector<8x256xf32> to vector<8x128xf32>
    %148 = vector.extract_strided_slice %123 {offsets = [0, 128], sizes = [8, 128], strides = [1, 1]} : vector<8x256xf32> to vector<8x128xf32>
    %149 = arith.addf %147, %148 : vector<8x128xf32>
    %150 = vector.extract_strided_slice %149 {offsets = [0, 0], sizes = [8, 96], strides = [1, 1]} : vector<8x128xf32> to vector<8x96xf32>
    %151 = arith.negf %150 : vector<8x96xf32>
    %152 = math.exp %151 : vector<8x96xf32>
    %cst_39 = arith.constant 1.000000e+00 : f32
    %153 = vector.broadcast %cst_39 : f32 to vector<8x96xf32>
    %154 = arith.addf %153, %152 : vector<8x96xf32>
    %155 = arith.divf %153, %154 : vector<8x96xf32>
    %156 = vector.extract_strided_slice %155 {offsets = [0, 0], sizes = [8, 32], strides = [1, 1]} : vector<8x96xf32> to vector<8x32xf32>
    %157 = vector.extract_strided_slice %155 {offsets = [0, 32], sizes = [8, 32], strides = [1, 1]} : vector<8x96xf32> to vector<8x32xf32>
    %158 = vector.extract_strided_slice %155 {offsets = [0, 64], sizes = [8, 32], strides = [1, 1]} : vector<8x96xf32> to vector<8x32xf32>
    %159 = vector.extract_strided_slice %149 {offsets = [0, 96], sizes = [8, 32], strides = [1, 1]} : vector<8x128xf32> to vector<8x32xf32>
    %160 = math.tanh %159 : vector<8x32xf32>
    %161 = arith.mulf %157, %109 : vector<8x32xf32>
    %162 = arith.mulf %156, %160 : vector<8x32xf32>
    %163 = arith.addf %161, %162 : vector<8x32xf32>
    %164 = math.tanh %163 : vector<8x32xf32>
    %165 = arith.mulf %158, %164 : vector<8x32xf32>
    %166 = arith.index_cast %119 : i32 to index
    %c0_40 = arith.constant 0 : index
    %167 = vector.load %arg4[%166, %c0_40] : memref<64x64xf32, #tpu.memory_space<vmem>>, vector<8x32xf32>
    tpu.vector_store %arg4[%166, %c0_40], %146 {strides = array<i32>} : memref<64x64xf32, #tpu.memory_space<vmem>>, vector<8x32xf32>,
    %168 = arith.index_cast %121 : i32 to index
    %c32_41 = arith.constant 32 : index
    %169 = vector.load %arg4[%168, %c32_41] : memref<64x64xf32, #tpu.memory_space<vmem>>, vector<8x32xf32>
    tpu.vector_store %arg4[%168, %c32_41], %165 {strides = array<i32>} : memref<64x64xf32, #tpu.memory_space<vmem>>, vector<8x32xf32>,
    %170 = tpu.concatenate %146, %165 in 1 : vector<8x32xf32>, vector<8x32xf32> -> vector<8x64xf32>
    %c3_i32 = arith.constant 3 : i32
    %c7_i32_42 = arith.constant 7 : i32
    %171 = arith.subi %c7_i32_42, %c3_i32 : i32
    %c8_i32_43 = arith.constant 8 : i32
    %172 = arith.muli %c3_i32, %c8_i32_43 : i32
    %173 = tpu.assume_multiple %172, 8 : i32
    %c8_i32_44 = arith.constant 8 : i32
    %174 = arith.muli %171, %c8_i32_44 : i32
    %175 = tpu.assume_multiple %174, 8 : i32
    %c0_45 = arith.constant 0 : index
    %c0_46 = arith.constant 0 : index
    %176 = vector.load %arg2[%c0_45, %c0_46] : memref<64x256xf32, #tpu.memory_space<vmem>>, vector<64x256xf32>
    %cst_47 = arith.constant dense<0.000000e+00> : vector<8x256xf32>
    %177 = tpu.matmul %170, %176, %cst_47 {dimension_numbers = #tpu.dot_dimension_numbers<[1], [0], [0], [1], [0, 0, 1, 1], [], []>} : vector<8x64xf32>, vector<64x256xf32>, vector<8x256xf32> -> vector<8x256xf32>
    %178 = arith.index_cast %173 : i32 to index
    %c0_48 = arith.constant 0 : index
    %179 = vector.load %arg5[%178, %c0_48] : memref<64x256xf32, #tpu.memory_space<vmem>>, vector<8x256xf32>
    %180 = arith.index_cast %175 : i32 to index
    %c0_49 = arith.constant 0 : index
    %181 = vector.load %arg5[%180, %c0_49] : memref<64x256xf32, #tpu.memory_space<vmem>>, vector<8x256xf32>
    %182 = vector.extract_strided_slice %179 {offsets = [0, 0], sizes = [8, 128], strides = [1, 1]} : vector<8x256xf32> to vector<8x128xf32>
    %183 = vector.extract_strided_slice %177 {offsets = [0, 0], sizes = [8, 128], strides = [1, 1]} : vector<8x256xf32> to vector<8x128xf32>
    %184 = arith.addf %182, %183 : vector<8x128xf32>
    %185 = vector.extract_strided_slice %184 {offsets = [0, 0], sizes = [8, 96], strides = [1, 1]} : vector<8x128xf32> to vector<8x96xf32>
    %186 = arith.negf %185 : vector<8x96xf32>
    %187 = math.exp %186 : vector<8x96xf32>
    %cst_50 = arith.constant 1.000000e+00 : f32
    %188 = vector.broadcast %cst_50 : f32 to vector<8x96xf32>
    %189 = arith.addf %188, %187 : vector<8x96xf32>
    %190 = arith.divf %188, %189 : vector<8x96xf32>
    %191 = vector.extract_strided_slice %190 {offsets = [0, 0], sizes = [8, 32], strides = [1, 1]} : vector<8x96xf32> to vector<8x32xf32>
    %192 = vector.extract_strided_slice %190 {offsets = [0, 32], sizes = [8, 32], strides = [1, 1]} : vector<8x96xf32> to vector<8x32xf32>
    %193 = vector.extract_strided_slice %190 {offsets = [0, 64], sizes = [8, 32], strides = [1, 1]} : vector<8x96xf32> to vector<8x32xf32>
    %194 = vector.extract_strided_slice %184 {offsets = [0, 96], sizes = [8, 32], strides = [1, 1]} : vector<8x128xf32> to vector<8x32xf32>
    %195 = math.tanh %194 : vector<8x32xf32>
    %196 = arith.mulf %192, %144 : vector<8x32xf32>
    %197 = arith.mulf %191, %195 : vector<8x32xf32>
    %198 = arith.addf %196, %197 : vector<8x32xf32>
    %199 = math.tanh %198 : vector<8x32xf32>
    %200 = arith.mulf %193, %199 : vector<8x32xf32>
    %201 = vector.extract_strided_slice %181 {offsets = [0, 128], sizes = [8, 128], strides = [1, 1]} : vector<8x256xf32> to vector<8x128xf32>
    %202 = vector.extract_strided_slice %177 {offsets = [0, 128], sizes = [8, 128], strides = [1, 1]} : vector<8x256xf32> to vector<8x128xf32>
    %203 = arith.addf %201, %202 : vector<8x128xf32>
    %204 = vector.extract_strided_slice %203 {offsets = [0, 0], sizes = [8, 96], strides = [1, 1]} : vector<8x128xf32> to vector<8x96xf32>
    %205 = arith.negf %204 : vector<8x96xf32>
    %206 = math.exp %205 : vector<8x96xf32>
    %cst_51 = arith.constant 1.000000e+00 : f32
    %207 = vector.broadcast %cst_51 : f32 to vector<8x96xf32>
    %208 = arith.addf %207, %206 : vector<8x96xf32>
    %209 = arith.divf %207, %208 : vector<8x96xf32>
    %210 = vector.extract_strided_slice %209 {offsets = [0, 0], sizes = [8, 32], strides = [1, 1]} : vector<8x96xf32> to vector<8x32xf32>
    %211 = vector.extract_strided_slice %209 {offsets = [0, 32], sizes = [8, 32], strides = [1, 1]} : vector<8x96xf32> to vector<8x32xf32>
    %212 = vector.extract_strided_slice %209 {offsets = [0, 64], sizes = [8, 32], strides = [1, 1]} : vector<8x96xf32> to vector<8x32xf32>
    %213 = vector.extract_strided_slice %203 {offsets = [0, 96], sizes = [8, 32], strides = [1, 1]} : vector<8x128xf32> to vector<8x32xf32>
    %214 = math.tanh %213 : vector<8x32xf32>
    %215 = arith.mulf %211, %163 : vector<8x32xf32>
    %216 = arith.mulf %210, %214 : vector<8x32xf32>
    %217 = arith.addf %215, %216 : vector<8x32xf32>
    %218 = math.tanh %217 : vector<8x32xf32>
    %219 = arith.mulf %212, %218 : vector<8x32xf32>
    %220 = arith.index_cast %173 : i32 to index
    %c0_52 = arith.constant 0 : index
    %221 = vector.load %arg4[%220, %c0_52] : memref<64x64xf32, #tpu.memory_space<vmem>>, vector<8x32xf32>
    tpu.vector_store %arg4[%220, %c0_52], %200 {strides = array<i32>} : memref<64x64xf32, #tpu.memory_space<vmem>>, vector<8x32xf32>,
    %222 = arith.index_cast %175 : i32 to index
    %c32_53 = arith.constant 32 : index
    %223 = vector.load %arg4[%222, %c32_53] : memref<64x64xf32, #tpu.memory_space<vmem>>, vector<8x32xf32>
    tpu.vector_store %arg4[%222, %c32_53], %219 {strides = array<i32>} : memref<64x64xf32, #tpu.memory_space<vmem>>, vector<8x32xf32>,
    %224 = tpu.concatenate %200, %219 in 1 : vector<8x32xf32>, vector<8x32xf32> -> vector<8x64xf32>
    %c4_i32 = arith.constant 4 : i32
    %c7_i32_54 = arith.constant 7 : i32
    %225 = arith.subi %c7_i32_54, %c4_i32 : i32
    %c8_i32_55 = arith.constant 8 : i32
    %226 = arith.muli %c4_i32, %c8_i32_55 : i32
    %227 = tpu.assume_multiple %226, 8 : i32
    %c8_i32_56 = arith.constant 8 : i32
    %228 = arith.muli %225, %c8_i32_56 : i32
    %229 = tpu.assume_multiple %228, 8 : i32
    %c0_57 = arith.constant 0 : index
    %c0_58 = arith.constant 0 : index
    %230 = vector.load %arg2[%c0_57, %c0_58] : memref<64x256xf32, #tpu.memory_space<vmem>>, vector<64x256xf32>
    %cst_59 = arith.constant dense<0.000000e+00> : vector<8x256xf32>
    %231 = tpu.matmul %224, %230, %cst_59 {dimension_numbers = #tpu.dot_dimension_numbers<[1], [0], [0], [1], [0, 0, 1, 1], [], []>} : vector<8x64xf32>, vector<64x256xf32>, vector<8x256xf32> -> vector<8x256xf32>
    %232 = arith.index_cast %227 : i32 to index
    %c0_60 = arith.constant 0 : index
    %233 = vector.load %arg5[%232, %c0_60] : memref<64x256xf32, #tpu.memory_space<vmem>>, vector<8x256xf32>
    %234 = arith.index_cast %229 : i32 to index
    %c0_61 = arith.constant 0 : index
    %235 = vector.load %arg5[%234, %c0_61] : memref<64x256xf32, #tpu.memory_space<vmem>>, vector<8x256xf32>
    %236 = vector.extract_strided_slice %233 {offsets = [0, 0], sizes = [8, 128], strides = [1, 1]} : vector<8x256xf32> to vector<8x128xf32>
    %237 = vector.extract_strided_slice %231 {offsets = [0, 0], sizes = [8, 128], strides = [1, 1]} : vector<8x256xf32> to vector<8x128xf32>
    %238 = arith.addf %236, %237 : vector<8x128xf32>
    %239 = vector.extract_strided_slice %238 {offsets = [0, 0], sizes = [8, 96], strides = [1, 1]} : vector<8x128xf32> to vector<8x96xf32>
    %240 = arith.negf %239 : vector<8x96xf32>
    %241 = math.exp %240 : vector<8x96xf32>
    %cst_62 = arith.constant 1.000000e+00 : f32
    %242 = vector.broadcast %cst_62 : f32 to vector<8x96xf32>
    %243 = arith.addf %242, %241 : vector<8x96xf32>
    %244 = arith.divf %242, %243 : vector<8x96xf32>
    %245 = vector.extract_strided_slice %244 {offsets = [0, 0], sizes = [8, 32], strides = [1, 1]} : vector<8x96xf32> to vector<8x32xf32>
    %246 = vector.extract_strided_slice %244 {offsets = [0, 32], sizes = [8, 32], strides = [1, 1]} : vector<8x96xf32> to vector<8x32xf32>
    %247 = vector.extract_strided_slice %244 {offsets = [0, 64], sizes = [8, 32], strides = [1, 1]} : vector<8x96xf32> to vector<8x32xf32>
    %248 = vector.extract_strided_slice %238 {offsets = [0, 96], sizes = [8, 32], strides = [1, 1]} : vector<8x128xf32> to vector<8x32xf32>
    %249 = math.tanh %248 : vector<8x32xf32>
    %250 = arith.mulf %246, %198 : vector<8x32xf32>
    %251 = arith.mulf %245, %249 : vector<8x32xf32>
    %252 = arith.addf %250, %251 : vector<8x32xf32>
    %253 = math.tanh %252 : vector<8x32xf32>
    %254 = arith.mulf %247, %253 : vector<8x32xf32>
    %255 = vector.extract_strided_slice %235 {offsets = [0, 128], sizes = [8, 128], strides = [1, 1]} : vector<8x256xf32> to vector<8x128xf32>
    %256 = vector.extract_strided_slice %231 {offsets = [0, 128], sizes = [8, 128], strides = [1, 1]} : vector<8x256xf32> to vector<8x128xf32>
    %257 = arith.addf %255, %256 : vector<8x128xf32>
    %258 = vector.extract_strided_slice %257 {offsets = [0, 0], sizes = [8, 96], strides = [1, 1]} : vector<8x128xf32> to vector<8x96xf32>
    %259 = arith.negf %258 : vector<8x96xf32>
    %260 = math.exp %259 : vector<8x96xf32>
    %cst_63 = arith.constant 1.000000e+00 : f32
    %261 = vector.broadcast %cst_63 : f32 to vector<8x96xf32>
    %262 = arith.addf %261, %260 : vector<8x96xf32>
    %263 = arith.divf %261, %262 : vector<8x96xf32>
    %264 = vector.extract_strided_slice %263 {offsets = [0, 0], sizes = [8, 32], strides = [1, 1]} : vector<8x96xf32> to vector<8x32xf32>
    %265 = vector.extract_strided_slice %263 {offsets = [0, 32], sizes = [8, 32], strides = [1, 1]} : vector<8x96xf32> to vector<8x32xf32>
    %266 = vector.extract_strided_slice %263 {offsets = [0, 64], sizes = [8, 32], strides = [1, 1]} : vector<8x96xf32> to vector<8x32xf32>
    %267 = vector.extract_strided_slice %257 {offsets = [0, 96], sizes = [8, 32], strides = [1, 1]} : vector<8x128xf32> to vector<8x32xf32>
    %268 = math.tanh %267 : vector<8x32xf32>
    %269 = arith.mulf %265, %217 : vector<8x32xf32>
    %270 = arith.mulf %264, %268 : vector<8x32xf32>
    %271 = arith.addf %269, %270 : vector<8x32xf32>
    %272 = math.tanh %271 : vector<8x32xf32>
    %273 = arith.mulf %266, %272 : vector<8x32xf32>
    %274 = arith.index_cast %227 : i32 to index
    %c0_64 = arith.constant 0 : index
    %275 = vector.load %arg4[%274, %c0_64] : memref<64x64xf32, #tpu.memory_space<vmem>>, vector<8x32xf32>
    tpu.vector_store %arg4[%274, %c0_64], %254 {strides = array<i32>} : memref<64x64xf32, #tpu.memory_space<vmem>>, vector<8x32xf32>,
    %276 = arith.index_cast %229 : i32 to index
    %c32_65 = arith.constant 32 : index
    %277 = vector.load %arg4[%276, %c32_65] : memref<64x64xf32, #tpu.memory_space<vmem>>, vector<8x32xf32>
    tpu.vector_store %arg4[%276, %c32_65], %273 {strides = array<i32>} : memref<64x64xf32, #tpu.memory_space<vmem>>, vector<8x32xf32>,
    %278 = tpu.concatenate %254, %273 in 1 : vector<8x32xf32>, vector<8x32xf32> -> vector<8x64xf32>
    %c5_i32 = arith.constant 5 : i32
    %c7_i32_66 = arith.constant 7 : i32
    %279 = arith.subi %c7_i32_66, %c5_i32 : i32
    %c8_i32_67 = arith.constant 8 : i32
    %280 = arith.muli %c5_i32, %c8_i32_67 : i32
    %281 = tpu.assume_multiple %280, 8 : i32
    %c8_i32_68 = arith.constant 8 : i32
    %282 = arith.muli %279, %c8_i32_68 : i32
    %283 = tpu.assume_multiple %282, 8 : i32
    %c0_69 = arith.constant 0 : index
    %c0_70 = arith.constant 0 : index
    %284 = vector.load %arg2[%c0_69, %c0_70] : memref<64x256xf32, #tpu.memory_space<vmem>>, vector<64x256xf32>
    %cst_71 = arith.constant dense<0.000000e+00> : vector<8x256xf32>
    %285 = tpu.matmul %278, %284, %cst_71 {dimension_numbers = #tpu.dot_dimension_numbers<[1], [0], [0], [1], [0, 0, 1, 1], [], []>} : vector<8x64xf32>, vector<64x256xf32>, vector<8x256xf32> -> vector<8x256xf32>
    %286 = arith.index_cast %281 : i32 to index
    %c0_72 = arith.constant 0 : index
    %287 = vector.load %arg5[%286, %c0_72] : memref<64x256xf32, #tpu.memory_space<vmem>>, vector<8x256xf32>
    %288 = arith.index_cast %283 : i32 to index
    %c0_73 = arith.constant 0 : index
    %289 = vector.load %arg5[%288, %c0_73] : memref<64x256xf32, #tpu.memory_space<vmem>>, vector<8x256xf32>
    %290 = vector.extract_strided_slice %287 {offsets = [0, 0], sizes = [8, 128], strides = [1, 1]} : vector<8x256xf32> to vector<8x128xf32>
    %291 = vector.extract_strided_slice %285 {offsets = [0, 0], sizes = [8, 128], strides = [1, 1]} : vector<8x256xf32> to vector<8x128xf32>
    %292 = arith.addf %290, %291 : vector<8x128xf32>
    %293 = vector.extract_strided_slice %292 {offsets = [0, 0], sizes = [8, 96], strides = [1, 1]} : vector<8x128xf32> to vector<8x96xf32>
    %294 = arith.negf %293 : vector<8x96xf32>
    %295 = math.exp %294 : vector<8x96xf32>
    %cst_74 = arith.constant 1.000000e+00 : f32
    %296 = vector.broadcast %cst_74 : f32 to vector<8x96xf32>
    %297 = arith.addf %296, %295 : vector<8x96xf32>
    %298 = arith.divf %296, %297 : vector<8x96xf32>
    %299 = vector.extract_strided_slice %298 {offsets = [0, 0], sizes = [8, 32], strides = [1, 1]} : vector<8x96xf32> to vector<8x32xf32>
    %300 = vector.extract_strided_slice %298 {offsets = [0, 32], sizes = [8, 32], strides = [1, 1]} : vector<8x96xf32> to vector<8x32xf32>
    %301 = vector.extract_strided_slice %298 {offsets = [0, 64], sizes = [8, 32], strides = [1, 1]} : vector<8x96xf32> to vector<8x32xf32>
    %302 = vector.extract_strided_slice %292 {offsets = [0, 96], sizes = [8, 32], strides = [1, 1]} : vector<8x128xf32> to vector<8x32xf32>
    %303 = math.tanh %302 : vector<8x32xf32>
    %304 = arith.mulf %300, %252 : vector<8x32xf32>
    %305 = arith.mulf %299, %303 : vector<8x32xf32>
    %306 = arith.addf %304, %305 : vector<8x32xf32>
    %307 = math.tanh %306 : vector<8x32xf32>
    %308 = arith.mulf %301, %307 : vector<8x32xf32>
    %309 = vector.extract_strided_slice %289 {offsets = [0, 128], sizes = [8, 128], strides = [1, 1]} : vector<8x256xf32> to vector<8x128xf32>
    %310 = vector.extract_strided_slice %285 {offsets = [0, 128], sizes = [8, 128], strides = [1, 1]} : vector<8x256xf32> to vector<8x128xf32>
    %311 = arith.addf %309, %310 : vector<8x128xf32>
    %312 = vector.extract_strided_slice %311 {offsets = [0, 0], sizes = [8, 96], strides = [1, 1]} : vector<8x128xf32> to vector<8x96xf32>
    %313 = arith.negf %312 : vector<8x96xf32>
    %314 = math.exp %313 : vector<8x96xf32>
    %cst_75 = arith.constant 1.000000e+00 : f32
    %315 = vector.broadcast %cst_75 : f32 to vector<8x96xf32>
    %316 = arith.addf %315, %314 : vector<8x96xf32>
    %317 = arith.divf %315, %316 : vector<8x96xf32>
    %318 = vector.extract_strided_slice %317 {offsets = [0, 0], sizes = [8, 32], strides = [1, 1]} : vector<8x96xf32> to vector<8x32xf32>
    %319 = vector.extract_strided_slice %317 {offsets = [0, 32], sizes = [8, 32], strides = [1, 1]} : vector<8x96xf32> to vector<8x32xf32>
    %320 = vector.extract_strided_slice %317 {offsets = [0, 64], sizes = [8, 32], strides = [1, 1]} : vector<8x96xf32> to vector<8x32xf32>
    %321 = vector.extract_strided_slice %311 {offsets = [0, 96], sizes = [8, 32], strides = [1, 1]} : vector<8x128xf32> to vector<8x32xf32>
    %322 = math.tanh %321 : vector<8x32xf32>
    %323 = arith.mulf %319, %271 : vector<8x32xf32>
    %324 = arith.mulf %318, %322 : vector<8x32xf32>
    %325 = arith.addf %323, %324 : vector<8x32xf32>
    %326 = math.tanh %325 : vector<8x32xf32>
    %327 = arith.mulf %320, %326 : vector<8x32xf32>
    %328 = arith.index_cast %281 : i32 to index
    %c0_76 = arith.constant 0 : index
    %329 = vector.load %arg4[%328, %c0_76] : memref<64x64xf32, #tpu.memory_space<vmem>>, vector<8x32xf32>
    tpu.vector_store %arg4[%328, %c0_76], %308 {strides = array<i32>} : memref<64x64xf32, #tpu.memory_space<vmem>>, vector<8x32xf32>,
    %330 = arith.index_cast %283 : i32 to index
    %c32_77 = arith.constant 32 : index
    %331 = vector.load %arg4[%330, %c32_77] : memref<64x64xf32, #tpu.memory_space<vmem>>, vector<8x32xf32>
    tpu.vector_store %arg4[%330, %c32_77], %327 {strides = array<i32>} : memref<64x64xf32, #tpu.memory_space<vmem>>, vector<8x32xf32>,
    %332 = tpu.concatenate %308, %327 in 1 : vector<8x32xf32>, vector<8x32xf32> -> vector<8x64xf32>
    %c6_i32 = arith.constant 6 : i32
    %c7_i32_78 = arith.constant 7 : i32
    %333 = arith.subi %c7_i32_78, %c6_i32 : i32
    %c8_i32_79 = arith.constant 8 : i32
    %334 = arith.muli %c6_i32, %c8_i32_79 : i32
    %335 = tpu.assume_multiple %334, 8 : i32
    %c8_i32_80 = arith.constant 8 : i32
    %336 = arith.muli %333, %c8_i32_80 : i32
    %337 = tpu.assume_multiple %336, 8 : i32
    %c0_81 = arith.constant 0 : index
    %c0_82 = arith.constant 0 : index
    %338 = vector.load %arg2[%c0_81, %c0_82] : memref<64x256xf32, #tpu.memory_space<vmem>>, vector<64x256xf32>
    %cst_83 = arith.constant dense<0.000000e+00> : vector<8x256xf32>
    %339 = tpu.matmul %332, %338, %cst_83 {dimension_numbers = #tpu.dot_dimension_numbers<[1], [0], [0], [1], [0, 0, 1, 1], [], []>} : vector<8x64xf32>, vector<64x256xf32>, vector<8x256xf32> -> vector<8x256xf32>
    %340 = arith.index_cast %335 : i32 to index
    %c0_84 = arith.constant 0 : index
    %341 = vector.load %arg5[%340, %c0_84] : memref<64x256xf32, #tpu.memory_space<vmem>>, vector<8x256xf32>
    %342 = arith.index_cast %337 : i32 to index
    %c0_85 = arith.constant 0 : index
    %343 = vector.load %arg5[%342, %c0_85] : memref<64x256xf32, #tpu.memory_space<vmem>>, vector<8x256xf32>
    %344 = vector.extract_strided_slice %341 {offsets = [0, 0], sizes = [8, 128], strides = [1, 1]} : vector<8x256xf32> to vector<8x128xf32>
    %345 = vector.extract_strided_slice %339 {offsets = [0, 0], sizes = [8, 128], strides = [1, 1]} : vector<8x256xf32> to vector<8x128xf32>
    %346 = arith.addf %344, %345 : vector<8x128xf32>
    %347 = vector.extract_strided_slice %346 {offsets = [0, 0], sizes = [8, 96], strides = [1, 1]} : vector<8x128xf32> to vector<8x96xf32>
    %348 = arith.negf %347 : vector<8x96xf32>
    %349 = math.exp %348 : vector<8x96xf32>
    %cst_86 = arith.constant 1.000000e+00 : f32
    %350 = vector.broadcast %cst_86 : f32 to vector<8x96xf32>
    %351 = arith.addf %350, %349 : vector<8x96xf32>
    %352 = arith.divf %350, %351 : vector<8x96xf32>
    %353 = vector.extract_strided_slice %352 {offsets = [0, 0], sizes = [8, 32], strides = [1, 1]} : vector<8x96xf32> to vector<8x32xf32>
    %354 = vector.extract_strided_slice %352 {offsets = [0, 32], sizes = [8, 32], strides = [1, 1]} : vector<8x96xf32> to vector<8x32xf32>
    %355 = vector.extract_strided_slice %352 {offsets = [0, 64], sizes = [8, 32], strides = [1, 1]} : vector<8x96xf32> to vector<8x32xf32>
    %356 = vector.extract_strided_slice %346 {offsets = [0, 96], sizes = [8, 32], strides = [1, 1]} : vector<8x128xf32> to vector<8x32xf32>
    %357 = math.tanh %356 : vector<8x32xf32>
    %358 = arith.mulf %354, %306 : vector<8x32xf32>
    %359 = arith.mulf %353, %357 : vector<8x32xf32>
    %360 = arith.addf %358, %359 : vector<8x32xf32>
    %361 = math.tanh %360 : vector<8x32xf32>
    %362 = arith.mulf %355, %361 : vector<8x32xf32>
    %363 = vector.extract_strided_slice %343 {offsets = [0, 128], sizes = [8, 128], strides = [1, 1]} : vector<8x256xf32> to vector<8x128xf32>
    %364 = vector.extract_strided_slice %339 {offsets = [0, 128], sizes = [8, 128], strides = [1, 1]} : vector<8x256xf32> to vector<8x128xf32>
    %365 = arith.addf %363, %364 : vector<8x128xf32>
    %366 = vector.extract_strided_slice %365 {offsets = [0, 0], sizes = [8, 96], strides = [1, 1]} : vector<8x128xf32> to vector<8x96xf32>
    %367 = arith.negf %366 : vector<8x96xf32>
    %368 = math.exp %367 : vector<8x96xf32>
    %cst_87 = arith.constant 1.000000e+00 : f32
    %369 = vector.broadcast %cst_87 : f32 to vector<8x96xf32>
    %370 = arith.addf %369, %368 : vector<8x96xf32>
    %371 = arith.divf %369, %370 : vector<8x96xf32>
    %372 = vector.extract_strided_slice %371 {offsets = [0, 0], sizes = [8, 32], strides = [1, 1]} : vector<8x96xf32> to vector<8x32xf32>
    %373 = vector.extract_strided_slice %371 {offsets = [0, 32], sizes = [8, 32], strides = [1, 1]} : vector<8x96xf32> to vector<8x32xf32>
    %374 = vector.extract_strided_slice %371 {offsets = [0, 64], sizes = [8, 32], strides = [1, 1]} : vector<8x96xf32> to vector<8x32xf32>
    %375 = vector.extract_strided_slice %365 {offsets = [0, 96], sizes = [8, 32], strides = [1, 1]} : vector<8x128xf32> to vector<8x32xf32>
    %376 = math.tanh %375 : vector<8x32xf32>
    %377 = arith.mulf %373, %325 : vector<8x32xf32>
    %378 = arith.mulf %372, %376 : vector<8x32xf32>
    %379 = arith.addf %377, %378 : vector<8x32xf32>
    %380 = math.tanh %379 : vector<8x32xf32>
    %381 = arith.mulf %374, %380 : vector<8x32xf32>
    %382 = arith.index_cast %335 : i32 to index
    %c0_88 = arith.constant 0 : index
    %383 = vector.load %arg4[%382, %c0_88] : memref<64x64xf32, #tpu.memory_space<vmem>>, vector<8x32xf32>
    tpu.vector_store %arg4[%382, %c0_88], %362 {strides = array<i32>} : memref<64x64xf32, #tpu.memory_space<vmem>>, vector<8x32xf32>,
    %384 = arith.index_cast %337 : i32 to index
    %c32_89 = arith.constant 32 : index
    %385 = vector.load %arg4[%384, %c32_89] : memref<64x64xf32, #tpu.memory_space<vmem>>, vector<8x32xf32>
    tpu.vector_store %arg4[%384, %c32_89], %381 {strides = array<i32>} : memref<64x64xf32, #tpu.memory_space<vmem>>, vector<8x32xf32>,
    %386 = tpu.concatenate %362, %381 in 1 : vector<8x32xf32>, vector<8x32xf32> -> vector<8x64xf32>
    %c7_i32_90 = arith.constant 7 : i32
    %c7_i32_91 = arith.constant 7 : i32
    %387 = arith.subi %c7_i32_91, %c7_i32_90 : i32
    %c8_i32_92 = arith.constant 8 : i32
    %388 = arith.muli %c7_i32_90, %c8_i32_92 : i32
    %389 = tpu.assume_multiple %388, 8 : i32
    %c8_i32_93 = arith.constant 8 : i32
    %390 = arith.muli %387, %c8_i32_93 : i32
    %391 = tpu.assume_multiple %390, 8 : i32
    %c0_94 = arith.constant 0 : index
    %c0_95 = arith.constant 0 : index
    %392 = vector.load %arg2[%c0_94, %c0_95] : memref<64x256xf32, #tpu.memory_space<vmem>>, vector<64x256xf32>
    %cst_96 = arith.constant dense<0.000000e+00> : vector<8x256xf32>
    %393 = tpu.matmul %386, %392, %cst_96 {dimension_numbers = #tpu.dot_dimension_numbers<[1], [0], [0], [1], [0, 0, 1, 1], [], []>} : vector<8x64xf32>, vector<64x256xf32>, vector<8x256xf32> -> vector<8x256xf32>
    %394 = arith.index_cast %389 : i32 to index
    %c0_97 = arith.constant 0 : index
    %395 = vector.load %arg5[%394, %c0_97] : memref<64x256xf32, #tpu.memory_space<vmem>>, vector<8x256xf32>
    %396 = arith.index_cast %391 : i32 to index
    %c0_98 = arith.constant 0 : index
    %397 = vector.load %arg5[%396, %c0_98] : memref<64x256xf32, #tpu.memory_space<vmem>>, vector<8x256xf32>
    %398 = vector.extract_strided_slice %395 {offsets = [0, 0], sizes = [8, 128], strides = [1, 1]} : vector<8x256xf32> to vector<8x128xf32>
    %399 = vector.extract_strided_slice %393 {offsets = [0, 0], sizes = [8, 128], strides = [1, 1]} : vector<8x256xf32> to vector<8x128xf32>
    %400 = arith.addf %398, %399 : vector<8x128xf32>
    %401 = vector.extract_strided_slice %400 {offsets = [0, 0], sizes = [8, 96], strides = [1, 1]} : vector<8x128xf32> to vector<8x96xf32>
    %402 = arith.negf %401 : vector<8x96xf32>
    %403 = math.exp %402 : vector<8x96xf32>
    %cst_99 = arith.constant 1.000000e+00 : f32
    %404 = vector.broadcast %cst_99 : f32 to vector<8x96xf32>
    %405 = arith.addf %404, %403 : vector<8x96xf32>
    %406 = arith.divf %404, %405 : vector<8x96xf32>
    %407 = vector.extract_strided_slice %406 {offsets = [0, 0], sizes = [8, 32], strides = [1, 1]} : vector<8x96xf32> to vector<8x32xf32>
    %408 = vector.extract_strided_slice %406 {offsets = [0, 32], sizes = [8, 32], strides = [1, 1]} : vector<8x96xf32> to vector<8x32xf32>
    %409 = vector.extract_strided_slice %406 {offsets = [0, 64], sizes = [8, 32], strides = [1, 1]} : vector<8x96xf32> to vector<8x32xf32>
    %410 = vector.extract_strided_slice %400 {offsets = [0, 96], sizes = [8, 32], strides = [1, 1]} : vector<8x128xf32> to vector<8x32xf32>
    %411 = math.tanh %410 : vector<8x32xf32>
    %412 = arith.mulf %408, %360 : vector<8x32xf32>
    %413 = arith.mulf %407, %411 : vector<8x32xf32>
    %414 = arith.addf %412, %413 : vector<8x32xf32>
    %415 = math.tanh %414 : vector<8x32xf32>
    %416 = arith.mulf %409, %415 : vector<8x32xf32>
    %417 = vector.extract_strided_slice %397 {offsets = [0, 128], sizes = [8, 128], strides = [1, 1]} : vector<8x256xf32> to vector<8x128xf32>
    %418 = vector.extract_strided_slice %393 {offsets = [0, 128], sizes = [8, 128], strides = [1, 1]} : vector<8x256xf32> to vector<8x128xf32>
    %419 = arith.addf %417, %418 : vector<8x128xf32>
    %420 = vector.extract_strided_slice %419 {offsets = [0, 0], sizes = [8, 96], strides = [1, 1]} : vector<8x128xf32> to vector<8x96xf32>
    %421 = arith.negf %420 : vector<8x96xf32>
    %422 = math.exp %421 : vector<8x96xf32>
    %cst_100 = arith.constant 1.000000e+00 : f32
    %423 = vector.broadcast %cst_100 : f32 to vector<8x96xf32>
    %424 = arith.addf %423, %422 : vector<8x96xf32>
    %425 = arith.divf %423, %424 : vector<8x96xf32>
    %426 = vector.extract_strided_slice %425 {offsets = [0, 0], sizes = [8, 32], strides = [1, 1]} : vector<8x96xf32> to vector<8x32xf32>
    %427 = vector.extract_strided_slice %425 {offsets = [0, 32], sizes = [8, 32], strides = [1, 1]} : vector<8x96xf32> to vector<8x32xf32>
    %428 = vector.extract_strided_slice %425 {offsets = [0, 64], sizes = [8, 32], strides = [1, 1]} : vector<8x96xf32> to vector<8x32xf32>
    %429 = vector.extract_strided_slice %419 {offsets = [0, 96], sizes = [8, 32], strides = [1, 1]} : vector<8x128xf32> to vector<8x32xf32>
    %430 = math.tanh %429 : vector<8x32xf32>
    %431 = arith.mulf %427, %379 : vector<8x32xf32>
    %432 = arith.mulf %426, %430 : vector<8x32xf32>
    %433 = arith.addf %431, %432 : vector<8x32xf32>
    %434 = math.tanh %433 : vector<8x32xf32>
    %435 = arith.mulf %428, %434 : vector<8x32xf32>
    %436 = arith.index_cast %389 : i32 to index
    %c0_101 = arith.constant 0 : index
    %437 = vector.load %arg4[%436, %c0_101] : memref<64x64xf32, #tpu.memory_space<vmem>>, vector<8x32xf32>
    tpu.vector_store %arg4[%436, %c0_101], %416 {strides = array<i32>} : memref<64x64xf32, #tpu.memory_space<vmem>>, vector<8x32xf32>,
    %438 = arith.index_cast %391 : i32 to index
    %c32_102 = arith.constant 32 : index
    %439 = vector.load %arg4[%438, %c32_102] : memref<64x64xf32, #tpu.memory_space<vmem>>, vector<8x32xf32>
    tpu.vector_store %arg4[%438, %c32_102], %435 {strides = array<i32>} : memref<64x64xf32, #tpu.memory_space<vmem>>, vector<8x32xf32>,
    %440 = tpu.concatenate %416, %435 in 1 : vector<8x32xf32>, vector<8x32xf32> -> vector<8x64xf32>
    %c8_i32_103 = arith.constant 8 : i32
    return
  }
}

</mosaic_0001>

<llo_original>
// kernel: wordvec_net_forward.3
$region0: #{wordvec_net_forward.3}
  #allocation0 [shape = 'u32[]', space=smem, size = 0x4, offset = 0x4, fixed_abs, tag = 'smem constant byte address 0x4 - core index']
  #allocation1 [shape = 'u32[144,128]{1,0:T(1,128)}', space=vmem, size = 0x12000, scoped, tag = 'internal scratch']
  #allocation2 [shape = 'f32[64,256]{1,0:T(8,128)}', space=vmem, size = 0x10000, scoped, tag = 'scratch operand']
  %s0 = inlined_call_operand.vmem [shape: f32[64,64], index: 0, kind: input, shape index: {}]
  %s1 = inlined_call_operand.vmem [shape: f32[64,256], index: 1, kind: input, shape index: {}]
  %s2 = inlined_call_operand.vmem [shape: f32[64,256], index: 2, kind: input, shape index: {}]
  %s3 = inlined_call_operand.vmem [shape: f32[1,256], index: 3, kind: input, shape index: {}]
  %s4 = inlined_call_operand.vmem [shape: f32[64,64], index: 4, kind: output, shape index: {}]
  %s5 = sld [smem:[#allocation0]]
  $region26: #{wordvec_net_forward.3} parent=0
    _
  %s7 = ssub.s32 1, %s5
  %s8 = scalar_select 0, %s7, %s5
  // Predicated region
  $region2: #{wordvec_net_forward.3} parent=0 // pred_check
    _
  $region3: #{wordvec_net_forward.3} parent=0 // pred_check_branch
    %10 = sbr.rel (0) target = $region5
  $region4: #{wordvec_net_forward.3} parent=0 // pred_region
    _
  $region5: #{wordvec_net_forward.3} parent=0 // pred_fallthru
    _
  // Predicated region
  $region6: #{wordvec_net_forward.3} parent=0 // pred_check
    _
  $region7: #{wordvec_net_forward.3} parent=0 // pred_check_branch
    %12 = sbr.rel (0) target = $region9
  $region8: #{wordvec_net_forward.3} parent=0 // pred_region
    _
  $region9: #{wordvec_net_forward.3} parent=0 // pred_fallthru
    _
  // Predicated region
  $region10: #{wordvec_net_forward.3} parent=0 // pred_check
    _
  $region11: #{wordvec_net_forward.3} parent=0 // pred_check_branch
    %14 = sbr.rel (0) target = $region13
  $region12: #{wordvec_net_forward.3} parent=0 // pred_region
    _
  $region13: #{wordvec_net_forward.3} parent=0 // pred_fallthru
    _
  // Predicated region
  $region14: #{wordvec_net_forward.3} parent=0 // pred_check
    _
  $region15: #{wordvec_net_forward.3} parent=0 // pred_check_branch
    %16 = sbr.rel (0) target = $region17
  $region16: #{wordvec_net_forward.3} parent=0 // pred_region
    _
  $region17: #{wordvec_net_forward.3} parent=0 // pred_fallthru
    _
  %v17 = vld [vmem:[%s0] sm:$0xff]
  %v18 = vld [vmem:[%s0 + $0x8] sm:$0xff]
  %v19 = vld [vmem:[%s0 + $0x10] sm:$0xff]
  %v20 = vld [vmem:[%s0 + $0x18] sm:$0xff]
  %v21 = vld [vmem:[%s0 + $0x20] sm:$0xff]
  %v22 = vld [vmem:[%s0 + $0x28] sm:$0xff]
  %v23 = vld [vmem:[%s0 + $0x30] sm:$0xff]
  %v24 = vld [vmem:[%s0 + $0x38] sm:$0xff]
  %v25 = vld [vmem:[%s1] sm:$0xff]
  %v26 = vld [vmem:[%s1 + $0x8] sm:$0xff]
  %v27 = vld [vmem:[%s1 + $0x10] sm:$0xff]
  %v28 = vld [vmem:[%s1 + $0x18] sm:$0xff]
  %v29 = vld [vmem:[%s1 + $0x20] sm:$0xff]
  %v30 = vld [vmem:[%s1 + $0x28] sm:$0xff]
  %v31 = vld [vmem:[%s1 + $0x30] sm:$0xff]
  %v32 = vld [vmem:[%s1 + $0x38] sm:$0xff]
  %v33 = vld [vmem:[%s1 + $0x40] sm:$0xff]
  %v34 = vld [vmem:[%s1 + $0x48] sm:$0xff]
  %v35 = vld [vmem:[%s1 + $0x50] sm:$0xff]
  %v36 = vld [vmem:[%s1 + $0x58] sm:$0xff]
  %v37 = vld [vmem:[%s1 + $0x60] sm:$0xff]
  %v38 = vld [vmem:[%s1 + $0x68] sm:$0xff]
  %v39 = vld [vmem:[%s1 + $0x70] sm:$0xff]
  %v40 = vld [vmem:[%s1 + $0x78] sm:$0xff]
  %v41 = vld [vmem:[%s3] sm:$0x3]
  %v43 = vlaneseq
  %v44 = vshrl.u32 %v43, 7
  %v45 = vsub.s32 0, %v44
  %v46 = vrot.slane %v41, %v45
  %v47 = vlaneseq
  %v48 = vshrl.u32 %v47, 7
  %v49 = vsub.s32 1, %v48
  %v50 = vrot.slane %v41, %v49
  %vm53 = vcmask 523264
  %v55 = vsel %vm53, %v17, 0
  %v58 = vsel %vm53, %v18, 0
  %v61 = vsel %vm53, %v19, 0
  %v64 = vsel %vm53, %v20, 0
  %v67 = vsel %vm53, %v21, 0
  %v70 = vsel %vm53, %v22, 0
  %v73 = vsel %vm53, %v23, 0
  %v76 = vsel %vm53, %v24, 0
  %78 = vmatprep.subr.mxu0 %v26
  %79 = vmatpush1.msra.mxu0 %v25
  %80 = vmatprep.subr.mxu0 %v28
  %81 = vmatpush1.msra.mxu0 %v27
  %82 = vmatprep.subr.mxu0 %v30
  %83 = vmatpush1.msra.mxu0 %v29
  %84 = vmatprep.subr.mxu0 %v32
  %85 = vmatpush1.msra.mxu0 %v31
  %86 = vmatprep.subr.mxu0 %v34
  %87 = vmatpush1.msra.mxu0 %v33
  %88 = vmatprep.subr.mxu0 %v36
  %89 = vmatpush1.msra.mxu0 %v35
  %90 = vmatprep.subr.mxu0 %v38
  %91 = vmatpush1.msra.mxu0 %v37
  %92 = vmatprep.subr.mxu0 %v40
  %93 = vmatpush1.msra.mxu0 %v39
  %94 = vmatprep.subr.mxu0 0.0
  %95 = vmatpush1.msra.mxu0 0.0
  %96 = vmatprep.subr.mxu0 0.0
  %97 = vmatpush1.msra.mxu0 0.0
  %98 = vmatprep.subr.mxu0 0.0
  %99 = vmatpush1.msra.mxu0 0.0
  %100 = vmatprep.subr.mxu0 0.0
  %101 = vmatpush1.msra.mxu0 0.0
  %102 = vmatprep.subr.mxu0 0.0
  %103 = vmatpush1.msra.mxu0 0.0
  %104 = vmatprep.subr.mxu0 0.0
  %105 = vmatpush1.msra.mxu0 0.0
  %106 = vmatprep.subr.mxu0 0.0
  %107 = vmatpush1.msra.mxu0 0.0
  %108 = vmatprep.subr.mxu0 0.0
  %109 = vmatpush1.msra.mxu0 0.0
  %110 = vmatprep.subr.mxu0 0.0
  %111 = vmatpush1.msra.mxu0 0.0
  %112 = vmatprep.subr.mxu0 0.0
  %113 = vmatpush1.msra.mxu0 0.0
  %114 = vmatprep.subr.mxu0 0.0
  %115 = vmatpush1.msra.mxu0 0.0
  %116 = vmatprep.subr.mxu0 0.0
  %117 = vmatpush1.msra.mxu0 0.0
  %118 = vmatprep.subr.mxu0 0.0
  %119 = vmatpush1.msra.mxu0 0.0
  %120 = vmatprep.subr.mxu0 0.0
  %121 = vmatpush1.msra.mxu0 0.0
  %122 = vmatprep.subr.mxu0 0.0
  %123 = vmatpush1.msra.mxu0 0.0
  %124 = vmatprep.subr.mxu0 0.0
  %125 = vmatpush1.msra.mxu0 0.0
  %126 = vmatprep.subr.mxu0 0.0
  %127 = vmatpush1.msra.mxu0 0.0
  %128 = vmatprep.subr.mxu0 0.0
  %129 = vmatpush1.msra.mxu0 0.0
  %130 = vmatprep.subr.mxu0 0.0
  %131 = vmatpush1.msra.mxu0 0.0
  %132 = vmatprep.subr.mxu0 0.0
  %133 = vmatpush1.msra.mxu0 0.0
  %134 = vmatprep.subr.mxu0 0.0
  %135 = vmatpush1.msra.mxu0 0.0
  %136 = vmatprep.subr.mxu0 0.0
  %137 = vmatpush1.msra.mxu0 0.0
  %138 = vmatprep.subr.mxu0 0.0
  %139 = vmatpush1.msra.mxu0 0.0
  %140 = vmatprep.subr.mxu0 0.0
  %141 = vmatpush1.msra.mxu0 0.0
  %142 = vmatprep.mubr.f32.mxu0 0.0
  %143 = vmatmul.mubr.f32.gmra.mrb[0].mxu0 %v55
  %v144 = vpop.f32.mrb[0].mxu0
  %v145 = vadd.f32 %v46, %v144
  %v146 = vpop.f32.mrb[0].mxu0
  %v147 = vadd.f32 %v50, %v146
  %148 = vmatprep.mubr.f32.mxu0 0.0
  %149 = vmatmul.mubr.f32.gmra.mrb[0].mxu0 %v58
  %v150 = vpop.f32.mrb[0].mxu0
  %v151 = vadd.f32 %v46, %v150
  %v152 = vpop.f32.mrb[0].mxu0
  %v153 = vadd.f32 %v50, %v152
  %154 = vmatprep.mubr.f32.mxu0 0.0
  %155 = vmatmul.mubr.f32.gmra.mrb[0].mxu0 %v61
  %v156 = vpop.f32.mrb[0].mxu0
  %v157 = vadd.f32 %v46, %v156
  %v158 = vpop.f32.mrb[0].mxu0
  %v159 = vadd.f32 %v50, %v158
  %160 = vmatprep.mubr.f32.mxu0 0.0
  %161 = vmatmul.mubr.f32.gmra.mrb[0].mxu0 %v64
  %v162 = vpop.f32.mrb[0].mxu0
  %v163 = vadd.f32 %v46, %v162
  %v164 = vpop.f32.mrb[0].mxu0
  %v165 = vadd.f32 %v50, %v164
  %166 = vmatprep.mubr.f32.mxu0 0.0
  %167 = vmatmul.mubr.f32.gmra.mrb[0].mxu0 %v67
  %v168 = vpop.f32.mrb[0].mxu0
  %v169 = vadd.f32 %v46, %v168
  %v170 = vpop.f32.mrb[0].mxu0
  %v171 = vadd.f32 %v50, %v170
  %172 = vmatprep.mubr.f32.mxu0 0.0
  %173 = vmatmul.mubr.f32.gmra.mrb[0].mxu0 %v70
  %v174 = vpop.f32.mrb[0].mxu0
  %v175 = vadd.f32 %v46, %v174
  %v176 = vpop.f32.mrb[0].mxu0
  %v177 = vadd.f32 %v50, %v176
  %178 = vmatprep.mubr.f32.mxu0 0.0
  %179 = vmatmul.mubr.f32.gmra.mrb[0].mxu0 %v73
  %v180 = vpop.f32.mrb[0].mxu0
  %v181 = vadd.f32 %v46, %v180
  %v182 = vpop.f32.mrb[0].mxu0
  %v183 = vadd.f32 %v50, %v182
  %184 = vmatprep.mubr.f32.mxu0 0.0
  %185 = vmatmul.mubr.f32.gmra.mrb[0].mxu0 %v76
  %v186 = vpop.f32.mrb[0].mxu0
  %v187 = vadd.f32 %v46, %v186
  %v188 = vpop.f32.mrb[0].mxu0
  %v189 = vadd.f32 %v50, %v188
  %190 = vdwg.mxu0
  %191 = vst [vmem:[#allocation2] sm:$0xff] %v145
  %192 = vst [vmem:[#allocation2 + $0x8] sm:$0xff] %v147
  %193 = vst [vmem:[#allocation2 + $0x10] sm:$0xff] %v151
  %194 = vst [vmem:[#allocation2 + $0x18] sm:$0xff] %v153
  %195 = vst [vmem:[#allocation2 + $0x20] sm:$0xff] %v157
  %196 = vst [vmem:[#allocation2 + $0x28] sm:$0xff] %v159
  %197 = vst [vmem:[#allocation2 + $0x30] sm:$0xff] %v163
  %198 = vst [vmem:[#allocation2 + $0x38] sm:$0xff] %v165
  %199 = vst [vmem:[#allocation2 + $0x40] sm:$0xff] %v169
  %200 = vst [vmem:[#allocation2 + $0x48] sm:$0xff] %v171
  %201 = vst [vmem:[#allocation2 + $0x50] sm:$0xff] %v175
  %202 = vst [vmem:[#allocation2 + $0x58] sm:$0xff] %v177
  %203 = vst [vmem:[#allocation2 + $0x60] sm:$0xff] %v181
  %204 = vst [vmem:[#allocation2 + $0x68] sm:$0xff] %v183
  %205 = vst [vmem:[#allocation2 + $0x70] sm:$0xff] %v187
  %206 = vst [vmem:[#allocation2 + $0x78] sm:$0xff] %v189
  %v207 = vld [vmem:[%s2] sm:$0xff]
  %v208 = vld [vmem:[%s2 + $0x8] sm:$0xff]
  %v209 = vld [vmem:[%s2 + $0x10] sm:$0xff]
  %v210 = vld [vmem:[%s2 + $0x18] sm:$0xff]
  %v211 = vld [vmem:[%s2 + $0x20] sm:$0xff]
  %v212 = vld [vmem:[%s2 + $0x28] sm:$0xff]
  %v213 = vld [vmem:[%s2 + $0x30] sm:$0xff]
  %v214 = vld [vmem:[%s2 + $0x38] sm:$0xff]
  %v215 = vld [vmem:[%s2 + $0x40] sm:$0xff]
  %v216 = vld [vmem:[%s2 + $0x48] sm:$0xff]
  %v217 = vld [vmem:[%s2 + $0x50] sm:$0xff]
  %v218 = vld [vmem:[%s2 + $0x58] sm:$0xff]
  %v219 = vld [vmem:[%s2 + $0x60] sm:$0xff]
  %v220 = vld [vmem:[%s2 + $0x68] sm:$0xff]
  %v221 = vld [vmem:[%s2 + $0x70] sm:$0xff]
  %v222 = vld [vmem:[%s2 + $0x78] sm:$0xff]
  %v224 = vsel %vm53, 0.0, 0
  %226 = vmatprep.subr.mxu0 %v208
  %227 = vmatpush1.msra.mxu0 %v207
  %228 = vmatprep.subr.mxu0 %v210
  %229 = vmatpush1.msra.mxu0 %v209
  %230 = vmatprep.subr.mxu0 %v212
  %231 = vmatpush1.msra.mxu0 %v211
  %232 = vmatprep.subr.mxu0 %v214
  %233 = vmatpush1.msra.mxu0 %v213
  %234 = vmatprep.subr.mxu0 %v216
  %235 = vmatpush1.msra.mxu0 %v215
  %236 = vmatprep.subr.mxu0 %v218
  %237 = vmatpush1.msra.mxu0 %v217
  %238 = vmatprep.subr.mxu0 %v220
  %239 = vmatpush1.msra.mxu0 %v219
  %240 = vmatprep.subr.mxu0 %v222
  %241 = vmatpush1.msra.mxu0 %v221
  %242 = vmatprep.subr.mxu0 0.0
  %243 = vmatpush1.msra.mxu0 0.0
  %244 = vmatprep.subr.mxu0 0.0
  %245 = vmatpush1.msra.mxu0 0.0
  %246 = vmatprep.subr.mxu0 0.0
  %247 = vmatpush1.msra.mxu0 0.0
  %248 = vmatprep.subr.mxu0 0.0
  %249 = vmatpush1.msra.mxu0 0.0
  %250 = vmatprep.subr.mxu0 0.0
  %251 = vmatpush1.msra.mxu0 0.0
  %252 = vmatprep.subr.mxu0 0.0
  %253 = vmatpush1.msra.mxu0 0.0
  %254 = vmatprep.subr.mxu0 0.0
  %255 = vmatpush1.msra.mxu0 0.0
  %256 = vmatprep.subr.mxu0 0.0
  %257 = vmatpush1.msra.mxu0 0.0
  %258 = vmatprep.subr.mxu0 0.0
  %259 = vmatpush1.msra.mxu0 0.0
  %260 = vmatprep.subr.mxu0 0.0
  %261 = vmatpush1.msra.mxu0 0.0
  %262 = vmatprep.subr.mxu0 0.0
  %263 = vmatpush1.msra.mxu0 0.0
  %264 = vmatprep.subr.mxu0 0.0
  %265 = vmatpush1.msra.mxu0 0.0
  %266 = vmatprep.subr.mxu0 0.0
  %267 = vmatpush1.msra.mxu0 0.0
  %268 = vmatprep.subr.mxu0 0.0
  %269 = vmatpush1.msra.mxu0 0.0
  %270 = vmatprep.subr.mxu0 0.0
  %271 = vmatpush1.msra.mxu0 0.0
  %272 = vmatprep.subr.mxu0 0.0
  %273 = vmatpush1.msra.mxu0 0.0
  %274 = vmatprep.subr.mxu0 0.0
  %275 = vmatpush1.msra.mxu0 0.0
  %276 = vmatprep.subr.mxu0 0.0
  %277 = vmatpush1.msra.mxu0 0.0
  %278 = vmatprep.subr.mxu0 0.0
  %279 = vmatpush1.msra.mxu0 0.0
  %280 = vmatprep.subr.mxu0 0.0
  %281 = vmatpush1.msra.mxu0 0.0
  %282 = vmatprep.subr.mxu0 0.0
  %283 = vmatpush1.msra.mxu0 0.0
  %284 = vmatprep.subr.mxu0 0.0
  %285 = vmatpush1.msra.mxu0 0.0
  %286 = vmatprep.subr.mxu0 0.0
  %287 = vmatpush1.msra.mxu0 0.0
  %288 = vmatprep.subr.mxu0 0.0
  %289 = vmatpush1.msra.mxu0 0.0
  %290 = vmatprep.mubr.f32.mxu0 0.0
  %291 = vmatmul.mubr.f32.gmra.mrb[0].mxu0 %v224
  %v292 = vpop.f32.mrb[0].mxu0
  %v293 = vadd.f32 0.0, %v292
  %v294 = vpop.f32.mrb[0].mxu0
  %v295 = vadd.f32 0.0, %v294
  %296 = vdwg.mxu0
  %s297 = smul.u32 0, 2
  %s298 = smul.addr %s297, 8
  %s299 = scalar_lea.vmem [#allocation2], %s298
  %v300 = vld [vmem:[%s299] sm:$0xff]
  %s301 = smul.u32 7, 2
  %s302 = smul.addr %s301, 8
  %s303 = scalar_lea.vmem [#allocation2], %s302
  %v304 = vld [vmem:[%s303 + $0x8] sm:$0xff]
  %v305 = vadd.f32 %v300, %v293
  %v306 = vxor.u32 %v305, 2147483648
  %v307 = vmul.f32 %v306, 1.442695
  %v308 = vpow.pop %v307
  %v309 = vadd.f32 %v308, 1.0
  %v310 = vrcp.pop %v309
  %v311 = vmul.f32 1.0, %v310
  %v312 = vtanh.pop %v305
  %v313 = vmul.f32 %v311, 0.0
  %315 = vrot.lane.b32.xlu0 %v312, 32
  %v316 = vpop.permute.xlu0 %315
  %v318 = vmul.f32 %v311, %v316
  %320 = vrot.lane.b32.xlu0 %v318, 32
  %v321 = vpop.permute.xlu0 %320
  %v323 = vadd.f32 %v313, %v321
  %v324 = vtanh.pop %v323
  %326 = vrot.lane.b32.xlu0 %v324, 32
  %v327 = vpop.permute.xlu0 %326
  %v329 = vmul.f32 %v311, %v327
  %v330 = vadd.f32 %v304, %v295
  %v331 = vxor.u32 %v330, 2147483648
  %v332 = vmul.f32 %v331, 1.442695
  %v333 = vpow.pop %v332
  %v334 = vadd.f32 %v333, 1.0
  %v335 = vrcp.pop %v334
  %v336 = vmul.f32 1.0, %v335
  %v337 = vtanh.pop %v330
  %v338 = vmul.f32 %v336, 0.0
  %340 = vrot.lane.b32.xlu0 %v337, 32
  %v341 = vpop.permute.xlu0 %340
  %v343 = vmul.f32 %v336, %v341
  %345 = vrot.lane.b32.xlu0 %v343, 32
  %v346 = vpop.permute.xlu0 %345
  %v348 = vadd.f32 %v338, %v346
  %v349 = vtanh.pop %v348
  %351 = vrot.lane.b32.xlu0 %v349, 32
  %v352 = vpop.permute.xlu0 %351
  %v354 = vmul.f32 %v336, %v352
  %356 = vrot.lane.b32.xlu0 %v329, 64
  %v357 = vpop.permute.xlu0 %356
  %vm359 = vcmask 261120
  %360 = vst.msk [vmem:[%s4] sm:$0xff] %vm359, %v357
  %362 = vrot.lane.b32.xlu0 %v354, 96
  %v363 = vpop.permute.xlu0 %362
  %s365 = scalar_lea.vmem %s4, 56
  %vm366 = vcmask 523520
  %367 = vst.msk [vmem:[%s365] sm:$0xff] %vm366, %v363
  %v368 = vsel %vm359, %v357, %v363
  %v369 = vld [vmem:[%s2] sm:$0xff]
  %v370 = vld [vmem:[%s2 + $0x8] sm:$0xff]
  %v371 = vld [vmem:[%s2 + $0x10] sm:$0xff]
  %v372 = vld [vmem:[%s2 + $0x18] sm:$0xff]
  %v373 = vld [vmem:[%s2 + $0x20] sm:$0xff]
  %v374 = vld [vmem:[%s2 + $0x28] sm:$0xff]
  %v375 = vld [vmem:[%s2 + $0x30] sm:$0xff]
  %v376 = vld [vmem:[%s2 + $0x38] sm:$0xff]
  %v377 = vld [vmem:[%s2 + $0x40] sm:$0xff]
  %v378 = vld [vmem:[%s2 + $0x48] sm:$0xff]
  %v379 = vld [vmem:[%s2 + $0x50] sm:$0xff]
  %v380 = vld [vmem:[%s2 + $0x58] sm:$0xff]
  %v381 = vld [vmem:[%s2 + $0x60] sm:$0xff]
  %v382 = vld [vmem:[%s2 + $0x68] sm:$0xff]
  %v383 = vld [vmem:[%s2 + $0x70] sm:$0xff]
  %v384 = vld [vmem:[%s2 + $0x78] sm:$0xff]
  %v386 = vsel %vm53, %v368, 0
  %388 = vmatprep.subr.mxu0 %v370
  %389 = vmatpush1.msra.mxu0 %v369
  %390 = vmatprep.subr.mxu0 %v372
  %391 = vmatpush1.msra.mxu0 %v371
  %392 = vmatprep.subr.mxu0 %v374
  %393 = vmatpush1.msra.mxu0 %v373
  %394 = vmatprep.subr.mxu0 %v376
  %395 = vmatpush1.msra.mxu0 %v375
  %396 = vmatprep.subr.mxu0 %v378
  %397 = vmatpush1.msra.mxu0 %v377
  %398 = vmatprep.subr.mxu0 %v380
  %399 = vmatpush1.msra.mxu0 %v379
  %400 = vmatprep.subr.mxu0 %v382
  %401 = vmatpush1.msra.mxu0 %v381
  %402 = vmatprep.subr.mxu0 %v384
  %403 = vmatpush1.msra.mxu0 %v383
  %404 = vmatprep.subr.mxu0 0.0
  %405 = vmatpush1.msra.mxu0 0.0
  %406 = vmatprep.subr.mxu0 0.0
  %407 = vmatpush1.msra.mxu0 0.0
  %408 = vmatprep.subr.mxu0 0.0
  %409 = vmatpush1.msra.mxu0 0.0
  %410 = vmatprep.subr.mxu0 0.0
  %411 = vmatpush1.msra.mxu0 0.0
  %412 = vmatprep.subr.mxu0 0.0
  %413 = vmatpush1.msra.mxu0 0.0
  %414 = vmatprep.subr.mxu0 0.0
  %415 = vmatpush1.msra.mxu0 0.0
  %416 = vmatprep.subr.mxu0 0.0
  %417 = vmatpush1.msra.mxu0 0.0
  %418 = vmatprep.subr.mxu0 0.0
  %419 = vmatpush1.msra.mxu0 0.0
  %420 = vmatprep.subr.mxu0 0.0
  %421 = vmatpush1.msra.mxu0 0.0
  %422 = vmatprep.subr.mxu0 0.0
  %423 = vmatpush1.msra.mxu0 0.0
  %424 = vmatprep.subr.mxu0 0.0
  %425 = vmatpush1.msra.mxu0 0.0
  %426 = vmatprep.subr.mxu0 0.0
  %427 = vmatpush1.msra.mxu0 0.0
  %428 = vmatprep.subr.mxu0 0.0
  %429 = vmatpush1.msra.mxu0 0.0
  %430 = vmatprep.subr.mxu0 0.0
  %431 = vmatpush1.msra.mxu0 0.0
  %432 = vmatprep.subr.mxu0 0.0
  %433 = vmatpush1.msra.mxu0 0.0
  %434 = vmatprep.subr.mxu0 0.0
  %435 = vmatpush1.msra.mxu0 0.0
  %436 = vmatprep.subr.mxu0 0.0
  %437 = vmatpush1.msra.mxu0 0.0
  %438 = vmatprep.subr.mxu0 0.0
  %439 = vmatpush1.msra.mxu0 0.0
  %440 = vmatprep.subr.mxu0 0.0
  %441 = vmatpush1.msra.mxu0 0.0
  %442 = vmatprep.subr.mxu0 0.0
  %443 = vmatpush1.msra.mxu0 0.0
  %444 = vmatprep.subr.mxu0 0.0
  %445 = vmatpush1.msra.mxu0 0.0
  %446 = vmatprep.subr.mxu0 0.0
  %447 = vmatpush1.msra.mxu0 0.0
  %448 = vmatprep.subr.mxu0 0.0
  %449 = vmatpush1.msra.mxu0 0.0
  %450 = vmatprep.subr.mxu0 0.0
  %451 = vmatpush1.msra.mxu0 0.0
  %452 = vmatprep.mubr.f32.mxu0 0.0
  %453 = vmatmul.mubr.f32.gmra.mrb[0].mxu0 %v386
  %v454 = vpop.f32.mrb[0].mxu0
  %v455 = vadd.f32 0.0, %v454
  %v456 = vpop.f32.mrb[0].mxu0
  %v457 = vadd.f32 0.0, %v456
  %458 = vdwg.mxu0
  %s459 = smul.u32 1, 2
  %s460 = smul.addr %s459, 8
  %s461 = scalar_lea.vmem [#allocation2], %s460
  %v462 = vld [vmem:[%s461] sm:$0xff]
  %s463 = smul.u32 6, 2
  %s464 = smul.addr %s463, 8
  %s465 = scalar_lea.vmem [#allocation2], %s464
  %v466 = vld [vmem:[%s465 + $0x8] sm:$0xff]
  %v467 = vadd.f32 %v462, %v455
  %v468 = vxor.u32 %v467, 2147483648
  %v469 = vmul.f32 %v468, 1.442695
  %v470 = vpow.pop %v469
  %v471 = vadd.f32 %v470, 1.0
  %v472 = vrcp.pop %v471
  %v473 = vmul.f32 1.0, %v472
  %v474 = vtanh.pop %v467
  %v475 = vmul.f32 %v473, %v323
  %477 = vrot.lane.b32.xlu0 %v474, 32
  %v478 = vpop.permute.xlu0 %477
  %v480 = vmul.f32 %v473, %v478
  %482 = vrot.lane.b32.xlu0 %v480, 32
  %v483 = vpop.permute.xlu0 %482
  %v485 = vadd.f32 %v475, %v483
  %v486 = vtanh.pop %v485
  %488 = vrot.lane.b32.xlu0 %v486, 32
  %v489 = vpop.permute.xlu0 %488
  %v491 = vmul.f32 %v473, %v489
  %v492 = vadd.f32 %v466, %v457
  %v493 = vxor.u32 %v492, 2147483648
  %v494 = vmul.f32 %v493, 1.442695
  %v495 = vpow.pop %v494
  %v496 = vadd.f32 %v495, 1.0
  %v497 = vrcp.pop %v496
  %v498 = vmul.f32 1.0, %v497
  %v499 = vtanh.pop %v492
  %v500 = vmul.f32 %v498, %v348
  %502 = vrot.lane.b32.xlu0 %v499, 32
  %v503 = vpop.permute.xlu0 %502
  %v505 = vmul.f32 %v498, %v503
  %507 = vrot.lane.b32.xlu0 %v505, 32
  %v508 = vpop.permute.xlu0 %507
  %v510 = vadd.f32 %v500, %v508
  %v511 = vtanh.pop %v510
  %513 = vrot.lane.b32.xlu0 %v511, 32
  %v514 = vpop.permute.xlu0 %513
  %v516 = vmul.f32 %v498, %v514
  %518 = vrot.lane.b32.xlu0 %v491, 64
  %v519 = vpop.permute.xlu0 %518
  %s521 = scalar_lea.vmem %s4, 8
  %522 = vst.msk [vmem:[%s521] sm:$0xff] %vm359, %v519
  %524 = vrot.lane.b32.xlu0 %v516, 96
  %v525 = vpop.permute.xlu0 %524
  %s527 = scalar_lea.vmem %s4, 48
  %528 = vst.msk [vmem:[%s527] sm:$0xff] %vm366, %v525
  %v529 = vsel %vm359, %v519, %v525
  %v530 = vld [vmem:[%s2] sm:$0xff]
  %v531 = vld [vmem:[%s2 + $0x8] sm:$0xff]
  %v532 = vld [vmem:[%s2 + $0x10] sm:$0xff]
  %v533 = vld [vmem:[%s2 + $0x18] sm:$0xff]
  %v534 = vld [vmem:[%s2 + $0x20] sm:$0xff]
  %v535 = vld [vmem:[%s2 + $0x28] sm:$0xff]
  %v536 = vld [vmem:[%s2 + $0x30] sm:$0xff]
  %v537 = vld [vmem:[%s2 + $0x38] sm:$0xff]
  %v538 = vld [vmem:[%s2 + $0x40] sm:$0xff]
  %v539 = vld [vmem:[%s2 + $0x48] sm:$0xff]
  %v540 = vld [vmem:[%s2 + $0x50] sm:$0xff]
  %v541 = vld [vmem:[%s2 + $0x58] sm:$0xff]
  %v542 = vld [vmem:[%s2 + $0x60] sm:$0xff]
  %v543 = vld [vmem:[%s2 + $0x68] sm:$0xff]
  %v544 = vld [vmem:[%s2 + $0x70] sm:$0xff]
  %v545 = vld [vmem:[%s2 + $0x78] sm:$0xff]
  %v547 = vsel %vm53, %v529, 0
  %549 = vmatprep.subr.mxu0 %v531
  %550 = vmatpush1.msra.mxu0 %v530
  %551 = vmatprep.subr.mxu0 %v533
  %552 = vmatpush1.msra.mxu0 %v532
  %553 = vmatprep.subr.mxu0 %v535
  %554 = vmatpush1.msra.mxu0 %v534
  %555 = vmatprep.subr.mxu0 %v537
  %556 = vmatpush1.msra.mxu0 %v536
  %557 = vmatprep.subr.mxu0 %v539
  %558 = vmatpush1.msra.mxu0 %v538
  %559 = vmatprep.subr.mxu0 %v541
  %560 = vmatpush1.msra.mxu0 %v540
  %561 = vmatprep.subr.mxu0 %v543
  %562 = vmatpush1.msra.mxu0 %v542
  %563 = vmatprep.subr.mxu0 %v545
  %564 = vmatpush1.msra.mxu0 %v544
  %565 = vmatprep.subr.mxu0 0.0
  %566 = vmatpush1.msra.mxu0 0.0
  %567 = vmatprep.subr.mxu0 0.0
  %568 = vmatpush1.msra.mxu0 0.0
  %569 = vmatprep.subr.mxu0 0.0
  %570 = vmatpush1.msra.mxu0 0.0
  %571 = vmatprep.subr.mxu0 0.0
  %572 = vmatpush1.msra.mxu0 0.0
  %573 = vmatprep.subr.mxu0 0.0
  %574 = vmatpush1.msra.mxu0 0.0
  %575 = vmatprep.subr.mxu0 0.0
  %576 = vmatpush1.msra.mxu0 0.0
  %577 = vmatprep.subr.mxu0 0.0
  %578 = vmatpush1.msra.mxu0 0.0
  %579 = vmatprep.subr.mxu0 0.0
  %580 = vmatpush1.msra.mxu0 0.0
  %581 = vmatprep.subr.mxu0 0.0
  %582 = vmatpush1.msra.mxu0 0.0
  %583 = vmatprep.subr.mxu0 0.0
  %584 = vmatpush1.msra.mxu0 0.0
  %585 = vmatprep.subr.mxu0 0.0
  %586 = vmatpush1.msra.mxu0 0.0
  %587 = vmatprep.subr.mxu0 0.0
  %588 = vmatpush1.msra.mxu0 0.0
  %589 = vmatprep.subr.mxu0 0.0
  %590 = vmatpush1.msra.mxu0 0.0
  %591 = vmatprep.subr.mxu0 0.0
  %592 = vmatpush1.msra.mxu0 0.0
  %593 = vmatprep.subr.mxu0 0.0
  %594 = vmatpush1.msra.mxu0 0.0
  %595 = vmatprep.subr.mxu0 0.0
  %596 = vmatpush1.msra.mxu0 0.0
  %597 = vmatprep.subr.mxu0 0.0
  %598 = vmatpush1.msra.mxu0 0.0
  %599 = vmatprep.subr.mxu0 0.0
  %600 = vmatpush1.msra.mxu0 0.0
  %601 = vmatprep.subr.mxu0 0.0
  %602 = vmatpush1.msra.mxu0 0.0
  %603 = vmatprep.subr.mxu0 0.0
  %604 = vmatpush1.msra.mxu0 0.0
  %605 = vmatprep.subr.mxu0 0.0
  %606 = vmatpush1.msra.mxu0 0.0
  %607 = vmatprep.subr.mxu0 0.0
  %608 = vmatpush1.msra.mxu0 0.0
  %609 = vmatprep.subr.mxu0 0.0
  %610 = vmatpush1.msra.mxu0 0.0
  %611 = vmatprep.subr.mxu0 0.0
  %612 = vmatpush1.msra.mxu0 0.0
  %613 = vmatprep.mubr.f32.mxu0 0.0
  %614 = vmatmul.mubr.f32.gmra.mrb[0].mxu0 %v547
  %v615 = vpop.f32.mrb[0].mxu0
  %v616 = vadd.f32 0.0, %v615
  %v617 = vpop.f32.mrb[0].mxu0
  %v618 = vadd.f32 0.0, %v617
  %619 = vdwg.mxu0
  %s620 = smul.u32 2, 2
  %s621 = smul.addr %s620, 8
  %s622 = scalar_lea.vmem [#allocation2], %s621
  %v623 = vld [vmem:[%s622] sm:$0xff]
  %s624 = smul.u32 5, 2
  %s625 = smul.addr %s624, 8
  %s626 = scalar_lea.vmem [#allocation2], %s625
  %v627 = vld [vmem:[%s626 + $0x8] sm:$0xff]
  %v628 = vadd.f32 %v623, %v616
  %v629 = vxor.u32 %v628, 2147483648
  %v630 = vmul.f32 %v629, 1.442695
  %v631 = vpow.pop %v630
  %v632 = vadd.f32 %v631, 1.0
  %v633 = vrcp.pop %v632
  %v634 = vmul.f32 1.0, %v633
  %v635 = vtanh.pop %v628
  %v636 = vmul.f32 %v634, %v485
  %638 = vrot.lane.b32.xlu0 %v635, 32
  %v639 = vpop.permute.xlu0 %638
  %v641 = vmul.f32 %v634, %v639
  %643 = vrot.lane.b32.xlu0 %v641, 32
  %v644 = vpop.permute.xlu0 %643
  %v646 = vadd.f32 %v636, %v644
  %v647 = vtanh.pop %v646
  %649 = vrot.lane.b32.xlu0 %v647, 32
  %v650 = vpop.permute.xlu0 %649
  %v652 = vmul.f32 %v634, %v650
  %v653 = vadd.f32 %v627, %v618
  %v654 = vxor.u32 %v653, 2147483648
  %v655 = vmul.f32 %v654, 1.442695
  %v656 = vpow.pop %v655
  %v657 = vadd.f32 %v656, 1.0
  %v658 = vrcp.pop %v657
  %v659 = vmul.f32 1.0, %v658
  %v660 = vtanh.pop %v653
  %v661 = vmul.f32 %v659, %v510
  %663 = vrot.lane.b32.xlu0 %v660, 32
  %v664 = vpop.permute.xlu0 %663
  %v666 = vmul.f32 %v659, %v664
  %668 = vrot.lane.b32.xlu0 %v666, 32
  %v669 = vpop.permute.xlu0 %668
  %v671 = vadd.f32 %v661, %v669
  %v672 = vtanh.pop %v671
  %674 = vrot.lane.b32.xlu0 %v672, 32
  %v675 = vpop.permute.xlu0 %674
  %v677 = vmul.f32 %v659, %v675
  %679 = vrot.lane.b32.xlu0 %v652, 64
  %v680 = vpop.permute.xlu0 %679
  %s682 = scalar_lea.vmem %s4, 16
  %683 = vst.msk [vmem:[%s682] sm:$0xff] %vm359, %v680
  %685 = vrot.lane.b32.xlu0 %v677, 96
  %v686 = vpop.permute.xlu0 %685
  %s688 = scalar_lea.vmem %s4, 40
  %689 = vst.msk [vmem:[%s688] sm:$0xff] %vm366, %v686
  %v690 = vsel %vm359, %v680, %v686
  %v691 = vld [vmem:[%s2] sm:$0xff]
  %v692 = vld [vmem:[%s2 + $0x8] sm:$0xff]
  %v693 = vld [vmem:[%s2 + $0x10] sm:$0xff]
  %v694 = vld [vmem:[%s2 + $0x18] sm:$0xff]
  %v695 = vld [vmem:[%s2 + $0x20] sm:$0xff]
  %v696 = vld [vmem:[%s2 + $0x28] sm:$0xff]
  %v697 = vld [vmem:[%s2 + $0x30] sm:$0xff]
  %v698 = vld [vmem:[%s2 + $0x38] sm:$0xff]
  %v699 = vld [vmem:[%s2 + $0x40] sm:$0xff]
  %v700 = vld [vmem:[%s2 + $0x48] sm:$0xff]
  %v701 = vld [vmem:[%s2 + $0x50] sm:$0xff]
  %v702 = vld [vmem:[%s2 + $0x58] sm:$0xff]
  %v703 = vld [vmem:[%s2 + $0x60] sm:$0xff]
  %v704 = vld [vmem:[%s2 + $0x68] sm:$0xff]
  %v705 = vld [vmem:[%s2 + $0x70] sm:$0xff]
  %v706 = vld [vmem:[%s2 + $0x78] sm:$0xff]
  %v708 = vsel %vm53, %v690, 0
  %710 = vmatprep.subr.mxu0 %v692
  %711 = vmatpush1.msra.mxu0 %v691
  %712 = vmatprep.subr.mxu0 %v694
  %713 = vmatpush1.msra.mxu0 %v693
  %714 = vmatprep.subr.mxu0 %v696
  %715 = vmatpush1.msra.mxu0 %v695
  %716 = vmatprep.subr.mxu0 %v698
  %717 = vmatpush1.msra.mxu0 %v697
  %718 = vmatprep.subr.mxu0 %v700
  %719 = vmatpush1.msra.mxu0 %v699
  %720 = vmatprep.subr.mxu0 %v702
  %721 = vmatpush1.msra.mxu0 %v701
  %722 = vmatprep.subr.mxu0 %v704
  %723 = vmatpush1.msra.mxu0 %v703
  %724 = vmatprep.subr.mxu0 %v706
  %725 = vmatpush1.msra.mxu0 %v705
  %726 = vmatprep.subr.mxu0 0.0
  %727 = vmatpush1.msra.mxu0 0.0
  %728 = vmatprep.subr.mxu0 0.0
  %729 = vmatpush1.msra.mxu0 0.0
  %730 = vmatprep.subr.mxu0 0.0
  %731 = vmatpush1.msra.mxu0 0.0
  %732 = vmatprep.subr.mxu0 0.0
  %733 = vmatpush1.msra.mxu0 0.0
  %734 = vmatprep.subr.mxu0 0.0
  %735 = vmatpush1.msra.mxu0 0.0
  %736 = vmatprep.subr.mxu0 0.0
  %737 = vmatpush1.msra.mxu0 0.0
  %738 = vmatprep.subr.mxu0 0.0
  %739 = vmatpush1.msra.mxu0 0.0
  %740 = vmatprep.subr.mxu0 0.0
  %741 = vmatpush1.msra.mxu0 0.0
  %742 = vmatprep.subr.mxu0 0.0
  %743 = vmatpush1.msra.mxu0 0.0
  %744 = vmatprep.subr.mxu0 0.0
  %745 = vmatpush1.msra.mxu0 0.0
  %746 = vmatprep.subr.mxu0 0.0
  %747 = vmatpush1.msra.mxu0 0.0
  %748 = vmatprep.subr.mxu0 0.0
  %749 = vmatpush1.msra.mxu0 0.0
  %750 = vmatprep.subr.mxu0 0.0
  %751 = vmatpush1.msra.mxu0 0.0
  %752 = vmatprep.subr.mxu0 0.0
  %753 = vmatpush1.msra.mxu0 0.0
  %754 = vmatprep.subr.mxu0 0.0
  %755 = vmatpush1.msra.mxu0 0.0
  %756 = vmatprep.subr.mxu0 0.0
  %757 = vmatpush1.msra.mxu0 0.0
  %758 = vmatprep.subr.mxu0 0.0
  %759 = vmatpush1.msra.mxu0 0.0
  %760 = vmatprep.subr.mxu0 0.0
  %761 = vmatpush1.msra.mxu0 0.0
  %762 = vmatprep.subr.mxu0 0.0
  %763 = vmatpush1.msra.mxu0 0.0
  %764 = vmatprep.subr.mxu0 0.0
  %765 = vmatpush1.msra.mxu0 0.0
  %766 = vmatprep.subr.mxu0 0.0
  %767 = vmatpush1.msra.mxu0 0.0
  %768 = vmatprep.subr.mxu0 0.0
  %769 = vmatpush1.msra.mxu0 0.0
  %770 = vmatprep.subr.mxu0 0.0
  %771 = vmatpush1.msra.mxu0 0.0
  %772 = vmatprep.subr.mxu0 0.0
  %773 = vmatpush1.msra.mxu0 0.0
  %774 = vmatprep.mubr.f32.mxu0 0.0
  %775 = vmatmul.mubr.f32.gmra.mrb[0].mxu0 %v708
  %v776 = vpop.f32.mrb[0].mxu0
  %v777 = vadd.f32 0.0, %v776
  %v778 = vpop.f32.mrb[0].mxu0
  %v779 = vadd.f32 0.0, %v778
  %780 = vdwg.mxu0
  %s781 = smul.u32 3, 2
  %s782 = smul.addr %s781, 8
  %s783 = scalar_lea.vmem [#allocation2], %s782
  %v784 = vld [vmem:[%s783] sm:$0xff]
  %s785 = smul.u32 4, 2
  %s786 = smul.addr %s785, 8
  %s787 = scalar_lea.vmem [#allocation2], %s786
  %v788 = vld [vmem:[%s787 + $0x8] sm:$0xff]
  %v789 = vadd.f32 %v784, %v777
  %v790 = vxor.u32 %v789, 2147483648
  %v791 = vmul.f32 %v790, 1.442695
  %v792 = vpow.pop %v791
  %v793 = vadd.f32 %v792, 1.0
  %v794 = vrcp.pop %v793
  %v795 = vmul.f32 1.0, %v794
  %v796 = vtanh.pop %v789
  %v797 = vmul.f32 %v795, %v646
  %799 = vrot.lane.b32.xlu0 %v796, 32
  %v800 = vpop.permute.xlu0 %799
  %v802 = vmul.f32 %v795, %v800
  %804 = vrot.lane.b32.xlu0 %v802, 32
  %v805 = vpop.permute.xlu0 %804
  %v807 = vadd.f32 %v797, %v805
  %v808 = vtanh.pop %v807
  %810 = vrot.lane.b32.xlu0 %v808, 32
  %v811 = vpop.permute.xlu0 %810
  %v813 = vmul.f32 %v795, %v811
  %v814 = vadd.f32 %v788, %v779
  %v815 = vxor.u32 %v814, 2147483648
  %v816 = vmul.f32 %v815, 1.442695
  %v817 = vpow.pop %v816
  %v818 = vadd.f32 %v817, 1.0
  %v819 = vrcp.pop %v818
  %v820 = vmul.f32 1.0, %v819
  %v821 = vtanh.pop %v814
  %v822 = vmul.f32 %v820, %v671
  %824 = vrot.lane.b32.xlu0 %v821, 32
  %v825 = vpop.permute.xlu0 %824
  %v827 = vmul.f32 %v820, %v825
  %829 = vrot.lane.b32.xlu0 %v827, 32
  %v830 = vpop.permute.xlu0 %829
  %v832 = vadd.f32 %v822, %v830
  %v833 = vtanh.pop %v832
  %835 = vrot.lane.b32.xlu0 %v833, 32
  %v836 = vpop.permute.xlu0 %835
  %v838 = vmul.f32 %v820, %v836
  %840 = vrot.lane.b32.xlu0 %v813, 64
  %v841 = vpop.permute.xlu0 %840
  %s843 = scalar_lea.vmem %s4, 24
  %844 = vst.msk [vmem:[%s843] sm:$0xff] %vm359, %v841
  %846 = vrot.lane.b32.xlu0 %v838, 96
  %v847 = vpop.permute.xlu0 %846
  %s849 = scalar_lea.vmem %s4, 32
  %850 = vst.msk [vmem:[%s849] sm:$0xff] %vm366, %v847
  %v851 = vsel %vm359, %v841, %v847
  %v852 = vld [vmem:[%s2] sm:$0xff]
  %v853 = vld [vmem:[%s2 + $0x8] sm:$0xff]
  %v854 = vld [vmem:[%s2 + $0x10] sm:$0xff]
  %v855 = vld [vmem:[%s2 + $0x18] sm:$0xff]
  %v856 = vld [vmem:[%s2 + $0x20] sm:$0xff]
  %v857 = vld [vmem:[%s2 + $0x28] sm:$0xff]
  %v858 = vld [vmem:[%s2 + $0x30] sm:$0xff]
  %v859 = vld [vmem:[%s2 + $0x38] sm:$0xff]
  %v860 = vld [vmem:[%s2 + $0x40] sm:$0xff]
  %v861 = vld [vmem:[%s2 + $0x48] sm:$0xff]
  %v862 = vld [vmem:[%s2 + $0x50] sm:$0xff]
  %v863 = vld [vmem:[%s2 + $0x58] sm:$0xff]
  %v864 = vld [vmem:[%s2 + $0x60] sm:$0xff]
  %v865 = vld [vmem:[%s2 + $0x68] sm:$0xff]
  %v866 = vld [vmem:[%s2 + $0x70] sm:$0xff]
  %v867 = vld [vmem:[%s2 + $0x78] sm:$0xff]
  %v869 = vsel %vm53, %v851, 0
  %871 = vmatprep.subr.mxu0 %v853
  %872 = vmatpush1.msra.mxu0 %v852
  %873 = vmatprep.subr.mxu0 %v855
  %874 = vmatpush1.msra.mxu0 %v854
  %875 = vmatprep.subr.mxu0 %v857
  %876 = vmatpush1.msra.mxu0 %v856
  %877 = vmatprep.subr.mxu0 %v859
  %878 = vmatpush1.msra.mxu0 %v858
  %879 = vmatprep.subr.mxu0 %v861
  %880 = vmatpush1.msra.mxu0 %v860
  %881 = vmatprep.subr.mxu0 %v863
  %882 = vmatpush1.msra.mxu0 %v862
  %883 = vmatprep.subr.mxu0 %v865
  %884 = vmatpush1.msra.mxu0 %v864
  %885 = vmatprep.subr.mxu0 %v867
  %886 = vmatpush1.msra.mxu0 %v866
  %887 = vmatprep.subr.mxu0 0.0
  %888 = vmatpush1.msra.mxu0 0.0
  %889 = vmatprep.subr.mxu0 0.0
  %890 = vmatpush1.msra.mxu0 0.0
  %891 = vmatprep.subr.mxu0 0.0
  %892 = vmatpush1.msra.mxu0 0.0
  %893 = vmatprep.subr.mxu0 0.0
  %894 = vmatpush1.msra.mxu0 0.0
  %895 = vmatprep.subr.mxu0 0.0
  %896 = vmatpush1.msra.mxu0 0.0
  %897 = vmatprep.subr.mxu0 0.0
  %898 = vmatpush1.msra.mxu0 0.0
  %899 = vmatprep.subr.mxu0 0.0
  %900 = vmatpush1.msra.mxu0 0.0
  %901 = vmatprep.subr.mxu0 0.0
  %902 = vmatpush1.msra.mxu0 0.0
  %903 = vmatprep.subr.mxu0 0.0
  %904 = vmatpush1.msra.mxu0 0.0
  %905 = vmatprep.subr.mxu0 0.0
  %906 = vmatpush1.msra.mxu0 0.0
  %907 = vmatprep.subr.mxu0 0.0
  %908 = vmatpush1.msra.mxu0 0.0
  %909 = vmatprep.subr.mxu0 0.0
  %910 = vmatpush1.msra.mxu0 0.0
  %911 = vmatprep.subr.mxu0 0.0
  %912 = vmatpush1.msra.mxu0 0.0
  %913 = vmatprep.subr.mxu0 0.0
  %914 = vmatpush1.msra.mxu0 0.0
  %915 = vmatprep.subr.mxu0 0.0
  %916 = vmatpush1.msra.mxu0 0.0
  %917 = vmatprep.subr.mxu0 0.0
  %918 = vmatpush1.msra.mxu0 0.0
  %919 = vmatprep.subr.mxu0 0.0
  %920 = vmatpush1.msra.mxu0 0.0
  %921 = vmatprep.subr.mxu0 0.0
  %922 = vmatpush1.msra.mxu0 0.0
  %923 = vmatprep.subr.mxu0 0.0
  %924 = vmatpush1.msra.mxu0 0.0
  %925 = vmatprep.subr.mxu0 0.0
  %926 = vmatpush1.msra.mxu0 0.0
  %927 = vmatprep.subr.mxu0 0.0
  %928 = vmatpush1.msra.mxu0 0.0
  %929 = vmatprep.subr.mxu0 0.0
  %930 = vmatpush1.msra.mxu0 0.0
  %931 = vmatprep.subr.mxu0 0.0
  %932 = vmatpush1.msra.mxu0 0.0
  %933 = vmatprep.subr.mxu0 0.0
  %934 = vmatpush1.msra.mxu0 0.0
  %935 = vmatprep.mubr.f32.mxu0 0.0
  %936 = vmatmul.mubr.f32.gmra.mrb[0].mxu0 %v869
  %v937 = vpop.f32.mrb[0].mxu0
  %v938 = vadd.f32 0.0, %v937
  %v939 = vpop.f32.mrb[0].mxu0
  %v940 = vadd.f32 0.0, %v939
  %941 = vdwg.mxu0
  %v942 = vld [vmem:[%s787] sm:$0xff]
  %v943 = vld [vmem:[%s783 + $0x8] sm:$0xff]
  %v944 = vadd.f32 %v942, %v938
  %v945 = vxor.u32 %v944, 2147483648
  %v946 = vmul.f32 %v945, 1.442695
  %v947 = vpow.pop %v946
  %v948 = vadd.f32 %v947, 1.0
  %v949 = vrcp.pop %v948
  %v950 = vmul.f32 1.0, %v949
  %v951 = vtanh.pop %v944
  %v952 = vmul.f32 %v950, %v807
  %954 = vrot.lane.b32.xlu0 %v951, 32
  %v955 = vpop.permute.xlu0 %954
  %v957 = vmul.f32 %v950, %v955
  %959 = vrot.lane.b32.xlu0 %v957, 32
  %v960 = vpop.permute.xlu0 %959
  %v962 = vadd.f32 %v952, %v960
  %v963 = vtanh.pop %v962
  %965 = vrot.lane.b32.xlu0 %v963, 32
  %v966 = vpop.permute.xlu0 %965
  %v968 = vmul.f32 %v950, %v966
  %v969 = vadd.f32 %v943, %v940
  %v970 = vxor.u32 %v969, 2147483648
  %v971 = vmul.f32 %v970, 1.442695
  %v972 = vpow.pop %v971
  %v973 = vadd.f32 %v972, 1.0
  %v974 = vrcp.pop %v973
  %v975 = vmul.f32 1.0, %v974
  %v976 = vtanh.pop %v969
  %v977 = vmul.f32 %v975, %v832
  %979 = vrot.lane.b32.xlu0 %v976, 32
  %v980 = vpop.permute.xlu0 %979
  %v982 = vmul.f32 %v975, %v980
  %984 = vrot.lane.b32.xlu0 %v982, 32
  %v985 = vpop.permute.xlu0 %984
  %v987 = vadd.f32 %v977, %v985
  %v988 = vtanh.pop %v987
  %990 = vrot.lane.b32.xlu0 %v988, 32
  %v991 = vpop.permute.xlu0 %990
  %v993 = vmul.f32 %v975, %v991
  %995 = vrot.lane.b32.xlu0 %v968, 64
  %v996 = vpop.permute.xlu0 %995
  %998 = vst.msk [vmem:[%s849] sm:$0xff] %vm359, %v996
  %1000 = vrot.lane.b32.xlu0 %v993, 96
  %v1001 = vpop.permute.xlu0 %1000
  %1003 = vst.msk [vmem:[%s843] sm:$0xff] %vm366, %v1001
  %v1004 = vsel %vm359, %v996, %v1001
  %v1005 = vld [vmem:[%s2] sm:$0xff]
  %v1006 = vld [vmem:[%s2 + $0x8] sm:$0xff]
  %v1007 = vld [vmem:[%s2 + $0x10] sm:$0xff]
  %v1008 = vld [vmem:[%s2 + $0x18] sm:$0xff]
  %v1009 = vld [vmem:[%s2 + $0x20] sm:$0xff]
  %v1010 = vld [vmem:[%s2 + $0x28] sm:$0xff]
  %v1011 = vld [vmem:[%s2 + $0x30] sm:$0xff]
  %v1012 = vld [vmem:[%s2 + $0x38] sm:$0xff]
  %v1013 = vld [vmem:[%s2 + $0x40] sm:$0xff]
  %v1014 = vld [vmem:[%s2 + $0x48] sm:$0xff]
  %v1015 = vld [vmem:[%s2 + $0x50] sm:$0xff]
  %v1016 = vld [vmem:[%s2 + $0x58] sm:$0xff]
  %v1017 = vld [vmem:[%s2 + $0x60] sm:$0xff]
  %v1018 = vld [vmem:[%s2 + $0x68] sm:$0xff]
  %v1019 = vld [vmem:[%s2 + $0x70] sm:$0xff]
  %v1020 = vld [vmem:[%s2 + $0x78] sm:$0xff]
  %v1022 = vsel %vm53, %v1004, 0
  %1024 = vmatprep.subr.mxu0 %v1006
  %1025 = vmatpush1.msra.mxu0 %v1005
  %1026 = vmatprep.subr.mxu0 %v1008
  %1027 = vmatpush1.msra.mxu0 %v1007
  %1028 = vmatprep.subr.mxu0 %v1010
  %1029 = vmatpush1.msra.mxu0 %v1009
  %1030 = vmatprep.subr.mxu0 %v1012
  %1031 = vmatpush1.msra.mxu0 %v1011
  %1032 = vmatprep.subr.mxu0 %v1014
  %1033 = vmatpush1.msra.mxu0 %v1013
  %1034 = vmatprep.subr.mxu0 %v1016
  %1035 = vmatpush1.msra.mxu0 %v1015
  %1036 = vmatprep.subr.mxu0 %v1018
  %1037 = vmatpush1.msra.mxu0 %v1017
  %1038 = vmatprep.subr.mxu0 %v1020
  %1039 = vmatpush1.msra.mxu0 %v1019
  %1040 = vmatprep.subr.mxu0 0.0
  %1041 = vmatpush1.msra.mxu0 0.0
  %1042 = vmatprep.subr.mxu0 0.0
  %1043 = vmatpush1.msra.mxu0 0.0
  %1044 = vmatprep.subr.mxu0 0.0
  %1045 = vmatpush1.msra.mxu0 0.0
  %1046 = vmatprep.subr.mxu0 0.0
  %1047 = vmatpush1.msra.mxu0 0.0
  %1048 = vmatprep.subr.mxu0 0.0
  %1049 = vmatpush1.msra.mxu0 0.0
  %1050 = vmatprep.subr.mxu0 0.0
  %1051 = vmatpush1.msra.mxu0 0.0
  %1052 = vmatprep.subr.mxu0 0.0
  %1053 = vmatpush1.msra.mxu0 0.0
  %1054 = vmatprep.subr.mxu0 0.0
  %1055 = vmatpush1.msra.mxu0 0.0
  %1056 = vmatprep.subr.mxu0 0.0
  %1057 = vmatpush1.msra.mxu0 0.0
  %1058 = vmatprep.subr.mxu0 0.0
  %1059 = vmatpush1.msra.mxu0 0.0
  %1060 = vmatprep.subr.mxu0 0.0
  %1061 = vmatpush1.msra.mxu0 0.0
  %1062 = vmatprep.subr.mxu0 0.0
  %1063 = vmatpush1.msra.mxu0 0.0
  %1064 = vmatprep.subr.mxu0 0.0
  %1065 = vmatpush1.msra.mxu0 0.0
  %1066 = vmatprep.subr.mxu0 0.0
  %1067 = vmatpush1.msra.mxu0 0.0
  %1068 = vmatprep.subr.mxu0 0.0
  %1069 = vmatpush1.msra.mxu0 0.0
  %1070 = vmatprep.subr.mxu0 0.0
  %1071 = vmatpush1.msra.mxu0 0.0
  %1072 = vmatprep.subr.mxu0 0.0
  %1073 = vmatpush1.msra.mxu0 0.0
  %1074 = vmatprep.subr.mxu0 0.0
  %1075 = vmatpush1.msra.mxu0 0.0
  %1076 = vmatprep.subr.mxu0 0.0
  %1077 = vmatpush1.msra.mxu0 0.0
  %1078 = vmatprep.subr.mxu0 0.0
  %1079 = vmatpush1.msra.mxu0 0.0
  %1080 = vmatprep.subr.mxu0 0.0
  %1081 = vmatpush1.msra.mxu0 0.0
  %1082 = vmatprep.subr.mxu0 0.0
  %1083 = vmatpush1.msra.mxu0 0.0
  %1084 = vmatprep.subr.mxu0 0.0
  %1085 = vmatpush1.msra.mxu0 0.0
  %1086 = vmatprep.subr.mxu0 0.0
  %1087 = vmatpush1.msra.mxu0 0.0
  %1088 = vmatprep.mubr.f32.mxu0 0.0
  %1089 = vmatmul.mubr.f32.gmra.mrb[0].mxu0 %v1022
  %v1090 = vpop.f32.mrb[0].mxu0
  %v1091 = vadd.f32 0.0, %v1090
  %v1092 = vpop.f32.mrb[0].mxu0
  %v1093 = vadd.f32 0.0, %v1092
  %1094 = vdwg.mxu0
  %v1095 = vld [vmem:[%s626] sm:$0xff]
  %v1096 = vld [vmem:[%s622 + $0x8] sm:$0xff]
  %v1097 = vadd.f32 %v1095, %v1091
  %v1098 = vxor.u32 %v1097, 2147483648
  %v1099 = vmul.f32 %v1098, 1.442695
  %v1100 = vpow.pop %v1099
  %v1101 = vadd.f32 %v1100, 1.0
  %v1102 = vrcp.pop %v1101
  %v1103 = vmul.f32 1.0, %v1102
  %v1104 = vtanh.pop %v1097
  %v1105 = vmul.f32 %v1103, %v962
  %1107 = vrot.lane.b32.xlu0 %v1104, 32
  %v1108 = vpop.permute.xlu0 %1107
  %v1110 = vmul.f32 %v1103, %v1108
  %1112 = vrot.lane.b32.xlu0 %v1110, 32
  %v1113 = vpop.permute.xlu0 %1112
  %v1115 = vadd.f32 %v1105, %v1113
  %v1116 = vtanh.pop %v1115
  %1118 = vrot.lane.b32.xlu0 %v1116, 32
  %v1119 = vpop.permute.xlu0 %1118
  %v1121 = vmul.f32 %v1103, %v1119
  %v1122 = vadd.f32 %v1096, %v1093
  %v1123 = vxor.u32 %v1122, 2147483648
  %v1124 = vmul.f32 %v1123, 1.442695
  %v1125 = vpow.pop %v1124
  %v1126 = vadd.f32 %v1125, 1.0
  %v1127 = vrcp.pop %v1126
  %v1128 = vmul.f32 1.0, %v1127
  %v1129 = vtanh.pop %v1122
  %v1130 = vmul.f32 %v1128, %v987
  %1132 = vrot.lane.b32.xlu0 %v1129, 32
  %v1133 = vpop.permute.xlu0 %1132
  %v1135 = vmul.f32 %v1128, %v1133
  %1137 = vrot.lane.b32.xlu0 %v1135, 32
  %v1138 = vpop.permute.xlu0 %1137
  %v1140 = vadd.f32 %v1130, %v1138
  %v1141 = vtanh.pop %v1140
  %1143 = vrot.lane.b32.xlu0 %v1141, 32
  %v1144 = vpop.permute.xlu0 %1143
  %v1146 = vmul.f32 %v1128, %v1144
  %1148 = vrot.lane.b32.xlu0 %v1121, 64
  %v1149 = vpop.permute.xlu0 %1148
  %1151 = vst.msk [vmem:[%s688] sm:$0xff] %vm359, %v1149
  %1153 = vrot.lane.b32.xlu0 %v1146, 96
  %v1154 = vpop.permute.xlu0 %1153
  %1156 = vst.msk [vmem:[%s682] sm:$0xff] %vm366, %v1154
  %v1157 = vsel %vm359, %v1149, %v1154
  %v1158 = vld [vmem:[%s2] sm:$0xff]
  %v1159 = vld [vmem:[%s2 + $0x8] sm:$0xff]
  %v1160 = vld [vmem:[%s2 + $0x10] sm:$0xff]
  %v1161 = vld [vmem:[%s2 + $0x18] sm:$0xff]
  %v1162 = vld [vmem:[%s2 + $0x20] sm:$0xff]
  %v1163 = vld [vmem:[%s2 + $0x28] sm:$0xff]
  %v1164 = vld [vmem:[%s2 + $0x30] sm:$0xff]
  %v1165 = vld [vmem:[%s2 + $0x38] sm:$0xff]
  %v1166 = vld [vmem:[%s2 + $0x40] sm:$0xff]
  %v1167 = vld [vmem:[%s2 + $0x48] sm:$0xff]
  %v1168 = vld [vmem:[%s2 + $0x50] sm:$0xff]
  %v1169 = vld [vmem:[%s2 + $0x58] sm:$0xff]
  %v1170 = vld [vmem:[%s2 + $0x60] sm:$0xff]
  %v1171 = vld [vmem:[%s2 + $0x68] sm:$0xff]
  %v1172 = vld [vmem:[%s2 + $0x70] sm:$0xff]
  %v1173 = vld [vmem:[%s2 + $0x78] sm:$0xff]
  %v1175 = vsel %vm53, %v1157, 0
  %1177 = vmatprep.subr.mxu0 %v1159
  %1178 = vmatpush1.msra.mxu0 %v1158
  %1179 = vmatprep.subr.mxu0 %v1161
  %1180 = vmatpush1.msra.mxu0 %v1160
  %1181 = vmatprep.subr.mxu0 %v1163
  %1182 = vmatpush1.msra.mxu0 %v1162
  %1183 = vmatprep.subr.mxu0 %v1165
  %1184 = vmatpush1.msra.mxu0 %v1164
  %1185 = vmatprep.subr.mxu0 %v1167
  %1186 = vmatpush1.msra.mxu0 %v1166
  %1187 = vmatprep.subr.mxu0 %v1169
  %1188 = vmatpush1.msra.mxu0 %v1168
  %1189 = vmatprep.subr.mxu0 %v1171
  %1190 = vmatpush1.msra.mxu0 %v1170
  %1191 = vmatprep.subr.mxu0 %v1173
  %1192 = vmatpush1.msra.mxu0 %v1172
  %1193 = vmatprep.subr.mxu0 0.0
  %1194 = vmatpush1.msra.mxu0 0.0
  %1195 = vmatprep.subr.mxu0 0.0
  %1196 = vmatpush1.msra.mxu0 0.0
  %1197 = vmatprep.subr.mxu0 0.0
  %1198 = vmatpush1.msra.mxu0 0.0
  %1199 = vmatprep.subr.mxu0 0.0
  %1200 = vmatpush1.msra.mxu0 0.0
  %1201 = vmatprep.subr.mxu0 0.0
  %1202 = vmatpush1.msra.mxu0 0.0
  %1203 = vmatprep.subr.mxu0 0.0
  %1204 = vmatpush1.msra.mxu0 0.0
  %1205 = vmatprep.subr.mxu0 0.0
  %1206 = vmatpush1.msra.mxu0 0.0
  %1207 = vmatprep.subr.mxu0 0.0
  %1208 = vmatpush1.msra.mxu0 0.0
  %1209 = vmatprep.subr.mxu0 0.0
  %1210 = vmatpush1.msra.mxu0 0.0
  %1211 = vmatprep.subr.mxu0 0.0
  %1212 = vmatpush1.msra.mxu0 0.0
  %1213 = vmatprep.subr.mxu0 0.0
  %1214 = vmatpush1.msra.mxu0 0.0
  %1215 = vmatprep.subr.mxu0 0.0
  %1216 = vmatpush1.msra.mxu0 0.0
  %1217 = vmatprep.subr.mxu0 0.0
  %1218 = vmatpush1.msra.mxu0 0.0
  %1219 = vmatprep.subr.mxu0 0.0
  %1220 = vmatpush1.msra.mxu0 0.0
  %1221 = vmatprep.subr.mxu0 0.0
  %1222 = vmatpush1.msra.mxu0 0.0
  %1223 = vmatprep.subr.mxu0 0.0
  %1224 = vmatpush1.msra.mxu0 0.0
  %1225 = vmatprep.subr.mxu0 0.0
  %1226 = vmatpush1.msra.mxu0 0.0
  %1227 = vmatprep.subr.mxu0 0.0
  %1228 = vmatpush1.msra.mxu0 0.0
  %1229 = vmatprep.subr.mxu0 0.0
  %1230 = vmatpush1.msra.mxu0 0.0
  %1231 = vmatprep.subr.mxu0 0.0
  %1232 = vmatpush1.msra.mxu0 0.0
  %1233 = vmatprep.subr.mxu0 0.0
  %1234 = vmatpush1.msra.mxu0 0.0
  %1235 = vmatprep.subr.mxu0 0.0
  %1236 = vmatpush1.msra.mxu0 0.0
  %1237 = vmatprep.subr.mxu0 0.0
  %1238 = vmatpush1.msra.mxu0 0.0
  %1239 = vmatprep.subr.mxu0 0.0
  %1240 = vmatpush1.msra.mxu0 0.0
  %1241 = vmatprep.mubr.f32.mxu0 0.0
  %1242 = vmatmul.mubr.f32.gmra.mrb[0].mxu0 %v1175
  %v1243 = vpop.f32.mrb[0].mxu0
  %v1244 = vadd.f32 0.0, %v1243
  %v1245 = vpop.f32.mrb[0].mxu0
  %v1246 = vadd.f32 0.0, %v1245
  %1247 = vdwg.mxu0
  %v1248 = vld [vmem:[%s465] sm:$0xff]
  %v1249 = vld [vmem:[%s461 + $0x8] sm:$0xff]
  %v1250 = vadd.f32 %v1248, %v1244
  %v1251 = vxor.u32 %v1250, 2147483648
  %v1252 = vmul.f32 %v1251, 1.442695
  %v1253 = vpow.pop %v1252
  %v1254 = vadd.f32 %v1253, 1.0
  %v1255 = vrcp.pop %v1254
  %v1256 = vmul.f32 1.0, %v1255
  %v1257 = vtanh.pop %v1250
  %v1258 = vmul.f32 %v1256, %v1115
  %1260 = vrot.lane.b32.xlu0 %v1257, 32
  %v1261 = vpop.permute.xlu0 %1260
  %v1263 = vmul.f32 %v1256, %v1261
  %1265 = vrot.lane.b32.xlu0 %v1263, 32
  %v1266 = vpop.permute.xlu0 %1265
  %v1268 = vadd.f32 %v1258, %v1266
  %v1269 = vtanh.pop %v1268
  %1271 = vrot.lane.b32.xlu0 %v1269, 32
  %v1272 = vpop.permute.xlu0 %1271
  %v1274 = vmul.f32 %v1256, %v1272
  %v1275 = vadd.f32 %v1249, %v1246
  %v1276 = vxor.u32 %v1275, 2147483648
  %v1277 = vmul.f32 %v1276, 1.442695
  %v1278 = vpow.pop %v1277
  %v1279 = vadd.f32 %v1278, 1.0
  %v1280 = vrcp.pop %v1279
  %v1281 = vmul.f32 1.0, %v1280
  %v1282 = vtanh.pop %v1275
  %v1283 = vmul.f32 %v1281, %v1140
  %1285 = vrot.lane.b32.xlu0 %v1282, 32
  %v1286 = vpop.permute.xlu0 %1285
  %v1288 = vmul.f32 %v1281, %v1286
  %1290 = vrot.lane.b32.xlu0 %v1288, 32
  %v1291 = vpop.permute.xlu0 %1290
  %v1293 = vadd.f32 %v1283, %v1291
  %v1294 = vtanh.pop %v1293
  %1296 = vrot.lane.b32.xlu0 %v1294, 32
  %v1297 = vpop.permute.xlu0 %1296
  %v1299 = vmul.f32 %v1281, %v1297
  %1301 = vrot.lane.b32.xlu0 %v1274, 64
  %v1302 = vpop.permute.xlu0 %1301
  %1304 = vst.msk [vmem:[%s527] sm:$0xff] %vm359, %v1302
  %1306 = vrot.lane.b32.xlu0 %v1299, 96
  %v1307 = vpop.permute.xlu0 %1306
  %1309 = vst.msk [vmem:[%s521] sm:$0xff] %vm366, %v1307
  %v1310 = vsel %vm359, %v1302, %v1307
  %v1311 = vld [vmem:[%s2] sm:$0xff]
  %v1312 = vld [vmem:[%s2 + $0x8] sm:$0xff]
  %v1313 = vld [vmem:[%s2 + $0x10] sm:$0xff]
  %v1314 = vld [vmem:[%s2 + $0x18] sm:$0xff]
  %v1315 = vld [vmem:[%s2 + $0x20] sm:$0xff]
  %v1316 = vld [vmem:[%s2 + $0x28] sm:$0xff]
  %v1317 = vld [vmem:[%s2 + $0x30] sm:$0xff]
  %v1318 = vld [vmem:[%s2 + $0x38] sm:$0xff]
  %v1319 = vld [vmem:[%s2 + $0x40] sm:$0xff]
  %v1320 = vld [vmem:[%s2 + $0x48] sm:$0xff]
  %v1321 = vld [vmem:[%s2 + $0x50] sm:$0xff]
  %v1322 = vld [vmem:[%s2 + $0x58] sm:$0xff]
  %v1323 = vld [vmem:[%s2 + $0x60] sm:$0xff]
  %v1324 = vld [vmem:[%s2 + $0x68] sm:$0xff]
  %v1325 = vld [vmem:[%s2 + $0x70] sm:$0xff]
  %v1326 = vld [vmem:[%s2 + $0x78] sm:$0xff]
  %v1328 = vsel %vm53, %v1310, 0
  %1330 = vmatprep.subr.mxu0 %v1312
  %1331 = vmatpush1.msra.mxu0 %v1311
  %1332 = vmatprep.subr.mxu0 %v1314
  %1333 = vmatpush1.msra.mxu0 %v1313
  %1334 = vmatprep.subr.mxu0 %v1316
  %1335 = vmatpush1.msra.mxu0 %v1315
  %1336 = vmatprep.subr.mxu0 %v1318
  %1337 = vmatpush1.msra.mxu0 %v1317
  %1338 = vmatprep.subr.mxu0 %v1320
  %1339 = vmatpush1.msra.mxu0 %v1319
  %1340 = vmatprep.subr.mxu0 %v1322
  %1341 = vmatpush1.msra.mxu0 %v1321
  %1342 = vmatprep.subr.mxu0 %v1324
  %1343 = vmatpush1.msra.mxu0 %v1323
  %1344 = vmatprep.subr.mxu0 %v1326
  %1345 = vmatpush1.msra.mxu0 %v1325
  %1346 = vmatprep.subr.mxu0 0.0
  %1347 = vmatpush1.msra.mxu0 0.0
  %1348 = vmatprep.subr.mxu0 0.0
  %1349 = vmatpush1.msra.mxu0 0.0
  %1350 = vmatprep.subr.mxu0 0.0
  %1351 = vmatpush1.msra.mxu0 0.0
  %1352 = vmatprep.subr.mxu0 0.0
  %1353 = vmatpush1.msra.mxu0 0.0
  %1354 = vmatprep.subr.mxu0 0.0
  %1355 = vmatpush1.msra.mxu0 0.0
  %1356 = vmatprep.subr.mxu0 0.0
  %1357 = vmatpush1.msra.mxu0 0.0
  %1358 = vmatprep.subr.mxu0 0.0
  %1359 = vmatpush1.msra.mxu0 0.0
  %1360 = vmatprep.subr.mxu0 0.0
  %1361 = vmatpush1.msra.mxu0 0.0
  %1362 = vmatprep.subr.mxu0 0.0
  %1363 = vmatpush1.msra.mxu0 0.0
  %1364 = vmatprep.subr.mxu0 0.0
  %1365 = vmatpush1.msra.mxu0 0.0
  %1366 = vmatprep.subr.mxu0 0.0
  %1367 = vmatpush1.msra.mxu0 0.0
  %1368 = vmatprep.subr.mxu0 0.0
  %1369 = vmatpush1.msra.mxu0 0.0
  %1370 = vmatprep.subr.mxu0 0.0
  %1371 = vmatpush1.msra.mxu0 0.0
  %1372 = vmatprep.subr.mxu0 0.0
  %1373 = vmatpush1.msra.mxu0 0.0
  %1374 = vmatprep.subr.mxu0 0.0
  %1375 = vmatpush1.msra.mxu0 0.0
  %1376 = vmatprep.subr.mxu0 0.0
  %1377 = vmatpush1.msra.mxu0 0.0
  %1378 = vmatprep.subr.mxu0 0.0
  %1379 = vmatpush1.msra.mxu0 0.0
  %1380 = vmatprep.subr.mxu0 0.0
  %1381 = vmatpush1.msra.mxu0 0.0
  %1382 = vmatprep.subr.mxu0 0.0
  %1383 = vmatpush1.msra.mxu0 0.0
  %1384 = vmatprep.subr.mxu0 0.0
  %1385 = vmatpush1.msra.mxu0 0.0
  %1386 = vmatprep.subr.mxu0 0.0
  %1387 = vmatpush1.msra.mxu0 0.0
  %1388 = vmatprep.subr.mxu0 0.0
  %1389 = vmatpush1.msra.mxu0 0.0
  %1390 = vmatprep.subr.mxu0 0.0
  %1391 = vmatpush1.msra.mxu0 0.0
  %1392 = vmatprep.subr.mxu0 0.0
  %1393 = vmatpush1.msra.mxu0 0.0
  %1394 = vmatprep.mubr.f32.mxu0 0.0
  %1395 = vmatmul.mubr.f32.gmra.mrb[0].mxu0 %v1328
  %v1396 = vpop.f32.mrb[0].mxu0
  %v1397 = vadd.f32 0.0, %v1396
  %v1398 = vpop.f32.mrb[0].mxu0
  %v1399 = vadd.f32 0.0, %v1398
  %1400 = vdwg.mxu0
  %v1401 = vld [vmem:[%s303] sm:$0xff]
  %v1402 = vld [vmem:[%s299 + $0x8] sm:$0xff]
  %v1403 = vadd.f32 %v1401, %v1397
  %v1404 = vxor.u32 %v1403, 2147483648
  %v1405 = vmul.f32 %v1404, 1.442695
  %v1406 = vpow.pop %v1405
  %v1407 = vadd.f32 %v1406, 1.0
  %v1408 = vrcp.pop %v1407
  %v1409 = vmul.f32 1.0, %v1408
  %v1410 = vtanh.pop %v1403
  %v1411 = vmul.f32 %v1409, %v1268
  %1413 = vrot.lane.b32.xlu0 %v1410, 32
  %v1414 = vpop.permute.xlu0 %1413
  %v1416 = vmul.f32 %v1409, %v1414
  %1418 = vrot.lane.b32.xlu0 %v1416, 32
  %v1419 = vpop.permute.xlu0 %1418
  %v1421 = vadd.f32 %v1411, %v1419
  %v1422 = vtanh.pop %v1421
  %1424 = vrot.lane.b32.xlu0 %v1422, 32
  %v1425 = vpop.permute.xlu0 %1424
  %v1427 = vmul.f32 %v1409, %v1425
  %v1428 = vadd.f32 %v1402, %v1399
  %v1429 = vxor.u32 %v1428, 2147483648
  %v1430 = vmul.f32 %v1429, 1.442695
  %v1431 = vpow.pop %v1430
  %v1432 = vadd.f32 %v1431, 1.0
  %v1433 = vrcp.pop %v1432
  %v1434 = vmul.f32 1.0, %v1433
  %v1435 = vtanh.pop %v1428
  %v1436 = vmul.f32 %v1434, %v1293
  %1438 = vrot.lane.b32.xlu0 %v1435, 32
  %v1439 = vpop.permute.xlu0 %1438
  %v1441 = vmul.f32 %v1434, %v1439
  %1443 = vrot.lane.b32.xlu0 %v1441, 32
  %v1444 = vpop.permute.xlu0 %1443
  %v1446 = vadd.f32 %v1436, %v1444
  %v1447 = vtanh.pop %v1446
  %1449 = vrot.lane.b32.xlu0 %v1447, 32
  %v1450 = vpop.permute.xlu0 %1449
  %v1452 = vmul.f32 %v1434, %v1450
  %1454 = vrot.lane.b32.xlu0 %v1427, 64
  %v1455 = vpop.permute.xlu0 %1454
  %1457 = vst.msk [vmem:[%s365] sm:$0xff] %vm359, %v1455
  %1459 = vrot.lane.b32.xlu0 %v1452, 96
  %v1460 = vpop.permute.xlu0 %1459
  %1462 = vst.msk [vmem:[%s4] sm:$0xff] %vm366, %v1460
  // Predicated region
  $region18: #{wordvec_net_forward.3} parent=0 // pred_check
    _
  $region19: #{wordvec_net_forward.3} parent=0 // pred_check_branch
    %1464 = sbr.rel (0) target = $region21
  $region20: #{wordvec_net_forward.3} parent=0 // pred_region
    _
  $region21: #{wordvec_net_forward.3} parent=0 // pred_fallthru
    _
  // Predicated region
  $region22: #{wordvec_net_forward.3} parent=0 // pred_check
    _
  $region23: #{wordvec_net_forward.3} parent=0 // pred_check_branch
    %1466 = sbr.rel (0) target = $region25
  $region24: #{wordvec_net_forward.3} parent=0 // pred_region
    _
  $region25: #{wordvec_net_forward.3} parent=0 // pred_fallthru
    _

// kernel: wordvec_net_forward.2
$region0: #{wordvec_net_forward.2}
  #allocation0 [shape = 'u32[]', space=smem, size = 0x4, offset = 0x4, fixed_abs, tag = 'smem constant byte address 0x4 - core index']
  #allocation1 [shape = 'u32[144,128]{1,0:T(1,128)}', space=vmem, size = 0x12000, scoped, tag = 'internal scratch']
  #allocation2 [shape = 'f32[64,256]{1,0:T(8,128)}', space=vmem, size = 0x10000, scoped, tag = 'scratch operand']
  %s0 = inlined_call_operand.vmem [shape: f32[64,8], index: 0, kind: input, shape index: {}]
  %s1 = inlined_call_operand.vmem [shape: f32[8,256], index: 1, kind: input, shape index: {}]
  %s2 = inlined_call_operand.hbm [shape: f32[64,256], index: 2, kind: input, shape index: {}]
  %s3 = inlined_call_operand.vmem [shape: f32[1,256], index: 3, kind: input, shape index: {}]
  %s4 = inlined_call_operand.vmem [shape: f32[64,64], index: 4, kind: output, shape index: {}]
  %s5 = sld [smem:[#allocation0]]
  $region30: #{wordvec_net_forward.2} parent=0
    _
  %s7 = ssub.s32 1, %s5
  %s8 = scalar_select 0, %s7, %s5
  $region1: #{wordvec_net_forward.2} parent=0
    #allocation3 [shape = 'u8[65536]{0}', space=vmem, size = 0x10000, scoped, tag = 'input window, operand 2, single buffered']
    #allocation4 [shape = 's32[1]{0}', space=sflag, size = 0x4, scoped, tag = 'scoped memory for wordvec_net_forward.2']
    %9 = vsyncpa [#allocation4], 0
    // Predicated region
    $region2: #{wordvec_net_forward.2} parent=1 // pred_check
      _
    $region3: #{wordvec_net_forward.2} parent=1 // pred_check_branch
      %11 = sbr.rel (0) target = $region5
    $region4: #{wordvec_net_forward.2} parent=1 // pred_region
      _
    $region5: #{wordvec_net_forward.2} parent=1 // pred_fallthru
      _
    // Predicated region
    $region6: #{wordvec_net_forward.2} parent=1 // pred_check
      _
    $region7: #{wordvec_net_forward.2} parent=1 // pred_check_branch
      %13 = sbr.rel (0) target = $region9
    $region8: #{wordvec_net_forward.2} parent=1 // pred_region
      _
    $region9: #{wordvec_net_forward.2} parent=1 // pred_fallthru
      _
    // Predicated region
    $region10: #{wordvec_net_forward.2} parent=1 // pred_check
      _
    $region11: #{wordvec_net_forward.2} parent=1 // pred_check_branch
      %15 = sbr.rel (0) target = $region13
    $region12: #{wordvec_net_forward.2} parent=1 // pred_region
      %s17 = ssub.s32 2048, 2048
      %18 = vsyncadd [#allocation4], %s17
      %s19 = sshll.u32 [#allocation3], 4
      %s20 = int_to_ptr.vmem [resolvable:$true] %s19
      %25 = dma.hbm_to_vmem [thread:$0]  %s2, 2048, %s20, [#allocation4], 256, 256, 16
    $region13: #{wordvec_net_forward.2} parent=1 // pred_fallthru
      _
    // Predicated region
    $region14: #{wordvec_net_forward.2} parent=1 // pred_check
      _
    $region15: #{wordvec_net_forward.2} parent=1 // pred_check_branch
      %27 = sbr.rel (0) target = $region17
    $region16: #{wordvec_net_forward.2} parent=1 // pred_region
      _
    $region17: #{wordvec_net_forward.2} parent=1 // pred_fallthru
      _
    // Predicated region
    $region18: #{wordvec_net_forward.2} parent=1 // pred_check
      _
    $region19: #{wordvec_net_forward.2} parent=1 // pred_check_branch
      %29 = sbr.rel (0) target = $region21
    $region20: #{wordvec_net_forward.2} parent=1 // pred_region
      %30 = dma.done [#allocation4], 2048
    $region21: #{wordvec_net_forward.2} parent=1 // pred_fallthru
      _
    %v31 = vld [vmem:[%s0] sm:$0xff]
    %v32 = vld [vmem:[%s0 + $0x8] sm:$0xff]
    %v33 = vld [vmem:[%s0 + $0x10] sm:$0xff]
    %v34 = vld [vmem:[%s0 + $0x18] sm:$0xff]
    %v35 = vld [vmem:[%s0 + $0x20] sm:$0xff]
    %v36 = vld [vmem:[%s0 + $0x28] sm:$0xff]
    %v37 = vld [vmem:[%s0 + $0x30] sm:$0xff]
    %v38 = vld [vmem:[%s0 + $0x38] sm:$0xff]
    %v39 = vld [vmem:[%s1] sm:$0xff]
    %v40 = vld [vmem:[%s1 + $0x8] sm:$0xff]
    %v41 = vld [vmem:[%s3] sm:$0x3]
    %v43 = vlaneseq
    %v44 = vshrl.u32 %v43, 7
    %v45 = vsub.s32 0, %v44
    %v46 = vrot.slane %v41, %v45
    %v47 = vlaneseq
    %v48 = vshrl.u32 %v47, 7
    %v49 = vsub.s32 1, %v48
    %v50 = vrot.slane %v41, %v49
    %vm53 = vcmask 64512
    %v55 = vsel %vm53, %v31, 0
    %v58 = vsel %vm53, %v32, 0
    %v61 = vsel %vm53, %v33, 0
    %v64 = vsel %vm53, %v34, 0
    %v67 = vsel %vm53, %v35, 0
    %v70 = vsel %vm53, %v36, 0
    %v73 = vsel %vm53, %v37, 0
    %v76 = vsel %vm53, %v38, 0
    %78 = vmatprep.subr.mxu0 %v40
    %79 = vmatpush1.msra.mxu0 %v39
    %80 = vmatprep.subr.mxu0 0.0
    %81 = vmatpush1.msra.mxu0 0.0
    %82 = vmatprep.subr.mxu0 0.0
    %83 = vmatpush1.msra.mxu0 0.0
    %84 = vmatprep.subr.mxu0 0.0
    %85 = vmatpush1.msra.mxu0 0.0
    %86 = vmatprep.subr.mxu0 0.0
    %87 = vmatpush1.msra.mxu0 0.0
    %88 = vmatprep.subr.mxu0 0.0
    %89 = vmatpush1.msra.mxu0 0.0
    %90 = vmatprep.subr.mxu0 0.0
    %91 = vmatpush1.msra.mxu0 0.0
    %92 = vmatprep.subr.mxu0 0.0
    %93 = vmatpush1.msra.mxu0 0.0
    %94 = vmatprep.subr.mxu0 0.0
    %95 = vmatpush1.msra.mxu0 0.0
    %96 = vmatprep.subr.mxu0 0.0
    %97 = vmatpush1.msra.mxu0 0.0
    %98 = vmatprep.subr.mxu0 0.0
    %99 = vmatpush1.msra.mxu0 0.0
    %100 = vmatprep.subr.mxu0 0.0
    %101 = vmatpush1.msra.mxu0 0.0
    %102 = vmatprep.subr.mxu0 0.0
    %103 = vmatpush1.msra.mxu0 0.0
    %104 = vmatprep.subr.mxu0 0.0
    %105 = vmatpush1.msra.mxu0 0.0
    %106 = vmatprep.subr.mxu0 0.0
    %107 = vmatpush1.msra.mxu0 0.0
    %108 = vmatprep.subr.mxu0 0.0
    %109 = vmatpush1.msra.mxu0 0.0
    %110 = vmatprep.subr.mxu0 0.0
    %111 = vmatpush1.msra.mxu0 0.0
    %112 = vmatprep.subr.mxu0 0.0
    %113 = vmatpush1.msra.mxu0 0.0
    %114 = vmatprep.subr.mxu0 0.0
    %115 = vmatpush1.msra.mxu0 0.0
    %116 = vmatprep.subr.mxu0 0.0
    %117 = vmatpush1.msra.mxu0 0.0
    %118 = vmatprep.subr.mxu0 0.0
    %119 = vmatpush1.msra.mxu0 0.0
    %120 = vmatprep.subr.mxu0 0.0
    %121 = vmatpush1.msra.mxu0 0.0
    %122 = vmatprep.subr.mxu0 0.0
    %123 = vmatpush1.msra.mxu0 0.0
    %124 = vmatprep.subr.mxu0 0.0
    %125 = vmatpush1.msra.mxu0 0.0
    %126 = vmatprep.subr.mxu0 0.0
    %127 = vmatpush1.msra.mxu0 0.0
    %128 = vmatprep.subr.mxu0 0.0
    %129 = vmatpush1.msra.mxu0 0.0
    %130 = vmatprep.subr.mxu0 0.0
    %131 = vmatpush1.msra.mxu0 0.0
    %132 = vmatprep.subr.mxu0 0.0
    %133 = vmatpush1.msra.mxu0 0.0
    %134 = vmatprep.subr.mxu0 0.0
    %135 = vmatpush1.msra.mxu0 0.0
    %136 = vmatprep.subr.mxu0 0.0
    %137 = vmatpush1.msra.mxu0 0.0
    %138 = vmatprep.subr.mxu0 0.0
    %139 = vmatpush1.msra.mxu0 0.0
    %140 = vmatprep.subr.mxu0 0.0
    %141 = vmatpush1.msra.mxu0 0.0
    %142 = vmatprep.mubr.f32.mxu0 0.0
    %143 = vmatmul.mubr.f32.gmra.mrb[0].mxu0 %v55
    %v144 = vpop.f32.mrb[0].mxu0
    %v145 = vadd.f32 %v46, %v144
    %v146 = vpop.f32.mrb[0].mxu0
    %v147 = vadd.f32 %v50, %v146
    %148 = vmatprep.mubr.f32.mxu0 0.0
    %149 = vmatmul.mubr.f32.gmra.mrb[0].mxu0 %v58
    %v150 = vpop.f32.mrb[0].mxu0
    %v151 = vadd.f32 %v46, %v150
    %v152 = vpop.f32.mrb[0].mxu0
    %v153 = vadd.f32 %v50, %v152
    %154 = vmatprep.mubr.f32.mxu0 0.0
    %155 = vmatmul.mubr.f32.gmra.mrb[0].mxu0 %v61
    %v156 = vpop.f32.mrb[0].mxu0
    %v157 = vadd.f32 %v46, %v156
    %v158 = vpop.f32.mrb[0].mxu0
    %v159 = vadd.f32 %v50, %v158
    %160 = vmatprep.mubr.f32.mxu0 0.0
    %161 = vmatmul.mubr.f32.gmra.mrb[0].mxu0 %v64
    %v162 = vpop.f32.mrb[0].mxu0
    %v163 = vadd.f32 %v46, %v162
    %v164 = vpop.f32.mrb[0].mxu0
    %v165 = vadd.f32 %v50, %v164
    %166 = vmatprep.mubr.f32.mxu0 0.0
    %167 = vmatmul.mubr.f32.gmra.mrb[0].mxu0 %v67
    %v168 = vpop.f32.mrb[0].mxu0
    %v169 = vadd.f32 %v46, %v168
    %v170 = vpop.f32.mrb[0].mxu0
    %v171 = vadd.f32 %v50, %v170
    %172 = vmatprep.mubr.f32.mxu0 0.0
    %173 = vmatmul.mubr.f32.gmra.mrb[0].mxu0 %v70
    %v174 = vpop.f32.mrb[0].mxu0
    %v175 = vadd.f32 %v46, %v174
    %v176 = vpop.f32.mrb[0].mxu0
    %v177 = vadd.f32 %v50, %v176
    %178 = vmatprep.mubr.f32.mxu0 0.0
    %179 = vmatmul.mubr.f32.gmra.mrb[0].mxu0 %v73
    %v180 = vpop.f32.mrb[0].mxu0
    %v181 = vadd.f32 %v46, %v180
    %v182 = vpop.f32.mrb[0].mxu0
    %v183 = vadd.f32 %v50, %v182
    %184 = vmatprep.mubr.f32.mxu0 0.0
    %185 = vmatmul.mubr.f32.gmra.mrb[0].mxu0 %v76
    %v186 = vpop.f32.mrb[0].mxu0
    %v187 = vadd.f32 %v46, %v186
    %v188 = vpop.f32.mrb[0].mxu0
    %v189 = vadd.f32 %v50, %v188
    %190 = vdwg.mxu0
    %191 = vst [vmem:[#allocation2] sm:$0xff] %v145
    %192 = vst [vmem:[#allocation2 + $0x8] sm:$0xff] %v147
    %193 = vst [vmem:[#allocation2 + $0x10] sm:$0xff] %v151
    %194 = vst [vmem:[#allocation2 + $0x18] sm:$0xff] %v153
    %195 = vst [vmem:[#allocation2 + $0x20] sm:$0xff] %v157
    %196 = vst [vmem:[#allocation2 + $0x28] sm:$0xff] %v159
    %197 = vst [vmem:[#allocation2 + $0x30] sm:$0xff] %v163
    %198 = vst [vmem:[#allocation2 + $0x38] sm:$0xff] %v165
    %199 = vst [vmem:[#allocation2 + $0x40] sm:$0xff] %v169
    %200 = vst [vmem:[#allocation2 + $0x48] sm:$0xff] %v171
    %201 = vst [vmem:[#allocation2 + $0x50] sm:$0xff] %v175
    %202 = vst [vmem:[#allocation2 + $0x58] sm:$0xff] %v177
    %203 = vst [vmem:[#allocation2 + $0x60] sm:$0xff] %v181
    %204 = vst [vmem:[#allocation2 + $0x68] sm:$0xff] %v183
    %205 = vst [vmem:[#allocation2 + $0x70] sm:$0xff] %v187
    %206 = vst [vmem:[#allocation2 + $0x78] sm:$0xff] %v189
    %v207 = vld [vmem:[#allocation3] sm:$0xff]
    %v208 = vld [vmem:[#allocation3 + $0x8] sm:$0xff]
    %v209 = vld [vmem:[#allocation3 + $0x10] sm:$0xff]
    %v210 = vld [vmem:[#allocation3 + $0x18] sm:$0xff]
    %v211 = vld [vmem:[#allocation3 + $0x20] sm:$0xff]
    %v212 = vld [vmem:[#allocation3 + $0x28] sm:$0xff]
    %v213 = vld [vmem:[#allocation3 + $0x30] sm:$0xff]
    %v214 = vld [vmem:[#allocation3 + $0x38] sm:$0xff]
    %v215 = vld [vmem:[#allocation3 + $0x40] sm:$0xff]
    %v216 = vld [vmem:[#allocation3 + $0x48] sm:$0xff]
    %v217 = vld [vmem:[#allocation3 + $0x50] sm:$0xff]
    %v218 = vld [vmem:[#allocation3 + $0x58] sm:$0xff]
    %v219 = vld [vmem:[#allocation3 + $0x60] sm:$0xff]
    %v220 = vld [vmem:[#allocation3 + $0x68] sm:$0xff]
    %v221 = vld [vmem:[#allocation3 + $0x70] sm:$0xff]
    %v222 = vld [vmem:[#allocation3 + $0x78] sm:$0xff]
    %vm223 = vcmask 523264
    %v225 = vsel %vm223, 0.0, 0
    %227 = vmatprep.subr.mxu0 %v208
    %228 = vmatpush1.msra.mxu0 %v207
    %229 = vmatprep.subr.mxu0 %v210
    %230 = vmatpush1.msra.mxu0 %v209
    %231 = vmatprep.subr.mxu0 %v212
    %232 = vmatpush1.msra.mxu0 %v211
    %233 = vmatprep.subr.mxu0 %v214
    %234 = vmatpush1.msra.mxu0 %v213
    %235 = vmatprep.subr.mxu0 %v216
    %236 = vmatpush1.msra.mxu0 %v215
    %237 = vmatprep.subr.mxu0 %v218
    %238 = vmatpush1.msra.mxu0 %v217
    %239 = vmatprep.subr.mxu0 %v220
    %240 = vmatpush1.msra.mxu0 %v219
    %241 = vmatprep.subr.mxu0 %v222
    %242 = vmatpush1.msra.mxu0 %v221
    %243 = vmatprep.subr.mxu0 0.0
    %244 = vmatpush1.msra.mxu0 0.0
    %245 = vmatprep.subr.mxu0 0.0
    %246 = vmatpush1.msra.mxu0 0.0
    %247 = vmatprep.subr.mxu0 0.0
    %248 = vmatpush1.msra.mxu0 0.0
    %249 = vmatprep.subr.mxu0 0.0
    %250 = vmatpush1.msra.mxu0 0.0
    %251 = vmatprep.subr.mxu0 0.0
    %252 = vmatpush1.msra.mxu0 0.0
    %253 = vmatprep.subr.mxu0 0.0
    %254 = vmatpush1.msra.mxu0 0.0
    %255 = vmatprep.subr.mxu0 0.0
    %256 = vmatpush1.msra.mxu0 0.0
    %257 = vmatprep.subr.mxu0 0.0
    %258 = vmatpush1.msra.mxu0 0.0
    %259 = vmatprep.subr.mxu0 0.0
    %260 = vmatpush1.msra.mxu0 0.0
    %261 = vmatprep.subr.mxu0 0.0
    %262 = vmatpush1.msra.mxu0 0.0
    %263 = vmatprep.subr.mxu0 0.0
    %264 = vmatpush1.msra.mxu0 0.0
    %265 = vmatprep.subr.mxu0 0.0
    %266 = vmatpush1.msra.mxu0 0.0
    %267 = vmatprep.subr.mxu0 0.0
    %268 = vmatpush1.msra.mxu0 0.0
    %269 = vmatprep.subr.mxu0 0.0
    %270 = vmatpush1.msra.mxu0 0.0
    %271 = vmatprep.subr.mxu0 0.0
    %272 = vmatpush1.msra.mxu0 0.0
    %273 = vmatprep.subr.mxu0 0.0
    %274 = vmatpush1.msra.mxu0 0.0
    %275 = vmatprep.subr.mxu0 0.0
    %276 = vmatpush1.msra.mxu0 0.0
    %277 = vmatprep.subr.mxu0 0.0
    %278 = vmatpush1.msra.mxu0 0.0
    %279 = vmatprep.subr.mxu0 0.0
    %280 = vmatpush1.msra.mxu0 0.0
    %281 = vmatprep.subr.mxu0 0.0
    %282 = vmatpush1.msra.mxu0 0.0
    %283 = vmatprep.subr.mxu0 0.0
    %284 = vmatpush1.msra.mxu0 0.0
    %285 = vmatprep.subr.mxu0 0.0
    %286 = vmatpush1.msra.mxu0 0.0
    %287 = vmatprep.subr.mxu0 0.0
    %288 = vmatpush1.msra.mxu0 0.0
    %289 = vmatprep.subr.mxu0 0.0
    %290 = vmatpush1.msra.mxu0 0.0
    %291 = vmatprep.mubr.f32.mxu0 0.0
    %292 = vmatmul.mubr.f32.gmra.mrb[0].mxu0 %v225
    %v293 = vpop.f32.mrb[0].mxu0
    %v294 = vadd.f32 0.0, %v293
    %v295 = vpop.f32.mrb[0].mxu0
    %v296 = vadd.f32 0.0, %v295
    %297 = vdwg.mxu0
    %s298 = smul.u32 0, 2
    %s299 = smul.addr %s298, 8
    %s300 = scalar_lea.vmem [#allocation2], %s299
    %v301 = vld [vmem:[%s300] sm:$0xff]
    %s302 = smul.u32 7, 2
    %s303 = smul.addr %s302, 8
    %s304 = scalar_lea.vmem [#allocation2], %s303
    %v305 = vld [vmem:[%s304 + $0x8] sm:$0xff]
    %v306 = vadd.f32 %v301, %v294
    %v307 = vxor.u32 %v306, 2147483648
    %v308 = vmul.f32 %v307, 1.442695
    %v309 = vpow.pop %v308
    %v310 = vadd.f32 %v309, 1.0
    %v311 = vrcp.pop %v310
    %v312 = vmul.f32 1.0, %v311
    %v313 = vtanh.pop %v306
    %v314 = vmul.f32 %v312, 0.0
    %316 = vrot.lane.b32.xlu0 %v313, 32
    %v317 = vpop.permute.xlu0 %316
    %v319 = vmul.f32 %v312, %v317
    %321 = vrot.lane.b32.xlu0 %v319, 32
    %v322 = vpop.permute.xlu0 %321
    %v324 = vadd.f32 %v314, %v322
    %v325 = vtanh.pop %v324
    %327 = vrot.lane.b32.xlu0 %v325, 32
    %v328 = vpop.permute.xlu0 %327
    %v330 = vmul.f32 %v312, %v328
    %v331 = vadd.f32 %v305, %v296
    %v332 = vxor.u32 %v331, 2147483648
    %v333 = vmul.f32 %v332, 1.442695
    %v334 = vpow.pop %v333
    %v335 = vadd.f32 %v334, 1.0
    %v336 = vrcp.pop %v335
    %v337 = vmul.f32 1.0, %v336
    %v338 = vtanh.pop %v331
    %v339 = vmul.f32 %v337, 0.0
    %341 = vrot.lane.b32.xlu0 %v338, 32
    %v342 = vpop.permute.xlu0 %341
    %v344 = vmul.f32 %v337, %v342
    %346 = vrot.lane.b32.xlu0 %v344, 32
    %v347 = vpop.permute.xlu0 %346
    %v349 = vadd.f32 %v339, %v347
    %v350 = vtanh.pop %v349
    %352 = vrot.lane.b32.xlu0 %v350, 32
    %v353 = vpop.permute.xlu0 %352
    %v355 = vmul.f32 %v337, %v353
    %357 = vrot.lane.b32.xlu0 %v330, 64
    %v358 = vpop.permute.xlu0 %357
    %vm360 = vcmask 261120
    %361 = vst.msk [vmem:[%s4] sm:$0xff] %vm360, %v358
    %363 = vrot.lane.b32.xlu0 %v355, 96
    %v364 = vpop.permute.xlu0 %363
    %s366 = scalar_lea.vmem %s4, 56
    %vm367 = vcmask 523520
    %368 = vst.msk [vmem:[%s366] sm:$0xff] %vm367, %v364
    %v369 = vsel %vm360, %v358, %v364
    %v370 = vld [vmem:[#allocation3] sm:$0xff]
    %v371 = vld [vmem:[#allocation3 + $0x8] sm:$0xff]
    %v372 = vld [vmem:[#allocation3 + $0x10] sm:$0xff]
    %v373 = vld [vmem:[#allocation3 + $0x18] sm:$0xff]
    %v374 = vld [vmem:[#allocation3 + $0x20] sm:$0xff]
    %v375 = vld [vmem:[#allocation3 + $0x28] sm:$0xff]
    %v376 = vld [vmem:[#allocation3 + $0x30] sm:$0xff]
    %v377 = vld [vmem:[#allocation3 + $0x38] sm:$0xff]
    %v378 = vld [vmem:[#allocation3 + $0x40] sm:$0xff]
    %v379 = vld [vmem:[#allocation3 + $0x48] sm:$0xff]
    %v380 = vld [vmem:[#allocation3 + $0x50] sm:$0xff]
    %v381 = vld [vmem:[#allocation3 + $0x58] sm:$0xff]
    %v382 = vld [vmem:[#allocation3 + $0x60] sm:$0xff]
    %v383 = vld [vmem:[#allocation3 + $0x68] sm:$0xff]
    %v384 = vld [vmem:[#allocation3 + $0x70] sm:$0xff]
    %v385 = vld [vmem:[#allocation3 + $0x78] sm:$0xff]
    %v387 = vsel %vm223, %v369, 0
    %389 = vmatprep.subr.mxu0 %v371
    %390 = vmatpush1.msra.mxu0 %v370
    %391 = vmatprep.subr.mxu0 %v373
    %392 = vmatpush1.msra.mxu0 %v372
    %393 = vmatprep.subr.mxu0 %v375
    %394 = vmatpush1.msra.mxu0 %v374
    %395 = vmatprep.subr.mxu0 %v377
    %396 = vmatpush1.msra.mxu0 %v376
    %397 = vmatprep.subr.mxu0 %v379
    %398 = vmatpush1.msra.mxu0 %v378
    %399 = vmatprep.subr.mxu0 %v381
    %400 = vmatpush1.msra.mxu0 %v380
    %401 = vmatprep.subr.mxu0 %v383
    %402 = vmatpush1.msra.mxu0 %v382
    %403 = vmatprep.subr.mxu0 %v385
    %404 = vmatpush1.msra.mxu0 %v384
    %405 = vmatprep.subr.mxu0 0.0
    %406 = vmatpush1.msra.mxu0 0.0
    %407 = vmatprep.subr.mxu0 0.0
    %408 = vmatpush1.msra.mxu0 0.0
    %409 = vmatprep.subr.mxu0 0.0
    %410 = vmatpush1.msra.mxu0 0.0
    %411 = vmatprep.subr.mxu0 0.0
    %412 = vmatpush1.msra.mxu0 0.0
    %413 = vmatprep.subr.mxu0 0.0
    %414 = vmatpush1.msra.mxu0 0.0
    %415 = vmatprep.subr.mxu0 0.0
    %416 = vmatpush1.msra.mxu0 0.0
    %417 = vmatprep.subr.mxu0 0.0
    %418 = vmatpush1.msra.mxu0 0.0
    %419 = vmatprep.subr.mxu0 0.0
    %420 = vmatpush1.msra.mxu0 0.0
    %421 = vmatprep.subr.mxu0 0.0
    %422 = vmatpush1.msra.mxu0 0.0
    %423 = vmatprep.subr.mxu0 0.0
    %424 = vmatpush1.msra.mxu0 0.0
    %425 = vmatprep.subr.mxu0 0.0
    %426 = vmatpush1.msra.mxu0 0.0
    %427 = vmatprep.subr.mxu0 0.0
    %428 = vmatpush1.msra.mxu0 0.0
    %429 = vmatprep.subr.mxu0 0.0
    %430 = vmatpush1.msra.mxu0 0.0
    %431 = vmatprep.subr.mxu0 0.0
    %432 = vmatpush1.msra.mxu0 0.0
    %433 = vmatprep.subr.mxu0 0.0
    %434 = vmatpush1.msra.mxu0 0.0
    %435 = vmatprep.subr.mxu0 0.0
    %436 = vmatpush1.msra.mxu0 0.0
    %437 = vmatprep.subr.mxu0 0.0
    %438 = vmatpush1.msra.mxu0 0.0
    %439 = vmatprep.subr.mxu0 0.0
    %440 = vmatpush1.msra.mxu0 0.0
    %441 = vmatprep.subr.mxu0 0.0
    %442 = vmatpush1.msra.mxu0 0.0
    %443 = vmatprep.subr.mxu0 0.0
    %444 = vmatpush1.msra.mxu0 0.0
    %445 = vmatprep.subr.mxu0 0.0
    %446 = vmatpush1.msra.mxu0 0.0
    %447 = vmatprep.subr.mxu0 0.0
    %448 = vmatpush1.msra.mxu0 0.0
    %449 = vmatprep.subr.mxu0 0.0
    %450 = vmatpush1.msra.mxu0 0.0
    %451 = vmatprep.subr.mxu0 0.0
    %452 = vmatpush1.msra.mxu0 0.0
    %453 = vmatprep.mubr.f32.mxu0 0.0
    %454 = vmatmul.mubr.f32.gmra.mrb[0].mxu0 %v387
    %v455 = vpop.f32.mrb[0].mxu0
    %v456 = vadd.f32 0.0, %v455
    %v457 = vpop.f32.mrb[0].mxu0
    %v458 = vadd.f32 0.0, %v457
    %459 = vdwg.mxu0
    %s460 = smul.u32 1, 2
    %s461 = smul.addr %s460, 8
    %s462 = scalar_lea.vmem [#allocation2], %s461
    %v463 = vld [vmem:[%s462] sm:$0xff]
    %s464 = smul.u32 6, 2
    %s465 = smul.addr %s464, 8
    %s466 = scalar_lea.vmem [#allocation2], %s465
    %v467 = vld [vmem:[%s466 + $0x8] sm:$0xff]
    %v468 = vadd.f32 %v463, %v456
    %v469 = vxor.u32 %v468, 2147483648
    %v470 = vmul.f32 %v469, 1.442695
    %v471 = vpow.pop %v470
    %v472 = vadd.f32 %v471, 1.0
    %v473 = vrcp.pop %v472
    %v474 = vmul.f32 1.0, %v473
    %v475 = vtanh.pop %v468
    %v476 = vmul.f32 %v474, %v324
    %478 = vrot.lane.b32.xlu0 %v475, 32
    %v479 = vpop.permute.xlu0 %478
    %v481 = vmul.f32 %v474, %v479
    %483 = vrot.lane.b32.xlu0 %v481, 32
    %v484 = vpop.permute.xlu0 %483
    %v486 = vadd.f32 %v476, %v484
    %v487 = vtanh.pop %v486
    %489 = vrot.lane.b32.xlu0 %v487, 32
    %v490 = vpop.permute.xlu0 %489
    %v492 = vmul.f32 %v474, %v490
    %v493 = vadd.f32 %v467, %v458
    %v494 = vxor.u32 %v493, 2147483648
    %v495 = vmul.f32 %v494, 1.442695
    %v496 = vpow.pop %v495
    %v497 = vadd.f32 %v496, 1.0
    %v498 = vrcp.pop %v497
    %v499 = vmul.f32 1.0, %v498
    %v500 = vtanh.pop %v493
    %v501 = vmul.f32 %v499, %v349
    %503 = vrot.lane.b32.xlu0 %v500, 32
    %v504 = vpop.permute.xlu0 %503
    %v506 = vmul.f32 %v499, %v504
    %508 = vrot.lane.b32.xlu0 %v506, 32
    %v509 = vpop.permute.xlu0 %508
    %v511 = vadd.f32 %v501, %v509
    %v512 = vtanh.pop %v511
    %514 = vrot.lane.b32.xlu0 %v512, 32
    %v515 = vpop.permute.xlu0 %514
    %v517 = vmul.f32 %v499, %v515
    %519 = vrot.lane.b32.xlu0 %v492, 64
    %v520 = vpop.permute.xlu0 %519
    %s522 = scalar_lea.vmem %s4, 8
    %523 = vst.msk [vmem:[%s522] sm:$0xff] %vm360, %v520
    %525 = vrot.lane.b32.xlu0 %v517, 96
    %v526 = vpop.permute.xlu0 %525
    %s528 = scalar_lea.vmem %s4, 48
    %529 = vst.msk [vmem:[%s528] sm:$0xff] %vm367, %v526
    %v530 = vsel %vm360, %v520, %v526
    %v531 = vld [vmem:[#allocation3] sm:$0xff]
    %v532 = vld [vmem:[#allocation3 + $0x8] sm:$0xff]
    %v533 = vld [vmem:[#allocation3 + $0x10] sm:$0xff]
    %v534 = vld [vmem:[#allocation3 + $0x18] sm:$0xff]
    %v535 = vld [vmem:[#allocation3 + $0x20] sm:$0xff]
    %v536 = vld [vmem:[#allocation3 + $0x28] sm:$0xff]
    %v537 = vld [vmem:[#allocation3 + $0x30] sm:$0xff]
    %v538 = vld [vmem:[#allocation3 + $0x38] sm:$0xff]
    %v539 = vld [vmem:[#allocation3 + $0x40] sm:$0xff]
    %v540 = vld [vmem:[#allocation3 + $0x48] sm:$0xff]
    %v541 = vld [vmem:[#allocation3 + $0x50] sm:$0xff]
    %v542 = vld [vmem:[#allocation3 + $0x58] sm:$0xff]
    %v543 = vld [vmem:[#allocation3 + $0x60] sm:$0xff]
    %v544 = vld [vmem:[#allocation3 + $0x68] sm:$0xff]
    %v545 = vld [vmem:[#allocation3 + $0x70] sm:$0xff]
    %v546 = vld [vmem:[#allocation3 + $0x78] sm:$0xff]
    %v548 = vsel %vm223, %v530, 0
    %550 = vmatprep.subr.mxu0 %v532
    %551 = vmatpush1.msra.mxu0 %v531
    %552 = vmatprep.subr.mxu0 %v534
    %553 = vmatpush1.msra.mxu0 %v533
    %554 = vmatprep.subr.mxu0 %v536
    %555 = vmatpush1.msra.mxu0 %v535
    %556 = vmatprep.subr.mxu0 %v538
    %557 = vmatpush1.msra.mxu0 %v537
    %558 = vmatprep.subr.mxu0 %v540
    %559 = vmatpush1.msra.mxu0 %v539
    %560 = vmatprep.subr.mxu0 %v542
    %561 = vmatpush1.msra.mxu0 %v541
    %562 = vmatprep.subr.mxu0 %v544
    %563 = vmatpush1.msra.mxu0 %v543
    %564 = vmatprep.subr.mxu0 %v546
    %565 = vmatpush1.msra.mxu0 %v545
    %566 = vmatprep.subr.mxu0 0.0
    %567 = vmatpush1.msra.mxu0 0.0
    %568 = vmatprep.subr.mxu0 0.0
    %569 = vmatpush1.msra.mxu0 0.0
    %570 = vmatprep.subr.mxu0 0.0
    %571 = vmatpush1.msra.mxu0 0.0
    %572 = vmatprep.subr.mxu0 0.0
    %573 = vmatpush1.msra.mxu0 0.0
    %574 = vmatprep.subr.mxu0 0.0
    %575 = vmatpush1.msra.mxu0 0.0
    %576 = vmatprep.subr.mxu0 0.0
    %577 = vmatpush1.msra.mxu0 0.0
    %578 = vmatprep.subr.mxu0 0.0
    %579 = vmatpush1.msra.mxu0 0.0
    %580 = vmatprep.subr.mxu0 0.0
    %581 = vmatpush1.msra.mxu0 0.0
    %582 = vmatprep.subr.mxu0 0.0
    %583 = vmatpush1.msra.mxu0 0.0
    %584 = vmatprep.subr.mxu0 0.0
    %585 = vmatpush1.msra.mxu0 0.0
    %586 = vmatprep.subr.mxu0 0.0
    %587 = vmatpush1.msra.mxu0 0.0
    %588 = vmatprep.subr.mxu0 0.0
    %589 = vmatpush1.msra.mxu0 0.0
    %590 = vmatprep.subr.mxu0 0.0
    %591 = vmatpush1.msra.mxu0 0.0
    %592 = vmatprep.subr.mxu0 0.0
    %593 = vmatpush1.msra.mxu0 0.0
    %594 = vmatprep.subr.mxu0 0.0
    %595 = vmatpush1.msra.mxu0 0.0
    %596 = vmatprep.subr.mxu0 0.0
    %597 = vmatpush1.msra.mxu0 0.0
    %598 = vmatprep.subr.mxu0 0.0
    %599 = vmatpush1.msra.mxu0 0.0
    %600 = vmatprep.subr.mxu0 0.0
    %601 = vmatpush1.msra.mxu0 0.0
    %602 = vmatprep.subr.mxu0 0.0
    %603 = vmatpush1.msra.mxu0 0.0
    %604 = vmatprep.subr.mxu0 0.0
    %605 = vmatpush1.msra.mxu0 0.0
    %606 = vmatprep.subr.mxu0 0.0
    %607 = vmatpush1.msra.mxu0 0.0
    %608 = vmatprep.subr.mxu0 0.0
    %609 = vmatpush1.msra.mxu0 0.0
    %610 = vmatprep.subr.mxu0 0.0
    %611 = vmatpush1.msra.mxu0 0.0
    %612 = vmatprep.subr.mxu0 0.0
    %613 = vmatpush1.msra.mxu0 0.0
    %614 = vmatprep.mubr.f32.mxu0 0.0
    %615 = vmatmul.mubr.f32.gmra.mrb[0].mxu0 %v548
    %v616 = vpop.f32.mrb[0].mxu0
    %v617 = vadd.f32 0.0, %v616
    %v618 = vpop.f32.mrb[0].mxu0
    %v619 = vadd.f32 0.0, %v618
    %620 = vdwg.mxu0
    %s621 = smul.u32 2, 2
    %s622 = smul.addr %s621, 8
    %s623 = scalar_lea.vmem [#allocation2], %s622
    %v624 = vld [vmem:[%s623] sm:$0xff]
    %s625 = smul.u32 5, 2
    %s626 = smul.addr %s625, 8
    %s627 = scalar_lea.vmem [#allocation2], %s626
    %v628 = vld [vmem:[%s627 + $0x8] sm:$0xff]
    %v629 = vadd.f32 %v624, %v617
    %v630 = vxor.u32 %v629, 2147483648
    %v631 = vmul.f32 %v630, 1.442695
    %v632 = vpow.pop %v631
    %v633 = vadd.f32 %v632, 1.0
    %v634 = vrcp.pop %v633
    %v635 = vmul.f32 1.0, %v634
    %v636 = vtanh.pop %v629
    %v637 = vmul.f32 %v635, %v486
    %639 = vrot.lane.b32.xlu0 %v636, 32
    %v640 = vpop.permute.xlu0 %639
    %v642 = vmul.f32 %v635, %v640
    %644 = vrot.lane.b32.xlu0 %v642, 32
    %v645 = vpop.permute.xlu0 %644
    %v647 = vadd.f32 %v637, %v645
    %v648 = vtanh.pop %v647
    %650 = vrot.lane.b32.xlu0 %v648, 32
    %v651 = vpop.permute.xlu0 %650
    %v653 = vmul.f32 %v635, %v651
    %v654 = vadd.f32 %v628, %v619
    %v655 = vxor.u32 %v654, 2147483648
    %v656 = vmul.f32 %v655, 1.442695
    %v657 = vpow.pop %v656
    %v658 = vadd.f32 %v657, 1.0
    %v659 = vrcp.pop %v658
    %v660 = vmul.f32 1.0, %v659
    %v661 = vtanh.pop %v654
    %v662 = vmul.f32 %v660, %v511
    %664 = vrot.lane.b32.xlu0 %v661, 32
    %v665 = vpop.permute.xlu0 %664
    %v667 = vmul.f32 %v660, %v665
    %669 = vrot.lane.b32.xlu0 %v667, 32
    %v670 = vpop.permute.xlu0 %669
    %v672 = vadd.f32 %v662, %v670
    %v673 = vtanh.pop %v672
    %675 = vrot.lane.b32.xlu0 %v673, 32
    %v676 = vpop.permute.xlu0 %675
    %v678 = vmul.f32 %v660, %v676
    %680 = vrot.lane.b32.xlu0 %v653, 64
    %v681 = vpop.permute.xlu0 %680
    %s683 = scalar_lea.vmem %s4, 16
    %684 = vst.msk [vmem:[%s683] sm:$0xff] %vm360, %v681
    %686 = vrot.lane.b32.xlu0 %v678, 96
    %v687 = vpop.permute.xlu0 %686
    %s689 = scalar_lea.vmem %s4, 40
    %690 = vst.msk [vmem:[%s689] sm:$0xff] %vm367, %v687
    %v691 = vsel %vm360, %v681, %v687
    %v692 = vld [vmem:[#allocation3] sm:$0xff]
    %v693 = vld [vmem:[#allocation3 + $0x8] sm:$0xff]
    %v694 = vld [vmem:[#allocation3 + $0x10] sm:$0xff]
    %v695 = vld [vmem:[#allocation3 + $0x18] sm:$0xff]
    %v696 = vld [vmem:[#allocation3 + $0x20] sm:$0xff]
    %v697 = vld [vmem:[#allocation3 + $0x28] sm:$0xff]
    %v698 = vld [vmem:[#allocation3 + $0x30] sm:$0xff]
    %v699 = vld [vmem:[#allocation3 + $0x38] sm:$0xff]
    %v700 = vld [vmem:[#allocation3 + $0x40] sm:$0xff]
    %v701 = vld [vmem:[#allocation3 + $0x48] sm:$0xff]
    %v702 = vld [vmem:[#allocation3 + $0x50] sm:$0xff]
    %v703 = vld [vmem:[#allocation3 + $0x58] sm:$0xff]
    %v704 = vld [vmem:[#allocation3 + $0x60] sm:$0xff]
    %v705 = vld [vmem:[#allocation3 + $0x68] sm:$0xff]
    %v706 = vld [vmem:[#allocation3 + $0x70] sm:$0xff]
    %v707 = vld [vmem:[#allocation3 + $0x78] sm:$0xff]
    %v709 = vsel %vm223, %v691, 0
    %711 = vmatprep.subr.mxu0 %v693
    %712 = vmatpush1.msra.mxu0 %v692
    %713 = vmatprep.subr.mxu0 %v695
    %714 = vmatpush1.msra.mxu0 %v694
    %715 = vmatprep.subr.mxu0 %v697
    %716 = vmatpush1.msra.mxu0 %v696
    %717 = vmatprep.subr.mxu0 %v699
    %718 = vmatpush1.msra.mxu0 %v698
    %719 = vmatprep.subr.mxu0 %v701
    %720 = vmatpush1.msra.mxu0 %v700
    %721 = vmatprep.subr.mxu0 %v703
    %722 = vmatpush1.msra.mxu0 %v702
    %723 = vmatprep.subr.mxu0 %v705
    %724 = vmatpush1.msra.mxu0 %v704
    %725 = vmatprep.subr.mxu0 %v707
    %726 = vmatpush1.msra.mxu0 %v706
    %727 = vmatprep.subr.mxu0 0.0
    %728 = vmatpush1.msra.mxu0 0.0
    %729 = vmatprep.subr.mxu0 0.0
    %730 = vmatpush1.msra.mxu0 0.0
    %731 = vmatprep.subr.mxu0 0.0
    %732 = vmatpush1.msra.mxu0 0.0
    %733 = vmatprep.subr.mxu0 0.0
    %734 = vmatpush1.msra.mxu0 0.0
    %735 = vmatprep.subr.mxu0 0.0
    %736 = vmatpush1.msra.mxu0 0.0
    %737 = vmatprep.subr.mxu0 0.0
    %738 = vmatpush1.msra.mxu0 0.0
    %739 = vmatprep.subr.mxu0 0.0
    %740 = vmatpush1.msra.mxu0 0.0
    %741 = vmatprep.subr.mxu0 0.0
    %742 = vmatpush1.msra.mxu0 0.0
    %743 = vmatprep.subr.mxu0 0.0
    %744 = vmatpush1.msra.mxu0 0.0
    %745 = vmatprep.subr.mxu0 0.0
    %746 = vmatpush1.msra.mxu0 0.0
    %747 = vmatprep.subr.mxu0 0.0
    %748 = vmatpush1.msra.mxu0 0.0
    %749 = vmatprep.subr.mxu0 0.0
    %750 = vmatpush1.msra.mxu0 0.0
    %751 = vmatprep.subr.mxu0 0.0
    %752 = vmatpush1.msra.mxu0 0.0
    %753 = vmatprep.subr.mxu0 0.0
    %754 = vmatpush1.msra.mxu0 0.0
    %755 = vmatprep.subr.mxu0 0.0
    %756 = vmatpush1.msra.mxu0 0.0
    %757 = vmatprep.subr.mxu0 0.0
    %758 = vmatpush1.msra.mxu0 0.0
    %759 = vmatprep.subr.mxu0 0.0
    %760 = vmatpush1.msra.mxu0 0.0
    %761 = vmatprep.subr.mxu0 0.0
    %762 = vmatpush1.msra.mxu0 0.0
    %763 = vmatprep.subr.mxu0 0.0
    %764 = vmatpush1.msra.mxu0 0.0
    %765 = vmatprep.subr.mxu0 0.0
    %766 = vmatpush1.msra.mxu0 0.0
    %767 = vmatprep.subr.mxu0 0.0
    %768 = vmatpush1.msra.mxu0 0.0
    %769 = vmatprep.subr.mxu0 0.0
    %770 = vmatpush1.msra.mxu0 0.0
    %771 = vmatprep.subr.mxu0 0.0
    %772 = vmatpush1.msra.mxu0 0.0
    %773 = vmatprep.subr.mxu0 0.0
    %774 = vmatpush1.msra.mxu0 0.0
    %775 = vmatprep.mubr.f32.mxu0 0.0
    %776 = vmatmul.mubr.f32.gmra.mrb[0].mxu0 %v709
    %v777 = vpop.f32.mrb[0].mxu0
    %v778 = vadd.f32 0.0, %v777
    %v779 = vpop.f32.mrb[0].mxu0
    %v780 = vadd.f32 0.0, %v779
    %781 = vdwg.mxu0
    %s782 = smul.u32 3, 2
    %s783 = smul.addr %s782, 8
    %s784 = scalar_lea.vmem [#allocation2], %s783
    %v785 = vld [vmem:[%s784] sm:$0xff]
    %s786 = smul.u32 4, 2
    %s787 = smul.addr %s786, 8
    %s788 = scalar_lea.vmem [#allocation2], %s787
    %v789 = vld [vmem:[%s788 + $0x8] sm:$0xff]
    %v790 = vadd.f32 %v785, %v778
    %v791 = vxor.u32 %v790, 2147483648
    %v792 = vmul.f32 %v791, 1.442695
    %v793 = vpow.pop %v792
    %v794 = vadd.f32 %v793, 1.0
    %v795 = vrcp.pop %v794
    %v796 = vmul.f32 1.0, %v795
    %v797 = vtanh.pop %v790
    %v798 = vmul.f32 %v796, %v647
    %800 = vrot.lane.b32.xlu0 %v797, 32
    %v801 = vpop.permute.xlu0 %800
    %v803 = vmul.f32 %v796, %v801
    %805 = vrot.lane.b32.xlu0 %v803, 32
    %v806 = vpop.permute.xlu0 %805
    %v808 = vadd.f32 %v798, %v806
    %v809 = vtanh.pop %v808
    %811 = vrot.lane.b32.xlu0 %v809, 32
    %v812 = vpop.permute.xlu0 %811
    %v814 = vmul.f32 %v796, %v812
    %v815 = vadd.f32 %v789, %v780
    %v816 = vxor.u32 %v815, 2147483648
    %v817 = vmul.f32 %v816, 1.442695
    %v818 = vpow.pop %v817
    %v819 = vadd.f32 %v818, 1.0
    %v820 = vrcp.pop %v819
    %v821 = vmul.f32 1.0, %v820
    %v822 = vtanh.pop %v815
    %v823 = vmul.f32 %v821, %v672
    %825 = vrot.lane.b32.xlu0 %v822, 32
    %v826 = vpop.permute.xlu0 %825
    %v828 = vmul.f32 %v821, %v826
    %830 = vrot.lane.b32.xlu0 %v828, 32
    %v831 = vpop.permute.xlu0 %830
    %v833 = vadd.f32 %v823, %v831
    %v834 = vtanh.pop %v833
    %836 = vrot.lane.b32.xlu0 %v834, 32
    %v837 = vpop.permute.xlu0 %836
    %v839 = vmul.f32 %v821, %v837
    %841 = vrot.lane.b32.xlu0 %v814, 64
    %v842 = vpop.permute.xlu0 %841
    %s844 = scalar_lea.vmem %s4, 24
    %845 = vst.msk [vmem:[%s844] sm:$0xff] %vm360, %v842
    %847 = vrot.lane.b32.xlu0 %v839, 96
    %v848 = vpop.permute.xlu0 %847
    %s850 = scalar_lea.vmem %s4, 32
    %851 = vst.msk [vmem:[%s850] sm:$0xff] %vm367, %v848
    %v852 = vsel %vm360, %v842, %v848
    %v853 = vld [vmem:[#allocation3] sm:$0xff]
    %v854 = vld [vmem:[#allocation3 + $0x8] sm:$0xff]
    %v855 = vld [vmem:[#allocation3 + $0x10] sm:$0xff]
    %v856 = vld [vmem:[#allocation3 + $0x18] sm:$0xff]
    %v857 = vld [vmem:[#allocation3 + $0x20] sm:$0xff]
    %v858 = vld [vmem:[#allocation3 + $0x28] sm:$0xff]
    %v859 = vld [vmem:[#allocation3 + $0x30] sm:$0xff]
    %v860 = vld [vmem:[#allocation3 + $0x38] sm:$0xff]
    %v861 = vld [vmem:[#allocation3 + $0x40] sm:$0xff]
    %v862 = vld [vmem:[#allocation3 + $0x48] sm:$0xff]
    %v863 = vld [vmem:[#allocation3 + $0x50] sm:$0xff]
    %v864 = vld [vmem:[#allocation3 + $0x58] sm:$0xff]
    %v865 = vld [vmem:[#allocation3 + $0x60] sm:$0xff]
    %v866 = vld [vmem:[#allocation3 + $0x68] sm:$0xff]
    %v867 = vld [vmem:[#allocation3 + $0x70] sm:$0xff]
    %v868 = vld [vmem:[#allocation3 + $0x78] sm:$0xff]
    %v870 = vsel %vm223, %v852, 0
    %872 = vmatprep.subr.mxu0 %v854
    %873 = vmatpush1.msra.mxu0 %v853
    %874 = vmatprep.subr.mxu0 %v856
    %875 = vmatpush1.msra.mxu0 %v855
    %876 = vmatprep.subr.mxu0 %v858
    %877 = vmatpush1.msra.mxu0 %v857
    %878 = vmatprep.subr.mxu0 %v860
    %879 = vmatpush1.msra.mxu0 %v859
    %880 = vmatprep.subr.mxu0 %v862
    %881 = vmatpush1.msra.mxu0 %v861
    %882 = vmatprep.subr.mxu0 %v864
    %883 = vmatpush1.msra.mxu0 %v863
    %884 = vmatprep.subr.mxu0 %v866
    %885 = vmatpush1.msra.mxu0 %v865
    %886 = vmatprep.subr.mxu0 %v868
    %887 = vmatpush1.msra.mxu0 %v867
    %888 = vmatprep.subr.mxu0 0.0
    %889 = vmatpush1.msra.mxu0 0.0
    %890 = vmatprep.subr.mxu0 0.0
    %891 = vmatpush1.msra.mxu0 0.0
    %892 = vmatprep.subr.mxu0 0.0
    %893 = vmatpush1.msra.mxu0 0.0
    %894 = vmatprep.subr.mxu0 0.0
    %895 = vmatpush1.msra.mxu0 0.0
    %896 = vmatprep.subr.mxu0 0.0
    %897 = vmatpush1.msra.mxu0 0.0
    %898 = vmatprep.subr.mxu0 0.0
    %899 = vmatpush1.msra.mxu0 0.0
    %900 = vmatprep.subr.mxu0 0.0
    %901 = vmatpush1.msra.mxu0 0.0
    %902 = vmatprep.subr.mxu0 0.0
    %903 = vmatpush1.msra.mxu0 0.0
    %904 = vmatprep.subr.mxu0 0.0
    %905 = vmatpush1.msra.mxu0 0.0
    %906 = vmatprep.subr.mxu0 0.0
    %907 = vmatpush1.msra.mxu0 0.0
    %908 = vmatprep.subr.mxu0 0.0
    %909 = vmatpush1.msra.mxu0 0.0
    %910 = vmatprep.subr.mxu0 0.0
    %911 = vmatpush1.msra.mxu0 0.0
    %912 = vmatprep.subr.mxu0 0.0
    %913 = vmatpush1.msra.mxu0 0.0
    %914 = vmatprep.subr.mxu0 0.0
    %915 = vmatpush1.msra.mxu0 0.0
    %916 = vmatprep.subr.mxu0 0.0
    %917 = vmatpush1.msra.mxu0 0.0
    %918 = vmatprep.subr.mxu0 0.0
    %919 = vmatpush1.msra.mxu0 0.0
    %920 = vmatprep.subr.mxu0 0.0
    %921 = vmatpush1.msra.mxu0 0.0
    %922 = vmatprep.subr.mxu0 0.0
    %923 = vmatpush1.msra.mxu0 0.0
    %924 = vmatprep.subr.mxu0 0.0
    %925 = vmatpush1.msra.mxu0 0.0
    %926 = vmatprep.subr.mxu0 0.0
    %927 = vmatpush1.msra.mxu0 0.0
    %928 = vmatprep.subr.mxu0 0.0
    %929 = vmatpush1.msra.mxu0 0.0
    %930 = vmatprep.subr.mxu0 0.0
    %931 = vmatpush1.msra.mxu0 0.0
    %932 = vmatprep.subr.mxu0 0.0
    %933 = vmatpush1.msra.mxu0 0.0
    %934 = vmatprep.subr.mxu0 0.0
    %935 = vmatpush1.msra.mxu0 0.0
    %936 = vmatprep.mubr.f32.mxu0 0.0
    %937 = vmatmul.mubr.f32.gmra.mrb[0].mxu0 %v870
    %v938 = vpop.f32.mrb[0].mxu0
    %v939 = vadd.f32 0.0, %v938
    %v940 = vpop.f32.mrb[0].mxu0
    %v941 = vadd.f32 0.0, %v940
    %942 = vdwg.mxu0
    %v943 = vld [vmem:[%s788] sm:$0xff]
    %v944 = vld [vmem:[%s784 + $0x8] sm:$0xff]
    %v945 = vadd.f32 %v943, %v939
    %v946 = vxor.u32 %v945, 2147483648
    %v947 = vmul.f32 %v946, 1.442695
    %v948 = vpow.pop %v947
    %v949 = vadd.f32 %v948, 1.0
    %v950 = vrcp.pop %v949
    %v951 = vmul.f32 1.0, %v950
    %v952 = vtanh.pop %v945
    %v953 = vmul.f32 %v951, %v808
    %955 = vrot.lane.b32.xlu0 %v952, 32
    %v956 = vpop.permute.xlu0 %955
    %v958 = vmul.f32 %v951, %v956
    %960 = vrot.lane.b32.xlu0 %v958, 32
    %v961 = vpop.permute.xlu0 %960
    %v963 = vadd.f32 %v953, %v961
    %v964 = vtanh.pop %v963
    %966 = vrot.lane.b32.xlu0 %v964, 32
    %v967 = vpop.permute.xlu0 %966
    %v969 = vmul.f32 %v951, %v967
    %v970 = vadd.f32 %v944, %v941
    %v971 = vxor.u32 %v970, 2147483648
    %v972 = vmul.f32 %v971, 1.442695
    %v973 = vpow.pop %v972
    %v974 = vadd.f32 %v973, 1.0
    %v975 = vrcp.pop %v974
    %v976 = vmul.f32 1.0, %v975
    %v977 = vtanh.pop %v970
    %v978 = vmul.f32 %v976, %v833
    %980 = vrot.lane.b32.xlu0 %v977, 32
    %v981 = vpop.permute.xlu0 %980
    %v983 = vmul.f32 %v976, %v981
    %985 = vrot.lane.b32.xlu0 %v983, 32
    %v986 = vpop.permute.xlu0 %985
    %v988 = vadd.f32 %v978, %v986
    %v989 = vtanh.pop %v988
    %991 = vrot.lane.b32.xlu0 %v989, 32
    %v992 = vpop.permute.xlu0 %991
    %v994 = vmul.f32 %v976, %v992
    %996 = vrot.lane.b32.xlu0 %v969, 64
    %v997 = vpop.permute.xlu0 %996
    %999 = vst.msk [vmem:[%s850] sm:$0xff] %vm360, %v997
    %1001 = vrot.lane.b32.xlu0 %v994, 96
    %v1002 = vpop.permute.xlu0 %1001
    %1004 = vst.msk [vmem:[%s844] sm:$0xff] %vm367, %v1002
    %v1005 = vsel %vm360, %v997, %v1002
    %v1006 = vld [vmem:[#allocation3] sm:$0xff]
    %v1007 = vld [vmem:[#allocation3 + $0x8] sm:$0xff]
    %v1008 = vld [vmem:[#allocation3 + $0x10] sm:$0xff]
    %v1009 = vld [vmem:[#allocation3 + $0x18] sm:$0xff]
    %v1010 = vld [vmem:[#allocation3 + $0x20] sm:$0xff]
    %v1011 = vld [vmem:[#allocation3 + $0x28] sm:$0xff]
    %v1012 = vld [vmem:[#allocation3 + $0x30] sm:$0xff]
    %v1013 = vld [vmem:[#allocation3 + $0x38] sm:$0xff]
    %v1014 = vld [vmem:[#allocation3 + $0x40] sm:$0xff]
    %v1015 = vld [vmem:[#allocation3 + $0x48] sm:$0xff]
    %v1016 = vld [vmem:[#allocation3 + $0x50] sm:$0xff]
    %v1017 = vld [vmem:[#allocation3 + $0x58] sm:$0xff]
    %v1018 = vld [vmem:[#allocation3 + $0x60] sm:$0xff]
    %v1019 = vld [vmem:[#allocation3 + $0x68] sm:$0xff]
    %v1020 = vld [vmem:[#allocation3 + $0x70] sm:$0xff]
    %v1021 = vld [vmem:[#allocation3 + $0x78] sm:$0xff]
    %v1023 = vsel %vm223, %v1005, 0
    %1025 = vmatprep.subr.mxu0 %v1007
    %1026 = vmatpush1.msra.mxu0 %v1006
    %1027 = vmatprep.subr.mxu0 %v1009
    %1028 = vmatpush1.msra.mxu0 %v1008
    %1029 = vmatprep.subr.mxu0 %v1011
    %1030 = vmatpush1.msra.mxu0 %v1010
    %1031 = vmatprep.subr.mxu0 %v1013
    %1032 = vmatpush1.msra.mxu0 %v1012
    %1033 = vmatprep.subr.mxu0 %v1015
    %1034 = vmatpush1.msra.mxu0 %v1014
    %1035 = vmatprep.subr.mxu0 %v1017
    %1036 = vmatpush1.msra.mxu0 %v1016
    %1037 = vmatprep.subr.mxu0 %v1019
    %1038 = vmatpush1.msra.mxu0 %v1018
    %1039 = vmatprep.subr.mxu0 %v1021
    %1040 = vmatpush1.msra.mxu0 %v1020
    %1041 = vmatprep.subr.mxu0 0.0
    %1042 = vmatpush1.msra.mxu0 0.0
    %1043 = vmatprep.subr.mxu0 0.0
    %1044 = vmatpush1.msra.mxu0 0.0
    %1045 = vmatprep.subr.mxu0 0.0
    %1046 = vmatpush1.msra.mxu0 0.0
    %1047 = vmatprep.subr.mxu0 0.0
    %1048 = vmatpush1.msra.mxu0 0.0
    %1049 = vmatprep.subr.mxu0 0.0
    %1050 = vmatpush1.msra.mxu0 0.0
    %1051 = vmatprep.subr.mxu0 0.0
    %1052 = vmatpush1.msra.mxu0 0.0
    %1053 = vmatprep.subr.mxu0 0.0
    %1054 = vmatpush1.msra.mxu0 0.0
    %1055 = vmatprep.subr.mxu0 0.0
    %1056 = vmatpush1.msra.mxu0 0.0
    %1057 = vmatprep.subr.mxu0 0.0
    %1058 = vmatpush1.msra.mxu0 0.0
    %1059 = vmatprep.subr.mxu0 0.0
    %1060 = vmatpush1.msra.mxu0 0.0
    %1061 = vmatprep.subr.mxu0 0.0
    %1062 = vmatpush1.msra.mxu0 0.0
    %1063 = vmatprep.subr.mxu0 0.0
    %1064 = vmatpush1.msra.mxu0 0.0
    %1065 = vmatprep.subr.mxu0 0.0
    %1066 = vmatpush1.msra.mxu0 0.0
    %1067 = vmatprep.subr.mxu0 0.0
    %1068 = vmatpush1.msra.mxu0 0.0
    %1069 = vmatprep.subr.mxu0 0.0
    %1070 = vmatpush1.msra.mxu0 0.0
    %1071 = vmatprep.subr.mxu0 0.0
    %1072 = vmatpush1.msra.mxu0 0.0
    %1073 = vmatprep.subr.mxu0 0.0
    %1074 = vmatpush1.msra.mxu0 0.0
    %1075 = vmatprep.subr.mxu0 0.0
    %1076 = vmatpush1.msra.mxu0 0.0
    %1077 = vmatprep.subr.mxu0 0.0
    %1078 = vmatpush1.msra.mxu0 0.0
    %1079 = vmatprep.subr.mxu0 0.0
    %1080 = vmatpush1.msra.mxu0 0.0
    %1081 = vmatprep.subr.mxu0 0.0
    %1082 = vmatpush1.msra.mxu0 0.0
    %1083 = vmatprep.subr.mxu0 0.0
    %1084 = vmatpush1.msra.mxu0 0.0
    %1085 = vmatprep.subr.mxu0 0.0
    %1086 = vmatpush1.msra.mxu0 0.0
    %1087 = vmatprep.subr.mxu0 0.0
    %1088 = vmatpush1.msra.mxu0 0.0
    %1089 = vmatprep.mubr.f32.mxu0 0.0
    %1090 = vmatmul.mubr.f32.gmra.mrb[0].mxu0 %v1023
    %v1091 = vpop.f32.mrb[0].mxu0
    %v1092 = vadd.f32 0.0, %v1091
    %v1093 = vpop.f32.mrb[0].mxu0
    %v1094 = vadd.f32 0.0, %v1093
    %1095 = vdwg.mxu0
    %v1096 = vld [vmem:[%s627] sm:$0xff]
    %v1097 = vld [vmem:[%s623 + $0x8] sm:$0xff]
    %v1098 = vadd.f32 %v1096, %v1092
    %v1099 = vxor.u32 %v1098, 2147483648
    %v1100 = vmul.f32 %v1099, 1.442695
    %v1101 = vpow.pop %v1100
    %v1102 = vadd.f32 %v1101, 1.0
    %v1103 = vrcp.pop %v1102
    %v1104 = vmul.f32 1.0, %v1103
    %v1105 = vtanh.pop %v1098
    %v1106 = vmul.f32 %v1104, %v963
    %1108 = vrot.lane.b32.xlu0 %v1105, 32
    %v1109 = vpop.permute.xlu0 %1108
    %v1111 = vmul.f32 %v1104, %v1109
    %1113 = vrot.lane.b32.xlu0 %v1111, 32
    %v1114 = vpop.permute.xlu0 %1113
    %v1116 = vadd.f32 %v1106, %v1114
    %v1117 = vtanh.pop %v1116
    %1119 = vrot.lane.b32.xlu0 %v1117, 32
    %v1120 = vpop.permute.xlu0 %1119
    %v1122 = vmul.f32 %v1104, %v1120
    %v1123 = vadd.f32 %v1097, %v1094
    %v1124 = vxor.u32 %v1123, 2147483648
    %v1125 = vmul.f32 %v1124, 1.442695
    %v1126 = vpow.pop %v1125
    %v1127 = vadd.f32 %v1126, 1.0
    %v1128 = vrcp.pop %v1127
    %v1129 = vmul.f32 1.0, %v1128
    %v1130 = vtanh.pop %v1123
    %v1131 = vmul.f32 %v1129, %v988
    %1133 = vrot.lane.b32.xlu0 %v1130, 32
    %v1134 = vpop.permute.xlu0 %1133
    %v1136 = vmul.f32 %v1129, %v1134
    %1138 = vrot.lane.b32.xlu0 %v1136, 32
    %v1139 = vpop.permute.xlu0 %1138
    %v1141 = vadd.f32 %v1131, %v1139
    %v1142 = vtanh.pop %v1141
    %1144 = vrot.lane.b32.xlu0 %v1142, 32
    %v1145 = vpop.permute.xlu0 %1144
    %v1147 = vmul.f32 %v1129, %v1145
    %1149 = vrot.lane.b32.xlu0 %v1122, 64
    %v1150 = vpop.permute.xlu0 %1149
    %1152 = vst.msk [vmem:[%s689] sm:$0xff] %vm360, %v1150
    %1154 = vrot.lane.b32.xlu0 %v1147, 96
    %v1155 = vpop.permute.xlu0 %1154
    %1157 = vst.msk [vmem:[%s683] sm:$0xff] %vm367, %v1155
    %v1158 = vsel %vm360, %v1150, %v1155
    %v1159 = vld [vmem:[#allocation3] sm:$0xff]
    %v1160 = vld [vmem:[#allocation3 + $0x8] sm:$0xff]
    %v1161 = vld [vmem:[#allocation3 + $0x10] sm:$0xff]
    %v1162 = vld [vmem:[#allocation3 + $0x18] sm:$0xff]
    %v1163 = vld [vmem:[#allocation3 + $0x20] sm:$0xff]
    %v1164 = vld [vmem:[#allocation3 + $0x28] sm:$0xff]
    %v1165 = vld [vmem:[#allocation3 + $0x30] sm:$0xff]
    %v1166 = vld [vmem:[#allocation3 + $0x38] sm:$0xff]
    %v1167 = vld [vmem:[#allocation3 + $0x40] sm:$0xff]
    %v1168 = vld [vmem:[#allocation3 + $0x48] sm:$0xff]
    %v1169 = vld [vmem:[#allocation3 + $0x50] sm:$0xff]
    %v1170 = vld [vmem:[#allocation3 + $0x58] sm:$0xff]
    %v1171 = vld [vmem:[#allocation3 + $0x60] sm:$0xff]
    %v1172 = vld [vmem:[#allocation3 + $0x68] sm:$0xff]
    %v1173 = vld [vmem:[#allocation3 + $0x70] sm:$0xff]
    %v1174 = vld [vmem:[#allocation3 + $0x78] sm:$0xff]
    %v1176 = vsel %vm223, %v1158, 0
    %1178 = vmatprep.subr.mxu0 %v1160
    %1179 = vmatpush1.msra.mxu0 %v1159
    %1180 = vmatprep.subr.mxu0 %v1162
    %1181 = vmatpush1.msra.mxu0 %v1161
    %1182 = vmatprep.subr.mxu0 %v1164
    %1183 = vmatpush1.msra.mxu0 %v1163
    %1184 = vmatprep.subr.mxu0 %v1166
    %1185 = vmatpush1.msra.mxu0 %v1165
    %1186 = vmatprep.subr.mxu0 %v1168
    %1187 = vmatpush1.msra.mxu0 %v1167
    %1188 = vmatprep.subr.mxu0 %v1170
    %1189 = vmatpush1.msra.mxu0 %v1169
    %1190 = vmatprep.subr.mxu0 %v1172
    %1191 = vmatpush1.msra.mxu0 %v1171
    %1192 = vmatprep.subr.mxu0 %v1174
    %1193 = vmatpush1.msra.mxu0 %v1173
    %1194 = vmatprep.subr.mxu0 0.0
    %1195 = vmatpush1.msra.mxu0 0.0
    %1196 = vmatprep.subr.mxu0 0.0
    %1197 = vmatpush1.msra.mxu0 0.0
    %1198 = vmatprep.subr.mxu0 0.0
    %1199 = vmatpush1.msra.mxu0 0.0
    %1200 = vmatprep.subr.mxu0 0.0
    %1201 = vmatpush1.msra.mxu0 0.0
    %1202 = vmatprep.subr.mxu0 0.0
    %1203 = vmatpush1.msra.mxu0 0.0
    %1204 = vmatprep.subr.mxu0 0.0
    %1205 = vmatpush1.msra.mxu0 0.0
    %1206 = vmatprep.subr.mxu0 0.0
    %1207 = vmatpush1.msra.mxu0 0.0
    %1208 = vmatprep.subr.mxu0 0.0
    %1209 = vmatpush1.msra.mxu0 0.0
    %1210 = vmatprep.subr.mxu0 0.0
    %1211 = vmatpush1.msra.mxu0 0.0
    %1212 = vmatprep.subr.mxu0 0.0
    %1213 = vmatpush1.msra.mxu0 0.0
    %1214 = vmatprep.subr.mxu0 0.0
    %1215 = vmatpush1.msra.mxu0 0.0
    %1216 = vmatprep.subr.mxu0 0.0
    %1217 = vmatpush1.msra.mxu0 0.0
    %1218 = vmatprep.subr.mxu0 0.0
    %1219 = vmatpush1.msra.mxu0 0.0
    %1220 = vmatprep.subr.mxu0 0.0
    %1221 = vmatpush1.msra.mxu0 0.0
    %1222 = vmatprep.subr.mxu0 0.0
    %1223 = vmatpush1.msra.mxu0 0.0
    %1224 = vmatprep.subr.mxu0 0.0
    %1225 = vmatpush1.msra.mxu0 0.0
    %1226 = vmatprep.subr.mxu0 0.0
    %1227 = vmatpush1.msra.mxu0 0.0
    %1228 = vmatprep.subr.mxu0 0.0
    %1229 = vmatpush1.msra.mxu0 0.0
    %1230 = vmatprep.subr.mxu0 0.0
    %1231 = vmatpush1.msra.mxu0 0.0
    %1232 = vmatprep.subr.mxu0 0.0
    %1233 = vmatpush1.msra.mxu0 0.0
    %1234 = vmatprep.subr.mxu0 0.0
    %1235 = vmatpush1.msra.mxu0 0.0
    %1236 = vmatprep.subr.mxu0 0.0
    %1237 = vmatpush1.msra.mxu0 0.0
    %1238 = vmatprep.subr.mxu0 0.0
    %1239 = vmatpush1.msra.mxu0 0.0
    %1240 = vmatprep.subr.mxu0 0.0
    %1241 = vmatpush1.msra.mxu0 0.0
    %1242 = vmatprep.mubr.f32.mxu0 0.0
    %1243 = vmatmul.mubr.f32.gmra.mrb[0].mxu0 %v1176
    %v1244 = vpop.f32.mrb[0].mxu0
    %v1245 = vadd.f32 0.0, %v1244
    %v1246 = vpop.f32.mrb[0].mxu0
    %v1247 = vadd.f32 0.0, %v1246
    %1248 = vdwg.mxu0
    %v1249 = vld [vmem:[%s466] sm:$0xff]
    %v1250 = vld [vmem:[%s462 + $0x8] sm:$0xff]
    %v1251 = vadd.f32 %v1249, %v1245
    %v1252 = vxor.u32 %v1251, 2147483648
    %v1253 = vmul.f32 %v1252, 1.442695
    %v1254 = vpow.pop %v1253
    %v1255 = vadd.f32 %v1254, 1.0
    %v1256 = vrcp.pop %v1255
    %v1257 = vmul.f32 1.0, %v1256
    %v1258 = vtanh.pop %v1251
    %v1259 = vmul.f32 %v1257, %v1116
    %1261 = vrot.lane.b32.xlu0 %v1258, 32
    %v1262 = vpop.permute.xlu0 %1261
    %v1264 = vmul.f32 %v1257, %v1262
    %1266 = vrot.lane.b32.xlu0 %v1264, 32
    %v1267 = vpop.permute.xlu0 %1266
    %v1269 = vadd.f32 %v1259, %v1267
    %v1270 = vtanh.pop %v1269
    %1272 = vrot.lane.b32.xlu0 %v1270, 32
    %v1273 = vpop.permute.xlu0 %1272
    %v1275 = vmul.f32 %v1257, %v1273
    %v1276 = vadd.f32 %v1250, %v1247
    %v1277 = vxor.u32 %v1276, 2147483648
    %v1278 = vmul.f32 %v1277, 1.442695
    %v1279 = vpow.pop %v1278
    %v1280 = vadd.f32 %v1279, 1.0
    %v1281 = vrcp.pop %v1280
    %v1282 = vmul.f32 1.0, %v1281
    %v1283 = vtanh.pop %v1276
    %v1284 = vmul.f32 %v1282, %v1141
    %1286 = vrot.lane.b32.xlu0 %v1283, 32
    %v1287 = vpop.permute.xlu0 %1286
    %v1289 = vmul.f32 %v1282, %v1287
    %1291 = vrot.lane.b32.xlu0 %v1289, 32
    %v1292 = vpop.permute.xlu0 %1291
    %v1294 = vadd.f32 %v1284, %v1292
    %v1295 = vtanh.pop %v1294
    %1297 = vrot.lane.b32.xlu0 %v1295, 32
    %v1298 = vpop.permute.xlu0 %1297
    %v1300 = vmul.f32 %v1282, %v1298
    %1302 = vrot.lane.b32.xlu0 %v1275, 64
    %v1303 = vpop.permute.xlu0 %1302
    %1305 = vst.msk [vmem:[%s528] sm:$0xff] %vm360, %v1303
    %1307 = vrot.lane.b32.xlu0 %v1300, 96
    %v1308 = vpop.permute.xlu0 %1307
    %1310 = vst.msk [vmem:[%s522] sm:$0xff] %vm367, %v1308
    %v1311 = vsel %vm360, %v1303, %v1308
    %v1312 = vld [vmem:[#allocation3] sm:$0xff]
    %v1313 = vld [vmem:[#allocation3 + $0x8] sm:$0xff]
    %v1314 = vld [vmem:[#allocation3 + $0x10] sm:$0xff]
    %v1315 = vld [vmem:[#allocation3 + $0x18] sm:$0xff]
    %v1316 = vld [vmem:[#allocation3 + $0x20] sm:$0xff]
    %v1317 = vld [vmem:[#allocation3 + $0x28] sm:$0xff]
    %v1318 = vld [vmem:[#allocation3 + $0x30] sm:$0xff]
    %v1319 = vld [vmem:[#allocation3 + $0x38] sm:$0xff]
    %v1320 = vld [vmem:[#allocation3 + $0x40] sm:$0xff]
    %v1321 = vld [vmem:[#allocation3 + $0x48] sm:$0xff]
    %v1322 = vld [vmem:[#allocation3 + $0x50] sm:$0xff]
    %v1323 = vld [vmem:[#allocation3 + $0x58] sm:$0xff]
    %v1324 = vld [vmem:[#allocation3 + $0x60] sm:$0xff]
    %v1325 = vld [vmem:[#allocation3 + $0x68] sm:$0xff]
    %v1326 = vld [vmem:[#allocation3 + $0x70] sm:$0xff]
    %v1327 = vld [vmem:[#allocation3 + $0x78] sm:$0xff]
    %v1329 = vsel %vm223, %v1311, 0
    %1331 = vmatprep.subr.mxu0 %v1313
    %1332 = vmatpush1.msra.mxu0 %v1312
    %1333 = vmatprep.subr.mxu0 %v1315
    %1334 = vmatpush1.msra.mxu0 %v1314
    %1335 = vmatprep.subr.mxu0 %v1317
    %1336 = vmatpush1.msra.mxu0 %v1316
    %1337 = vmatprep.subr.mxu0 %v1319
    %1338 = vmatpush1.msra.mxu0 %v1318
    %1339 = vmatprep.subr.mxu0 %v1321
    %1340 = vmatpush1.msra.mxu0 %v1320
    %1341 = vmatprep.subr.mxu0 %v1323
    %1342 = vmatpush1.msra.mxu0 %v1322
    %1343 = vmatprep.subr.mxu0 %v1325
    %1344 = vmatpush1.msra.mxu0 %v1324
    %1345 = vmatprep.subr.mxu0 %v1327
    %1346 = vmatpush1.msra.mxu0 %v1326
    %1347 = vmatprep.subr.mxu0 0.0
    %1348 = vmatpush1.msra.mxu0 0.0
    %1349 = vmatprep.subr.mxu0 0.0
    %1350 = vmatpush1.msra.mxu0 0.0
    %1351 = vmatprep.subr.mxu0 0.0
    %1352 = vmatpush1.msra.mxu0 0.0
    %1353 = vmatprep.subr.mxu0 0.0
    %1354 = vmatpush1.msra.mxu0 0.0
    %1355 = vmatprep.subr.mxu0 0.0
    %1356 = vmatpush1.msra.mxu0 0.0
    %1357 = vmatprep.subr.mxu0 0.0
    %1358 = vmatpush1.msra.mxu0 0.0
    %1359 = vmatprep.subr.mxu0 0.0
    %1360 = vmatpush1.msra.mxu0 0.0
    %1361 = vmatprep.subr.mxu0 0.0
    %1362 = vmatpush1.msra.mxu0 0.0
    %1363 = vmatprep.subr.mxu0 0.0
    %1364 = vmatpush1.msra.mxu0 0.0
    %1365 = vmatprep.subr.mxu0 0.0
    %1366 = vmatpush1.msra.mxu0 0.0
    %1367 = vmatprep.subr.mxu0 0.0
    %1368 = vmatpush1.msra.mxu0 0.0
    %1369 = vmatprep.subr.mxu0 0.0
    %1370 = vmatpush1.msra.mxu0 0.0
    %1371 = vmatprep.subr.mxu0 0.0
    %1372 = vmatpush1.msra.mxu0 0.0
    %1373 = vmatprep.subr.mxu0 0.0
    %1374 = vmatpush1.msra.mxu0 0.0
    %1375 = vmatprep.subr.mxu0 0.0
    %1376 = vmatpush1.msra.mxu0 0.0
    %1377 = vmatprep.subr.mxu0 0.0
    %1378 = vmatpush1.msra.mxu0 0.0
    %1379 = vmatprep.subr.mxu0 0.0
    %1380 = vmatpush1.msra.mxu0 0.0
    %1381 = vmatprep.subr.mxu0 0.0
    %1382 = vmatpush1.msra.mxu0 0.0
    %1383 = vmatprep.subr.mxu0 0.0
    %1384 = vmatpush1.msra.mxu0 0.0
    %1385 = vmatprep.subr.mxu0 0.0
    %1386 = vmatpush1.msra.mxu0 0.0
    %1387 = vmatprep.subr.mxu0 0.0
    %1388 = vmatpush1.msra.mxu0 0.0
    %1389 = vmatprep.subr.mxu0 0.0
    %1390 = vmatpush1.msra.mxu0 0.0
    %1391 = vmatprep.subr.mxu0 0.0
    %1392 = vmatpush1.msra.mxu0 0.0
    %1393 = vmatprep.subr.mxu0 0.0
    %1394 = vmatpush1.msra.mxu0 0.0
    %1395 = vmatprep.mubr.f32.mxu0 0.0
    %1396 = vmatmul.mubr.f32.gmra.mrb[0].mxu0 %v1329
    %v1397 = vpop.f32.mrb[0].mxu0
    %v1398 = vadd.f32 0.0, %v1397
    %v1399 = vpop.f32.mrb[0].mxu0
    %v1400 = vadd.f32 0.0, %v1399
    %1401 = vdwg.mxu0
    %v1402 = vld [vmem:[%s304] sm:$0xff]
    %v1403 = vld [vmem:[%s300 + $0x8] sm:$0xff]
    %v1404 = vadd.f32 %v1402, %v1398
    %v1405 = vxor.u32 %v1404, 2147483648
    %v1406 = vmul.f32 %v1405, 1.442695
    %v1407 = vpow.pop %v1406
    %v1408 = vadd.f32 %v1407, 1.0
    %v1409 = vrcp.pop %v1408
    %v1410 = vmul.f32 1.0, %v1409
    %v1411 = vtanh.pop %v1404
    %v1412 = vmul.f32 %v1410, %v1269
    %1414 = vrot.lane.b32.xlu0 %v1411, 32
    %v1415 = vpop.permute.xlu0 %1414
    %v1417 = vmul.f32 %v1410, %v1415
    %1419 = vrot.lane.b32.xlu0 %v1417, 32
    %v1420 = vpop.permute.xlu0 %1419
    %v1422 = vadd.f32 %v1412, %v1420
    %v1423 = vtanh.pop %v1422
    %1425 = vrot.lane.b32.xlu0 %v1423, 32
    %v1426 = vpop.permute.xlu0 %1425
    %v1428 = vmul.f32 %v1410, %v1426
    %v1429 = vadd.f32 %v1403, %v1400
    %v1430 = vxor.u32 %v1429, 2147483648
    %v1431 = vmul.f32 %v1430, 1.442695
    %v1432 = vpow.pop %v1431
    %v1433 = vadd.f32 %v1432, 1.0
    %v1434 = vrcp.pop %v1433
    %v1435 = vmul.f32 1.0, %v1434
    %v1436 = vtanh.pop %v1429
    %v1437 = vmul.f32 %v1435, %v1294
    %1439 = vrot.lane.b32.xlu0 %v1436, 32
    %v1440 = vpop.permute.xlu0 %1439
    %v1442 = vmul.f32 %v1435, %v1440
    %1444 = vrot.lane.b32.xlu0 %v1442, 32
    %v1445 = vpop.permute.xlu0 %1444
    %v1447 = vadd.f32 %v1437, %v1445
    %v1448 = vtanh.pop %v1447
    %1450 = vrot.lane.b32.xlu0 %v1448, 32
    %v1451 = vpop.permute.xlu0 %1450
    %v1453 = vmul.f32 %v1435, %v1451
    %1455 = vrot.lane.b32.xlu0 %v1428, 64
    %v1456 = vpop.permute.xlu0 %1455
    %1458 = vst.msk [vmem:[%s366] sm:$0xff] %vm360, %v1456
    %1460 = vrot.lane.b32.xlu0 %v1453, 96
    %v1461 = vpop.permute.xlu0 %1460
    %1463 = vst.msk [vmem:[%s4] sm:$0xff] %vm367, %v1461
    // Predicated region
    $region22: #{wordvec_net_forward.2} parent=1 // pred_check
      _
    $region23: #{wordvec_net_forward.2} parent=1 // pred_check_branch
      %1465 = sbr.rel (0) target = $region25
    $region24: #{wordvec_net_forward.2} parent=1 // pred_region
      _
    $region25: #{wordvec_net_forward.2} parent=1 // pred_fallthru
      _
    // Predicated region
    $region26: #{wordvec_net_forward.2} parent=1 // pred_check
      _
    $region27: #{wordvec_net_forward.2} parent=1 // pred_check_branch
      %1467 = sbr.rel (0) target = $region29
    $region28: #{wordvec_net_forward.2} parent=1 // pred_region
      _
    $region29: #{wordvec_net_forward.2} parent=1 // pred_fallthru
      _
    %1468 = vsyncpa [#allocation4], 1

</llo_original>
